<compile_context>
chip_gen: v7x
topology: tpu7x:2x2x1
jax: 0.10.0
libtpu: 0.0.40
codegen_flags: <defaults>
</compile_context>

<pallas_src>
import functools

import numpy as np
import jax
import jax.numpy as jnp
from jax.experimental import pallas as pl
from jax.experimental.pallas import tpu as pltpu


# ----------------------------- mask (Swin shift mask) -----------------------
def window_partition_np(x, window_size):
    B, H, W, C = x.shape
    x = x.reshape(B, H // window_size, window_size, W // window_size, window_size, C)
    windows = x.transpose(0, 1, 3, 2, 4, 5).reshape(-1, window_size, window_size, C)
    return windows


def calculate_mask_np(x_size, win_size, shift_size):
    """Exactly mirrors Swin_BiFormer_Attention.calculate_mask."""
    H, W = x_size
    img_mask = np.zeros((1, H, W, 1), dtype=np.float32)
    h_slices = (slice(0, -win_size), slice(-win_size, -shift_size), slice(-shift_size, None))
    w_slices = (slice(0, -win_size), slice(-win_size, -shift_size), slice(-shift_size, None))
    cnt = 0
    for h in h_slices:
        for w in w_slices:
            img_mask[:, h, w, :] = cnt
            cnt += 1
    mask_windows = window_partition_np(img_mask, win_size)
    mask_windows = mask_windows.reshape(-1, win_size * win_size)
    attn_mask = mask_windows[:, None, :] - mask_windows[:, :, None]
    attn_mask = np.where(attn_mask != 0, np.float32(-100.0), np.float32(0.0))
    return attn_mask.astype(np.float32)  # (nW, N, N)


# ----------------------------- window partition / reverse (JAX glue) --------
def window_partition(x, ws):
    B, H, W, C = x.shape
    x = x.reshape(B, H // ws, ws, W // ws, ws, C)
    return x.transpose(0, 1, 3, 2, 4, 5).reshape(-1, ws, ws, C)


def window_reverse(windows, ws, H, W):
    B = windows.shape[0] // ((H // ws) * (W // ws))
    x = windows.reshape(B, H // ws, W // ws, ws, ws, -1)
    return x.transpose(0, 1, 3, 2, 4, 5).reshape(B, H, W, -1)


# ----------------------------- Pallas kernel ---------------------------------
def _window_attn_kernel(*refs, num_heads, nW, N, scale, has_mask):
    if has_mask:
        x_ref, mask_ref, wqkv_ref, bqkv_ref, wproj_ref, bproj_ref, o_ref = refs
    else:
        x_ref, wqkv_ref, bqkv_ref, wproj_ref, bproj_ref, o_ref = refs
        mask_ref = None

    x = x_ref[0].astype(jnp.bfloat16)                 # (M, C) with M = nW * N
    M, C = x.shape
    d = C // num_heads

    # Fused qkv projection on the whole per-image slab (bf16 in / f32 acc).
    qkv = jnp.dot(x, wqkv_ref[...], preferred_element_type=jnp.float32)
    qkv = qkv + bqkv_ref[...]                         # (M, 3C)

    q = qkv[:, :C] * scale                            # scale q once (M*C elems)
    k = qkv[:, C:2 * C]
    v = qkv[:, 2 * C:]

    if has_mask:
        mask = mask_ref[...]                          # (nW, N, N) f32

    head_outs = []
    for h in range(num_heads):                        # static loop over heads
        lo, hi = h * d, (h + 1) * d
        qh = q[:, lo:hi].reshape(nW, N, d).astype(jnp.bfloat16)
        kh = k[:, lo:hi].reshape(nW, N, d).astype(jnp.bfloat16)
        vh = v[:, lo:hi].reshape(nW, N, d).astype(jnp.bfloat16)

        # window-batched q @ k^T -> (nW, N, N), f32 accumulation
        s = jnp.einsum('wnd,wmd->wnm', qh, kh,
                       preferred_element_type=jnp.float32)
        if has_mask:
            s = s + mask                              # Swin shift mask

        s = s - jnp.max(s, axis=-1, keepdims=True)
        p = jnp.exp(s)
        p = p * pl.reciprocal(jnp.sum(p, axis=-1, keepdims=True), approx=True)

        # (nW, N, N) @ (nW, N, d) -> (nW, N, d)
        oh = jnp.einsum('wnm,wmd->wnd', p.astype(jnp.bfloat16), vh,
                        preferred_element_type=jnp.float32)
        head_outs.append(oh)

    out = jnp.concatenate(head_outs, axis=-1).reshape(M, C)   # merge heads (lane concat)

    # output projection (bf16 in / f32 acc)
    out = jnp.dot(out.astype(jnp.bfloat16), wproj_ref[...],
                  preferred_element_type=jnp.float32)
    out = out + bproj_ref[...]
    o_ref[0] = out.astype(o_ref.dtype)


def swin_window_attention_pallas(x_windows, mask, wqkv, bqkv, wproj, bproj,
                                 num_heads, wins_per_image):
    """x_windows: (B, nW*N, C); mask: (nW, N, N) or None."""
    B, M, C = x_windows.shape
    nW = wins_per_image
    N = M // nW
    head_dim = C // num_heads
    scale = float(head_dim) ** -0.5
    has_mask = mask is not None

    kernel = functools.partial(_window_attn_kernel, num_heads=num_heads, nW=nW, N=N,
                               scale=scale, has_mask=has_mask)

    in_specs = [pl.BlockSpec((1, M, C), lambda b: (b, 0, 0))]   # one image's windows
    args = [x_windows]
    if has_mask:
        # single (nW, N, N) mask, constant block index -> loaded once, kept resident
        in_specs.append(pl.BlockSpec((nW, N, N), lambda b: (0, 0, 0)))
        args.append(mask)
    in_specs += [
        pl.BlockSpec((C, 3 * C), lambda b: (0, 0)),             # qkv weight (bf16)
        pl.BlockSpec((1, 3 * C), lambda b: (0, 0)),             # qkv bias
        pl.BlockSpec((C, C), lambda b: (0, 0)),                 # proj weight (bf16)
        pl.BlockSpec((1, C), lambda b: (0, 0)),                 # proj bias
    ]
    args += [wqkv, bqkv, wproj, bproj]

    return pl.pallas_call(
        kernel,
        out_shape=jax.ShapeDtypeStruct((B, M, C), x_windows.dtype),
        grid_spec=pltpu.PrefetchScalarGridSpec(
            num_scalar_prefetch=0,
            grid=(B,),
            in_specs=in_specs,
            out_specs=pl.BlockSpec((1, M, C), lambda b: (b, 0, 0)),
        ),
        compiler_params=pltpu.CompilerParams(dimension_semantics=("parallel",)),
    )(*args)


# ----------------------------- module wrapper --------------------------------
class SwinBiFormerAttentionPallas:
    def __init__(self, dim, input_resolution, num_heads=8, win_size=8,
                 qk_scale=None, topk=4, shift_size=0, side_dwconv=5, seed=42):
        self.dim = dim
        self.input_resolution = tuple(input_resolution)
        self.num_heads = num_heads
        self.win_size = win_size
        self.shift_size = shift_size
        if min(self.input_resolution) <= self.win_size:
            self.shift_size = 0
            self.win_size = min(self.input_resolution)
        assert 0 <= self.shift_size < self.win_size
        assert topk > 0 or topk == -1
        # deterministic parameter init (no checkpoint); weights stored bf16 for MXU
        k0, k1 = jax.random.split(jax.random.PRNGKey(seed))
        self.wqkv = (jax.random.normal(k0, (dim, 3 * dim), jnp.float32) * 0.02).astype(jnp.bfloat16)
        self.bqkv = jnp.zeros((1, 3 * dim), jnp.float32)
        self.wproj = (jax.random.normal(k1, (dim, dim), jnp.float32) * 0.02).astype(jnp.bfloat16)
        self.bproj = jnp.zeros((1, dim), jnp.float32)

        if self.shift_size > 0:
            self.attn_mask = jnp.asarray(
                calculate_mask_np(self.input_resolution, self.win_size, self.shift_size))
        else:
            self.attn_mask = None

    def __call__(self, x, x_size):
        """x: (B, L, C) NLC -> returns (B, L, C) NLC."""
        B, L, C = x.shape
        H, W = x_size
        x = x.reshape(B, H, W, C)

        if self.shift_size > 0:
            shifted_x = jnp.roll(x, shift=(-self.shift_size, -self.shift_size), axis=(1, 2))
        else:
            shifted_x = x

        ws = self.win_size
        N = ws * ws
        nW = (H // ws) * (W // ws)

        # window partition; keep all windows of one image contiguous -> (B, nW*N, C)
        x_windows = window_partition(shifted_x, ws).reshape(B, nW * N, C)

        # mask: original (nW, N, N), no per-window replication / no zero-mask DMA
        if self.shift_size > 0:
            mask = (self.attn_mask if self.input_resolution == tuple(x_size)
                    else jnp.asarray(calculate_mask_np(x_size, ws, self.shift_size)))
        else:
            mask = None

        # hot path: per-window MHSA in Pallas (nW windows per grid step)
        attn = swin_window_attention_pallas(
            x_windows, mask, self.wqkv, self.bqkv, self.wproj, self.bproj,
            self.num_heads, nW)                                # (B, nW*N, C)

        # merge windows back to NHWC and undo the cyclic shift
        out = window_reverse(attn.reshape(B * nW, ws, ws, C), ws, H, W)
        if self.shift_size > 0:
            out = jnp.roll(out, shift=(self.shift_size, self.shift_size), axis=(1, 2))
        return out.reshape(B, H * W, C)


# ----------------------------- main ------------------------------------------
if __name__ == "__main__":
    B, H, W, C = 2, 16, 16, 32
    num_heads, win_size, shift_size = 4, 8, 4

    key = jax.random.PRNGKey(0)
    x = jax.random.normal(key, (B, H * W, C), jnp.float32)

    module = SwinBiFormerAttentionPallas(
        dim=C, input_resolution=(H, W), num_heads=num_heads,
        win_size=win_size, topk=4, shift_size=shift_size)

    out = module(x, (H, W))
    out = jax.block_until_ready(out)
    assert out.shape == (B, H * W, C)
    assert bool(jnp.all(jnp.isfinite(out)))
    print("KERNEL_OK")
</pallas_src>

<mosaic_0001>
module attributes {stable_mosaic.version = 11 : i64} {
  func.func @_window_attn_kernel(%arg0: i32, %arg1: memref<1x256x32xf32, #tpu.memory_space<vmem>>, %arg2: memref<4x64x64xf32, #tpu.memory_space<vmem>>, %arg3: memref<32x96xbf16, #tpu.memory_space<vmem>>, %arg4: memref<1x96xf32, #tpu.memory_space<vmem>>, %arg5: memref<32x32xbf16, #tpu.memory_space<vmem>>, %arg6: memref<1x32xf32, #tpu.memory_space<vmem>>, %arg7: memref<1x256x32xf32, #tpu.memory_space<vmem>>) attributes {dimension_semantics = [#tpu.dimension_semantics<parallel>], iteration_bounds = array<i64: 2>, scalar_prefetch = 0 : i64, scratch_operands = 0 : i64, tpu.core_type = #tpu.core_type<tc>, window_params = [{transform_indices = @transform_0, window_bounds = array<i64: 1, 256, 32>}, {pipeline_mode = #tpu.pipeline_mode<synchronous>, transform_indices = @transform_1, window_bounds = array<i64: 4, 64, 64>}, {pipeline_mode = #tpu.pipeline_mode<synchronous>, transform_indices = @transform_2, window_bounds = array<i64: 32, 96>}, {pipeline_mode = #tpu.pipeline_mode<synchronous>, transform_indices = @transform_3, window_bounds = array<i64: 1, 96>}, {pipeline_mode = #tpu.pipeline_mode<synchronous>, transform_indices = @transform_4, window_bounds = array<i64: 32, 32>}, {pipeline_mode = #tpu.pipeline_mode<synchronous>, transform_indices = @transform_5, window_bounds = array<i64: 1, 32>}, {transform_indices = @transform_6, window_bounds = array<i64: 1, 256, 32>}]} {
    %c0 = arith.constant 0 : index
    %c0_0 = arith.constant 0 : index
    %c0_1 = arith.constant 0 : index
    %0 = vector.load %arg1[%c0, %c0_0, %c0_1] : memref<1x256x32xf32, #tpu.memory_space<vmem>>, vector<1x256x32xf32>
    %1 = vector.shape_cast %0 : vector<1x256x32xf32> to vector<256x32xf32>
    %2 = arith.truncf %1 : vector<256x32xf32> to vector<256x32xbf16>
    %c0_2 = arith.constant 0 : index
    %c0_3 = arith.constant 0 : index
    %3 = vector.load %arg3[%c0_2, %c0_3] : memref<32x96xbf16, #tpu.memory_space<vmem>>, vector<32x96xbf16>
    %cst = arith.constant dense<0.000000e+00> : vector<256x96xf32>
    %4 = tpu.matmul %2, %3, %cst {dimension_numbers = #tpu.dot_dimension_numbers<[1], [0], [0], [1], [0, 0, 1, 1], [], []>} : vector<256x32xbf16>, vector<32x96xbf16>, vector<256x96xf32> -> vector<256x96xf32>
    %c0_4 = arith.constant 0 : index
    %c0_5 = arith.constant 0 : index
    %5 = vector.load %arg4[%c0_4, %c0_5] : memref<1x96xf32, #tpu.memory_space<vmem>>, vector<1x96xf32>
    %6 = vector.broadcast %5 : vector<1x96xf32> to vector<256x96xf32>
    %7 = arith.addf %4, %6 : vector<256x96xf32>
    %8 = vector.extract_strided_slice %7 {offsets = [0, 0], sizes = [256, 32], strides = [1, 1]} : vector<256x96xf32> to vector<256x32xf32>
    %cst_6 = arith.constant 0.353553385 : f32
    %9 = vector.broadcast %cst_6 : f32 to vector<256x32xf32>
    %10 = arith.mulf %8, %9 : vector<256x32xf32>
    %11 = vector.extract_strided_slice %7 {offsets = [0, 32], sizes = [256, 32], strides = [1, 1]} : vector<256x96xf32> to vector<256x32xf32>
    %12 = vector.extract_strided_slice %7 {offsets = [0, 64], sizes = [256, 32], strides = [1, 1]} : vector<256x96xf32> to vector<256x32xf32>
    %c0_7 = arith.constant 0 : index
    %c0_8 = arith.constant 0 : index
    %c0_9 = arith.constant 0 : index
    %13 = vector.load %arg2[%c0_7, %c0_8, %c0_9] : memref<4x64x64xf32, #tpu.memory_space<vmem>>, vector<4x64x64xf32>
    %14 = vector.extract_strided_slice %10 {offsets = [0, 0], sizes = [256, 8], strides = [1, 1]} : vector<256x32xf32> to vector<256x8xf32>
    %15 = vector.shape_cast %14 : vector<256x8xf32> to vector<4x64x8xf32>
    %16 = arith.truncf %15 : vector<4x64x8xf32> to vector<4x64x8xbf16>
    %17 = vector.extract_strided_slice %11 {offsets = [0, 0], sizes = [256, 8], strides = [1, 1]} : vector<256x32xf32> to vector<256x8xf32>
    %18 = vector.shape_cast %17 : vector<256x8xf32> to vector<4x64x8xf32>
    %19 = arith.truncf %18 : vector<4x64x8xf32> to vector<4x64x8xbf16>
    %20 = vector.extract_strided_slice %12 {offsets = [0, 0], sizes = [256, 8], strides = [1, 1]} : vector<256x32xf32> to vector<256x8xf32>
    %21 = vector.shape_cast %20 : vector<256x8xf32> to vector<4x64x8xf32>
    %22 = arith.truncf %21 : vector<4x64x8xf32> to vector<4x64x8xbf16>
    "tpu.trace_start"() <{level = 10 : i32, message = "wnd,wmd->wnm"}> : () -> ()
    %cst_10 = arith.constant dense<0.000000e+00> : vector<4x64x64xf32>
    %23 = tpu.matmul %16, %19, %cst_10 {dimension_numbers = #tpu.dot_dimension_numbers<[2], [2], [1], [1], [0, 0, 0, 1, 1, 1], [0], [0]>} : vector<4x64x8xbf16>, vector<4x64x8xbf16>, vector<4x64x64xf32> -> vector<4x64x64xf32>
    "tpu.trace_stop"() : () -> ()
    %24 = arith.addf %23, %13 : vector<4x64x64xf32>
    %cst_11 = arith.constant dense<0xFF800000> : vector<4x64xf32>
    %25 = vector.multi_reduction <maximumf>, %24, %cst_11 [2] : vector<4x64x64xf32> to vector<4x64xf32>
    %26 = vector.shape_cast %25 : vector<4x64xf32> to vector<4x64x1xf32>
    %27 = vector.broadcast %26 : vector<4x64x1xf32> to vector<4x64x64xf32>
    %28 = arith.subf %24, %27 : vector<4x64x64xf32>
    %29 = math.exp %28 : vector<4x64x64xf32>
    %cst_12 = arith.constant dense<0.000000e+00> : vector<4x64xf32>
    %30 = vector.multi_reduction <add>, %29, %cst_12 [2] : vector<4x64x64xf32> to vector<4x64xf32>
    %31 = vector.shape_cast %30 : vector<4x64xf32> to vector<4x64x1xf32>
    %32 = tpu.reciprocal %31 {approx = true} : vector<4x64x1xf32> -> vector<4x64x1xf32>
    %33 = vector.broadcast %32 : vector<4x64x1xf32> to vector<4x64x64xf32>
    %34 = arith.mulf %29, %33 : vector<4x64x64xf32>
    %35 = arith.truncf %34 : vector<4x64x64xf32> to vector<4x64x64xbf16>
    "tpu.trace_start"() <{level = 10 : i32, message = "wnm,wmd->wnd"}> : () -> ()
    %cst_13 = arith.constant dense<0.000000e+00> : vector<4x64x8xf32>
    %36 = tpu.matmul %35, %22, %cst_13 {dimension_numbers = #tpu.dot_dimension_numbers<[2], [1], [1], [2], [0, 0, 0, 1, 1, 2], [0], [0]>} : vector<4x64x64xbf16>, vector<4x64x8xbf16>, vector<4x64x8xf32> -> vector<4x64x8xf32>
    "tpu.trace_stop"() : () -> ()
    %37 = vector.extract_strided_slice %10 {offsets = [0, 8], sizes = [256, 8], strides = [1, 1]} : vector<256x32xf32> to vector<256x8xf32>
    %38 = vector.shape_cast %37 : vector<256x8xf32> to vector<4x64x8xf32>
    %39 = arith.truncf %38 : vector<4x64x8xf32> to vector<4x64x8xbf16>
    %40 = vector.extract_strided_slice %11 {offsets = [0, 8], sizes = [256, 8], strides = [1, 1]} : vector<256x32xf32> to vector<256x8xf32>
    %41 = vector.shape_cast %40 : vector<256x8xf32> to vector<4x64x8xf32>
    %42 = arith.truncf %41 : vector<4x64x8xf32> to vector<4x64x8xbf16>
    %43 = vector.extract_strided_slice %12 {offsets = [0, 8], sizes = [256, 8], strides = [1, 1]} : vector<256x32xf32> to vector<256x8xf32>
    %44 = vector.shape_cast %43 : vector<256x8xf32> to vector<4x64x8xf32>
    %45 = arith.truncf %44 : vector<4x64x8xf32> to vector<4x64x8xbf16>
    "tpu.trace_start"() <{level = 10 : i32, message = "wnd,wmd->wnm"}> : () -> ()
    %cst_14 = arith.constant dense<0.000000e+00> : vector<4x64x64xf32>
    %46 = tpu.matmul %39, %42, %cst_14 {dimension_numbers = #tpu.dot_dimension_numbers<[2], [2], [1], [1], [0, 0, 0, 1, 1, 1], [0], [0]>} : vector<4x64x8xbf16>, vector<4x64x8xbf16>, vector<4x64x64xf32> -> vector<4x64x64xf32>
    "tpu.trace_stop"() : () -> ()
    %47 = arith.addf %46, %13 : vector<4x64x64xf32>
    %cst_15 = arith.constant dense<0xFF800000> : vector<4x64xf32>
    %48 = vector.multi_reduction <maximumf>, %47, %cst_15 [2] : vector<4x64x64xf32> to vector<4x64xf32>
    %49 = vector.shape_cast %48 : vector<4x64xf32> to vector<4x64x1xf32>
    %50 = vector.broadcast %49 : vector<4x64x1xf32> to vector<4x64x64xf32>
    %51 = arith.subf %47, %50 : vector<4x64x64xf32>
    %52 = math.exp %51 : vector<4x64x64xf32>
    %cst_16 = arith.constant dense<0.000000e+00> : vector<4x64xf32>
    %53 = vector.multi_reduction <add>, %52, %cst_16 [2] : vector<4x64x64xf32> to vector<4x64xf32>
    %54 = vector.shape_cast %53 : vector<4x64xf32> to vector<4x64x1xf32>
    %55 = tpu.reciprocal %54 {approx = true} : vector<4x64x1xf32> -> vector<4x64x1xf32>
    %56 = vector.broadcast %55 : vector<4x64x1xf32> to vector<4x64x64xf32>
    %57 = arith.mulf %52, %56 : vector<4x64x64xf32>
    %58 = arith.truncf %57 : vector<4x64x64xf32> to vector<4x64x64xbf16>
    "tpu.trace_start"() <{level = 10 : i32, message = "wnm,wmd->wnd"}> : () -> ()
    %cst_17 = arith.constant dense<0.000000e+00> : vector<4x64x8xf32>
    %59 = tpu.matmul %58, %45, %cst_17 {dimension_numbers = #tpu.dot_dimension_numbers<[2], [1], [1], [2], [0, 0, 0, 1, 1, 2], [0], [0]>} : vector<4x64x64xbf16>, vector<4x64x8xbf16>, vector<4x64x8xf32> -> vector<4x64x8xf32>
    "tpu.trace_stop"() : () -> ()
    %60 = vector.extract_strided_slice %10 {offsets = [0, 16], sizes = [256, 8], strides = [1, 1]} : vector<256x32xf32> to vector<256x8xf32>
    %61 = vector.shape_cast %60 : vector<256x8xf32> to vector<4x64x8xf32>
    %62 = arith.truncf %61 : vector<4x64x8xf32> to vector<4x64x8xbf16>
    %63 = vector.extract_strided_slice %11 {offsets = [0, 16], sizes = [256, 8], strides = [1, 1]} : vector<256x32xf32> to vector<256x8xf32>
    %64 = vector.shape_cast %63 : vector<256x8xf32> to vector<4x64x8xf32>
    %65 = arith.truncf %64 : vector<4x64x8xf32> to vector<4x64x8xbf16>
    %66 = vector.extract_strided_slice %12 {offsets = [0, 16], sizes = [256, 8], strides = [1, 1]} : vector<256x32xf32> to vector<256x8xf32>
    %67 = vector.shape_cast %66 : vector<256x8xf32> to vector<4x64x8xf32>
    %68 = arith.truncf %67 : vector<4x64x8xf32> to vector<4x64x8xbf16>
    "tpu.trace_start"() <{level = 10 : i32, message = "wnd,wmd->wnm"}> : () -> ()
    %cst_18 = arith.constant dense<0.000000e+00> : vector<4x64x64xf32>
    %69 = tpu.matmul %62, %65, %cst_18 {dimension_numbers = #tpu.dot_dimension_numbers<[2], [2], [1], [1], [0, 0, 0, 1, 1, 1], [0], [0]>} : vector<4x64x8xbf16>, vector<4x64x8xbf16>, vector<4x64x64xf32> -> vector<4x64x64xf32>
    "tpu.trace_stop"() : () -> ()
    %70 = arith.addf %69, %13 : vector<4x64x64xf32>
    %cst_19 = arith.constant dense<0xFF800000> : vector<4x64xf32>
    %71 = vector.multi_reduction <maximumf>, %70, %cst_19 [2] : vector<4x64x64xf32> to vector<4x64xf32>
    %72 = vector.shape_cast %71 : vector<4x64xf32> to vector<4x64x1xf32>
    %73 = vector.broadcast %72 : vector<4x64x1xf32> to vector<4x64x64xf32>
    %74 = arith.subf %70, %73 : vector<4x64x64xf32>
    %75 = math.exp %74 : vector<4x64x64xf32>
    %cst_20 = arith.constant dense<0.000000e+00> : vector<4x64xf32>
    %76 = vector.multi_reduction <add>, %75, %cst_20 [2] : vector<4x64x64xf32> to vector<4x64xf32>
    %77 = vector.shape_cast %76 : vector<4x64xf32> to vector<4x64x1xf32>
    %78 = tpu.reciprocal %77 {approx = true} : vector<4x64x1xf32> -> vector<4x64x1xf32>
    %79 = vector.broadcast %78 : vector<4x64x1xf32> to vector<4x64x64xf32>
    %80 = arith.mulf %75, %79 : vector<4x64x64xf32>
    %81 = arith.truncf %80 : vector<4x64x64xf32> to vector<4x64x64xbf16>
    "tpu.trace_start"() <{level = 10 : i32, message = "wnm,wmd->wnd"}> : () -> ()
    %cst_21 = arith.constant dense<0.000000e+00> : vector<4x64x8xf32>
    %82 = tpu.matmul %81, %68, %cst_21 {dimension_numbers = #tpu.dot_dimension_numbers<[2], [1], [1], [2], [0, 0, 0, 1, 1, 2], [0], [0]>} : vector<4x64x64xbf16>, vector<4x64x8xbf16>, vector<4x64x8xf32> -> vector<4x64x8xf32>
    "tpu.trace_stop"() : () -> ()
    %83 = vector.extract_strided_slice %10 {offsets = [0, 24], sizes = [256, 8], strides = [1, 1]} : vector<256x32xf32> to vector<256x8xf32>
    %84 = vector.shape_cast %83 : vector<256x8xf32> to vector<4x64x8xf32>
    %85 = arith.truncf %84 : vector<4x64x8xf32> to vector<4x64x8xbf16>
    %86 = vector.extract_strided_slice %11 {offsets = [0, 24], sizes = [256, 8], strides = [1, 1]} : vector<256x32xf32> to vector<256x8xf32>
    %87 = vector.shape_cast %86 : vector<256x8xf32> to vector<4x64x8xf32>
    %88 = arith.truncf %87 : vector<4x64x8xf32> to vector<4x64x8xbf16>
    %89 = vector.extract_strided_slice %12 {offsets = [0, 24], sizes = [256, 8], strides = [1, 1]} : vector<256x32xf32> to vector<256x8xf32>
    %90 = vector.shape_cast %89 : vector<256x8xf32> to vector<4x64x8xf32>
    %91 = arith.truncf %90 : vector<4x64x8xf32> to vector<4x64x8xbf16>
    "tpu.trace_start"() <{level = 10 : i32, message = "wnd,wmd->wnm"}> : () -> ()
    %cst_22 = arith.constant dense<0.000000e+00> : vector<4x64x64xf32>
    %92 = tpu.matmul %85, %88, %cst_22 {dimension_numbers = #tpu.dot_dimension_numbers<[2], [2], [1], [1], [0, 0, 0, 1, 1, 1], [0], [0]>} : vector<4x64x8xbf16>, vector<4x64x8xbf16>, vector<4x64x64xf32> -> vector<4x64x64xf32>
    "tpu.trace_stop"() : () -> ()
    %93 = arith.addf %92, %13 : vector<4x64x64xf32>
    %cst_23 = arith.constant dense<0xFF800000> : vector<4x64xf32>
    %94 = vector.multi_reduction <maximumf>, %93, %cst_23 [2] : vector<4x64x64xf32> to vector<4x64xf32>
    %95 = vector.shape_cast %94 : vector<4x64xf32> to vector<4x64x1xf32>
    %96 = vector.broadcast %95 : vector<4x64x1xf32> to vector<4x64x64xf32>
    %97 = arith.subf %93, %96 : vector<4x64x64xf32>
    %98 = math.exp %97 : vector<4x64x64xf32>
    %cst_24 = arith.constant dense<0.000000e+00> : vector<4x64xf32>
    %99 = vector.multi_reduction <add>, %98, %cst_24 [2] : vector<4x64x64xf32> to vector<4x64xf32>
    %100 = vector.shape_cast %99 : vector<4x64xf32> to vector<4x64x1xf32>
    %101 = tpu.reciprocal %100 {approx = true} : vector<4x64x1xf32> -> vector<4x64x1xf32>
    %102 = vector.broadcast %101 : vector<4x64x1xf32> to vector<4x64x64xf32>
    %103 = arith.mulf %98, %102 : vector<4x64x64xf32>
    %104 = arith.truncf %103 : vector<4x64x64xf32> to vector<4x64x64xbf16>
    "tpu.trace_start"() <{level = 10 : i32, message = "wnm,wmd->wnd"}> : () -> ()
    %cst_25 = arith.constant dense<0.000000e+00> : vector<4x64x8xf32>
    %105 = tpu.matmul %104, %91, %cst_25 {dimension_numbers = #tpu.dot_dimension_numbers<[2], [1], [1], [2], [0, 0, 0, 1, 1, 2], [0], [0]>} : vector<4x64x64xbf16>, vector<4x64x8xbf16>, vector<4x64x8xf32> -> vector<4x64x8xf32>
    "tpu.trace_stop"() : () -> ()
    %106 = tpu.concatenate %36, %59, %82, %105 in 2 : vector<4x64x8xf32>, vector<4x64x8xf32>, vector<4x64x8xf32>, vector<4x64x8xf32> -> vector<4x64x32xf32>
    %107 = vector.shape_cast %106 : vector<4x64x32xf32> to vector<256x32xf32>
    %108 = arith.truncf %107 : vector<256x32xf32> to vector<256x32xbf16>
    %c0_26 = arith.constant 0 : index
    %c0_27 = arith.constant 0 : index
    %109 = vector.load %arg5[%c0_26, %c0_27] : memref<32x32xbf16, #tpu.memory_space<vmem>>, vector<32x32xbf16>
    %cst_28 = arith.constant dense<0.000000e+00> : vector<256x32xf32>
    %110 = tpu.matmul %108, %109, %cst_28 {dimension_numbers = #tpu.dot_dimension_numbers<[1], [0], [0], [1], [0, 0, 1, 1], [], []>} : vector<256x32xbf16>, vector<32x32xbf16>, vector<256x32xf32> -> vector<256x32xf32>
    %c0_29 = arith.constant 0 : index
    %c0_30 = arith.constant 0 : index
    %111 = vector.load %arg6[%c0_29, %c0_30] : memref<1x32xf32, #tpu.memory_space<vmem>>, vector<1x32xf32>
    %112 = vector.broadcast %111 : vector<1x32xf32> to vector<256x32xf32>
    %113 = arith.addf %110, %112 : vector<256x32xf32>
    %c0_31 = arith.constant 0 : index
    %c0_32 = arith.constant 0 : index
    %c0_33 = arith.constant 0 : index
    %114 = vector.load %arg7[%c0_31, %c0_32, %c0_33] : memref<1x256x32xf32, #tpu.memory_space<vmem>>, vector<1x256x32xf32>
    %115 = vector.shape_cast %114 : vector<1x256x32xf32> to vector<256x32xf32>
    %116 = vector.shape_cast %113 : vector<256x32xf32> to vector<1x256x32xf32>
    tpu.vector_store %arg7[%c0_31, %c0_32, %c0_33], %116 {strides = array<i32>} : memref<1x256x32xf32, #tpu.memory_space<vmem>>, vector<1x256x32xf32>,
    return
  }
  func.func @transform_0(%arg0: i32) -> (i32, i32, i32) {
    %c0_i32 = arith.constant 0 : i32
    %c0_i32_0 = arith.constant 0 : i32
    %c0_i32_1 = arith.constant 0 : i32
    return %arg0, %c0_i32, %c0_i32_0 : i32, i32, i32
  }
  func.func @transform_1(%arg0: i32) -> (i32, i32, i32) {
    %c0_i32 = arith.constant 0 : i32
    %c0_i32_0 = arith.constant 0 : i32
    %c0_i32_1 = arith.constant 0 : i32
    %c0_i32_2 = arith.constant 0 : i32
    return %c0_i32, %c0_i32_0, %c0_i32_1 : i32, i32, i32
  }
  func.func @transform_2(%arg0: i32) -> (i32, i32) {
    %c0_i32 = arith.constant 0 : i32
    %c0_i32_0 = arith.constant 0 : i32
    %c0_i32_1 = arith.constant 0 : i32
    return %c0_i32, %c0_i32_0 : i32, i32
  }
  func.func @transform_3(%arg0: i32) -> (i32, i32) {
    %c0_i32 = arith.constant 0 : i32
    %c0_i32_0 = arith.constant 0 : i32
    %c0_i32_1 = arith.constant 0 : i32
    return %c0_i32, %c0_i32_0 : i32, i32
  }
  func.func @transform_4(%arg0: i32) -> (i32, i32) {
    %c0_i32 = arith.constant 0 : i32
    %c0_i32_0 = arith.constant 0 : i32
    %c0_i32_1 = arith.constant 0 : i32
    return %c0_i32, %c0_i32_0 : i32, i32
  }
  func.func @transform_5(%arg0: i32) -> (i32, i32) {
    %c0_i32 = arith.constant 0 : i32
    %c0_i32_0 = arith.constant 0 : i32
    %c0_i32_1 = arith.constant 0 : i32
    return %c0_i32, %c0_i32_0 : i32, i32
  }
  func.func @transform_6(%arg0: i32) -> (i32, i32, i32) {
    %c0_i32 = arith.constant 0 : i32
    %c0_i32_0 = arith.constant 0 : i32
    %c0_i32_1 = arith.constant 0 : i32
    return %arg0, %c0_i32, %c0_i32_0 : i32, i32, i32
  }
}

</mosaic_0001>

<llo_original>
// kernel: tpu_custom_call.1
$region0: #{tpu_custom_call.1}
  #allocation0 [shape = 'u32[]', space=smem, size = 0x4, offset = 0x4, fixed_abs, tag = 'smem constant byte address 0x4 - core index']
  #allocation1 [shape = 'u32[144,128]{1,0:T(1,128)}', space=vmem, size = 0x12000, scoped, tag = 'internal scratch']
  %s0 = inlined_call_operand.vmem [shape: f32[2,256,32], index: 0, kind: input, shape index: {}]
  %s1 = inlined_call_operand.vmem [shape: f32[4,64,64], index: 1, kind: input, shape index: {}]
  %s2 = inlined_call_operand.vmem [shape: bf16[32,96], index: 2, kind: input, shape index: {}]
  %s3 = inlined_call_operand.vmem [shape: f32[1,96], index: 3, kind: input, shape index: {}]
  %s4 = inlined_call_operand.vmem [shape: bf16[32,32], index: 4, kind: input, shape index: {}]
  %s5 = inlined_call_operand.vmem [shape: f32[1,32], index: 5, kind: input, shape index: {}]
  %s6 = inlined_call_operand.vmem [shape: f32[2,256,32], index: 6, kind: output, shape index: {}]
  %s7 = sld [smem:[#allocation0]]
  $region57: #{tpu_custom_call.1} parent=0
    _
  %s9 = ssub.s32 1, %s7
  %s10 = scalar_select 0, %s9, %s7
  loop: start=0, step=1, limit=4
  $region2: #{tpu_custom_call.1} parent=0 // loop_pre_header
    _
  $region3: #{tpu_custom_call.1} parent=0 // loop_header
    %s12 = sphi 0, %s16
    %p13 = scmp.ge.s32.totalorder %s12, 4
    %s22 = sphi 0, %s24
    %s25 = sphi 0, %s22
    %s26 = sphi 0, %s25
    %s42 = sphi 0, %s26
    %s46 = sphi 0, %s46
    %s48 = sphi 0, %s46
    %s49 = sphi 0, %s48
    %s63 = sphi 0, %s49
    %s67 = sphi 0, %s67
    %s69 = sphi 0, %s67
    %s70 = sphi 0, %s69
    %s84 = sphi 0, %s70
    %s88 = sphi 0, %s88
    %s90 = sphi 0, %s88
    %s91 = sphi 0, %s90
    %s105 = sphi 0, %s91
    %s109 = sphi 0, %s109
    %s111 = sphi 0, %s109
    %s112 = sphi 0, %s111
    %s126 = sphi 0, %s112
    %s130 = sphi 0, %s130
    %s132 = sphi 0, %s130
    %s133 = sphi 0, %s132
    %s147 = sphi 0, %s133
    %s153 = sphi 0, %s155
    %s156 = sphi 0, %s153
    %s157 = sphi 0, %s156
    %s173 = sphi 0, %s157
  $region4: #{tpu_custom_call.1} parent=0 // loop_header_branch
    %15 = sbr.rel (%p13) target = $region8
  $region5: #{tpu_custom_call.1} parent=0 // loop_body
    %s17 = ssub.s32 %s12, 1
    %s18 = ssub.s32 %s12, 2
    %s19 = sadd.s32 %s12, 1
    %s20 = ssub.s32 %s12, %s19
    %p21 = scmp.eq.s32.totalorder %s20, 0
    %s23 = sadd.s32 %s22, 1
    %s24 = scalar_select %p21, %s22, %s23
    %p27 = pneg %p21
    %p28 = scmp.eq.s32.totalorder %s12, 1
    %p29 = por %p27, %p28
    %p30 = scmp.ne.s32.totalorder %s22, %s25
    %p31 = scmp.eq.s32.totalorder %s12, 0
    %p32 = por %p30, %p31
    %p33 = scmp.ne.s32.totalorder %s22, %s25
    %p34 = scmp.eq.s32.totalorder %s17, 1
    %p35 = por %p33, %p34
    %p36 = scmp.ne.s32.totalorder %s25, %s26
    %p37 = scmp.eq.s32.totalorder %s17, 0
    %p38 = por %p36, %p37
    %p39 = scmp.ne.s32.totalorder %s25, %s26
    %p40 = scmp.eq.s32.totalorder %s18, 1
    %p41 = por %p39, %p40
    %p43 = scmp.ne.s32.totalorder %s26, %s42
    %p44 = scmp.eq.s32.totalorder %s18, 0
    %p45 = por %p43, %p44
    %s47 = sadd.s32 %s46, 1
    %p50 = scmp.eq.s32.totalorder %s12, 1
    %p51 = scmp.ne.s32.totalorder %s46, %s48
    %p52 = scmp.eq.s32.totalorder %s12, 0
    %p53 = por %p51, %p52
    %p54 = scmp.ne.s32.totalorder %s46, %s48
    %p55 = scmp.eq.s32.totalorder %s17, 1
    %p56 = por %p54, %p55
    %p57 = scmp.ne.s32.totalorder %s48, %s49
    %p58 = scmp.eq.s32.totalorder %s17, 0
    %p59 = por %p57, %p58
    %p60 = scmp.ne.s32.totalorder %s48, %s49
    %p61 = scmp.eq.s32.totalorder %s18, 1
    %p62 = por %p60, %p61
    %p64 = scmp.ne.s32.totalorder %s49, %s63
    %p65 = scmp.eq.s32.totalorder %s18, 0
    %p66 = por %p64, %p65
    %s68 = sadd.s32 %s67, 1
    %p71 = scmp.eq.s32.totalorder %s12, 1
    %p72 = scmp.ne.s32.totalorder %s67, %s69
    %p73 = scmp.eq.s32.totalorder %s12, 0
    %p74 = por %p72, %p73
    %p75 = scmp.ne.s32.totalorder %s67, %s69
    %p76 = scmp.eq.s32.totalorder %s17, 1
    %p77 = por %p75, %p76
    %p78 = scmp.ne.s32.totalorder %s69, %s70
    %p79 = scmp.eq.s32.totalorder %s17, 0
    %p80 = por %p78, %p79
    %p81 = scmp.ne.s32.totalorder %s69, %s70
    %p82 = scmp.eq.s32.totalorder %s18, 1
    %p83 = por %p81, %p82
    %p85 = scmp.ne.s32.totalorder %s70, %s84
    %p86 = scmp.eq.s32.totalorder %s18, 0
    %p87 = por %p85, %p86
    %s89 = sadd.s32 %s88, 1
    %p92 = scmp.eq.s32.totalorder %s12, 1
    %p93 = scmp.ne.s32.totalorder %s88, %s90
    %p94 = scmp.eq.s32.totalorder %s12, 0
    %p95 = por %p93, %p94
    %p96 = scmp.ne.s32.totalorder %s88, %s90
    %p97 = scmp.eq.s32.totalorder %s17, 1
    %p98 = por %p96, %p97
    %p99 = scmp.ne.s32.totalorder %s90, %s91
    %p100 = scmp.eq.s32.totalorder %s17, 0
    %p101 = por %p99, %p100
    %p102 = scmp.ne.s32.totalorder %s90, %s91
    %p103 = scmp.eq.s32.totalorder %s18, 1
    %p104 = por %p102, %p103
    %p106 = scmp.ne.s32.totalorder %s91, %s105
    %p107 = scmp.eq.s32.totalorder %s18, 0
    %p108 = por %p106, %p107
    %s110 = sadd.s32 %s109, 1
    %p113 = scmp.eq.s32.totalorder %s12, 1
    %p114 = scmp.ne.s32.totalorder %s109, %s111
    %p115 = scmp.eq.s32.totalorder %s12, 0
    %p116 = por %p114, %p115
    %p117 = scmp.ne.s32.totalorder %s109, %s111
    %p118 = scmp.eq.s32.totalorder %s17, 1
    %p119 = por %p117, %p118
    %p120 = scmp.ne.s32.totalorder %s111, %s112
    %p121 = scmp.eq.s32.totalorder %s17, 0
    %p122 = por %p120, %p121
    %p123 = scmp.ne.s32.totalorder %s111, %s112
    %p124 = scmp.eq.s32.totalorder %s18, 1
    %p125 = por %p123, %p124
    %p127 = scmp.ne.s32.totalorder %s112, %s126
    %p128 = scmp.eq.s32.totalorder %s18, 0
    %p129 = por %p127, %p128
    %s131 = sadd.s32 %s130, 1
    %p134 = scmp.eq.s32.totalorder %s12, 1
    %p135 = scmp.ne.s32.totalorder %s130, %s132
    %p136 = scmp.eq.s32.totalorder %s12, 0
    %p137 = por %p135, %p136
    %p138 = scmp.ne.s32.totalorder %s130, %s132
    %p139 = scmp.eq.s32.totalorder %s17, 1
    %p140 = por %p138, %p139
    %p141 = scmp.ne.s32.totalorder %s132, %s133
    %p142 = scmp.eq.s32.totalorder %s17, 0
    %p143 = por %p141, %p142
    %p144 = scmp.ne.s32.totalorder %s132, %s133
    %p145 = scmp.eq.s32.totalorder %s18, 1
    %p146 = por %p144, %p145
    %p148 = scmp.ne.s32.totalorder %s133, %s147
    %p149 = scmp.eq.s32.totalorder %s18, 0
    %p150 = por %p148, %p149
    %s151 = ssub.s32 %s12, %s19
    %p152 = scmp.eq.s32.totalorder %s151, 0
    %s154 = sadd.s32 %s153, 1
    %s155 = scalar_select %p152, %s153, %s154
    %p158 = pneg %p152
    %p159 = scmp.eq.s32.totalorder %s12, 1
    %p160 = por %p158, %p159
    %p161 = scmp.ne.s32.totalorder %s153, %s156
    %p162 = scmp.eq.s32.totalorder %s12, 0
    %p163 = por %p161, %p162
    %p164 = scmp.ne.s32.totalorder %s153, %s156
    %p165 = scmp.eq.s32.totalorder %s17, 1
    %p166 = por %p164, %p165
    %p167 = scmp.ne.s32.totalorder %s156, %s157
    %p168 = scmp.eq.s32.totalorder %s17, 0
    %p169 = por %p167, %p168
    %p170 = scmp.ne.s32.totalorder %s156, %s157
    %p171 = scmp.eq.s32.totalorder %s18, 1
    %p172 = por %p170, %p171
    %p174 = scmp.ne.s32.totalorder %s157, %s173
    %p175 = scmp.eq.s32.totalorder %s18, 0
    %p176 = por %p174, %p175
    %p177 = scmp.le.s32.totalorder 1, %s12
    %p178 = scmp.lt.s32.totalorder %s12, 3
    %p179 = pnand %p177, %p178
    %p180 = pneg %p179
    // Predicated region
    $region9: #{tpu_custom_call.1} parent=5 // pred_check
      _
    $region10: #{tpu_custom_call.1} parent=5 // pred_check_branch
      %182 = sbr.rel (%p179) target = $region12
    $region11: #{tpu_custom_call.1} parent=5 // pred_region
      %s183 = ssub.s32 %s12, 1
      // Predicated region
      $region13: #{tpu_custom_call.1} parent=11 // pred_check
        %p184 = pneg %p59
      $region14: #{tpu_custom_call.1} parent=11 // pred_check_branch
        %186 = sbr.rel (%p184) target = $region16
      $region15: #{tpu_custom_call.1} parent=11 // pred_region
        _
      $region16: #{tpu_custom_call.1} parent=11 // pred_fallthru
        _
      // Predicated region
      $region17: #{tpu_custom_call.1} parent=11 // pred_check
        %p187 = pneg %p80
      $region18: #{tpu_custom_call.1} parent=11 // pred_check_branch
        %189 = sbr.rel (%p187) target = $region20
      $region19: #{tpu_custom_call.1} parent=11 // pred_region
        _
      $region20: #{tpu_custom_call.1} parent=11 // pred_fallthru
        _
      // Predicated region
      $region21: #{tpu_custom_call.1} parent=11 // pred_check
        %p190 = pneg %p101
      $region22: #{tpu_custom_call.1} parent=11 // pred_check_branch
        %192 = sbr.rel (%p190) target = $region24
      $region23: #{tpu_custom_call.1} parent=11 // pred_region
        _
      $region24: #{tpu_custom_call.1} parent=11 // pred_fallthru
        _
      // Predicated region
      $region25: #{tpu_custom_call.1} parent=11 // pred_check
        %p193 = pneg %p122
      $region26: #{tpu_custom_call.1} parent=11 // pred_check_branch
        %195 = sbr.rel (%p193) target = $region28
      $region27: #{tpu_custom_call.1} parent=11 // pred_region
        _
      $region28: #{tpu_custom_call.1} parent=11 // pred_fallthru
        _
      // Predicated region
      $region29: #{tpu_custom_call.1} parent=11 // pred_check
        %p196 = pneg %p143
      $region30: #{tpu_custom_call.1} parent=11 // pred_check_branch
        %198 = sbr.rel (%p196) target = $region32
      $region31: #{tpu_custom_call.1} parent=11 // pred_region
        _
      $region32: #{tpu_custom_call.1} parent=11 // pred_fallthru
        _
    $region12: #{tpu_custom_call.1} parent=5 // pred_fallthru
      _
    %p199 = scmp.lt.s32.totalorder %s12, 2
    // Predicated region
    $region33: #{tpu_custom_call.1} parent=5 // pred_check
      %p200 = pneg %p199
    $region34: #{tpu_custom_call.1} parent=5 // pred_check_branch
      %202 = sbr.rel (%p200) target = $region36
    $region35: #{tpu_custom_call.1} parent=5 // pred_region
      // Predicated region
      $region37: #{tpu_custom_call.1} parent=35 // pred_check
        %p203 = pneg %p32
      $region38: #{tpu_custom_call.1} parent=35 // pred_check_branch
        %205 = sbr.rel (%p203) target = $region40
      $region39: #{tpu_custom_call.1} parent=35 // pred_region
        %p206 = scmp.lt.s32.totalorder %s12, 1
        %s207 = scalar_select %p206, %s12, 1
        %s208 = smul.addr %s207, 32
        %s209 = smul.addr %s208, 8
        %s210 = scalar_lea.vmem %s0, %s209
      $region40: #{tpu_custom_call.1} parent=35 // pred_fallthru
        _
    $region36: #{tpu_custom_call.1} parent=5 // pred_fallthru
      _
    %p211 = scmp.le.s32.totalorder 1, %s12
    %p212 = scmp.lt.s32.totalorder %s12, 3
    %p213 = pnand %p211, %p212
    %p214 = pneg %p213
    // Predicated region
    $region41: #{tpu_custom_call.1} parent=5 // pred_check
      _
    $region42: #{tpu_custom_call.1} parent=5 // pred_check_branch
      %216 = sbr.rel (%p213) target = $region44
    $region43: #{tpu_custom_call.1} parent=5 // pred_region
      %s217 = ssub.s32 %s12, 1
      %p218 = scmp.lt.s32.totalorder %s17, 1
      %s219 = scalar_select %p218, %s17, 1
      %s220 = smul.addr %s219, 32
      %s221 = smul.addr %s220, 8
      %s222 = scalar_lea.vmem %s0, %s221
      %p223 = pneg %p38
      %p224 = pneg %p35
      %p225 = pneg %p59
      %p226 = pneg %p56
      %p227 = pneg %p80
      %p228 = pneg %p77
      %p229 = pneg %p101
      %p230 = pneg %p98
      %p231 = pneg %p122
      %p232 = pneg %p119
      %p233 = pneg %p143
      %p234 = pneg %p140
      %p235 = pneg %p169
      %p236 = pneg %p166
      %p237 = scmp.lt.s32.totalorder %s17, 1
      %s238 = scalar_select %p237, %s17, 1
      %s239 = smul.addr %s238, 32
      %s240 = smul.addr %s239, 8
      %s241 = scalar_lea.vmem %s6, %s240
      %p242 = scmp.lt.s32.totalorder %s17, 1
      %s243 = scalar_select %p242, %s17, 1
      %s244 = smul.addr %s243, 32
      %s245 = smul.addr %s244, 8
      %s246 = scalar_lea.vmem %s0, %s245
      %p247 = scmp.lt.s32.totalorder %s17, 1
      %s248 = scalar_select %p247, %s17, 1
      %s249 = smul.addr %s248, 32
      %s250 = smul.addr %s249, 8
      %s251 = scalar_lea.vmem %s6, %s250
      %v253 = vld [vmem:[%s246] sm:$0xff]
      %v254 = vld [vmem:[%s246 + $0x8] sm:$0xff]
      %v255 = vld [vmem:[%s246 + $0x10] sm:$0xff]
      %v256 = vld [vmem:[%s246 + $0x18] sm:$0xff]
      %v257 = vld [vmem:[%s246 + $0x20] sm:$0xff]
      %v258 = vld [vmem:[%s246 + $0x28] sm:$0xff]
      %v259 = vld [vmem:[%s246 + $0x30] sm:$0xff]
      %v260 = vld [vmem:[%s246 + $0x38] sm:$0xff]
      %v261 = vld [vmem:[%s246 + $0x40] sm:$0xff]
      %v262 = vld [vmem:[%s246 + $0x48] sm:$0xff]
      %v263 = vld [vmem:[%s246 + $0x50] sm:$0xff]
      %v264 = vld [vmem:[%s246 + $0x58] sm:$0xff]
      %v265 = vld [vmem:[%s246 + $0x60] sm:$0xff]
      %v266 = vld [vmem:[%s246 + $0x68] sm:$0xff]
      %v267 = vld [vmem:[%s246 + $0x70] sm:$0xff]
      %v268 = vld [vmem:[%s246 + $0x78] sm:$0xff]
      %v269 = vld [vmem:[%s246 + $0x80] sm:$0xff]
      %v270 = vld [vmem:[%s246 + $0x88] sm:$0xff]
      %v271 = vld [vmem:[%s246 + $0x90] sm:$0xff]
      %v272 = vld [vmem:[%s246 + $0x98] sm:$0xff]
      %v273 = vld [vmem:[%s246 + $0xa0] sm:$0xff]
      %v274 = vld [vmem:[%s246 + $0xa8] sm:$0xff]
      %v275 = vld [vmem:[%s246 + $0xb0] sm:$0xff]
      %v276 = vld [vmem:[%s246 + $0xb8] sm:$0xff]
      %v277 = vld [vmem:[%s246 + $0xc0] sm:$0xff]
      %v278 = vld [vmem:[%s246 + $0xc8] sm:$0xff]
      %v279 = vld [vmem:[%s246 + $0xd0] sm:$0xff]
      %v280 = vld [vmem:[%s246 + $0xd8] sm:$0xff]
      %v281 = vld [vmem:[%s246 + $0xe0] sm:$0xff]
      %v282 = vld [vmem:[%s246 + $0xe8] sm:$0xff]
      %v283 = vld [vmem:[%s246 + $0xf0] sm:$0xff]
      %v284 = vld [vmem:[%s246 + $0xf8] sm:$0xff]
      %v285 = vpack.c.bf16 %v254, %v253
      %v286 = vpack.c.bf16 %v256, %v255
      %v287 = vpack.c.bf16 %v258, %v257
      %v288 = vpack.c.bf16 %v260, %v259
      %v289 = vpack.c.bf16 %v262, %v261
      %v290 = vpack.c.bf16 %v264, %v263
      %v291 = vpack.c.bf16 %v266, %v265
      %v292 = vpack.c.bf16 %v268, %v267
      %v293 = vpack.c.bf16 %v270, %v269
      %v294 = vpack.c.bf16 %v272, %v271
      %v295 = vpack.c.bf16 %v274, %v273
      %v296 = vpack.c.bf16 %v276, %v275
      %v297 = vpack.c.bf16 %v278, %v277
      %v298 = vpack.c.bf16 %v280, %v279
      %v299 = vpack.c.bf16 %v282, %v281
      %v300 = vpack.c.bf16 %v284, %v283
      %v301 = vld [vmem:[%s2] sm:$0xf]
      %v302 = vld [vmem:[%s2 + $0x4] sm:$0xf]
      %v303 = vld [vmem:[%s2 + $0x8] sm:$0xf]
      %v304 = vld [vmem:[%s2 + $0xc] sm:$0xf]
      %v305 = vld [vmem:[%s3] sm:$0x1]
      %v307 = vlaneseq
      %v308 = vshrl.u32 %v307, 7
      %v309 = vsub.s32 0, %v308
      %v310 = vrot.slane %v305, %v309
      %v316 = vunpack.c.l.b16 %v301
      %v317 = vunpack.c.l.b16 %v302
      %v318 = vunpack.c.l.b16 %v303
      %v319 = vunpack.c.l.b16 %v304
      %v320 = vpack.c.b16 %v317, %v316
      %v321 = vpack.c.b16 %v319, %v318
      %vm324 = vcmask 261120
      %v326 = vsel %vm324, %v285, 0
      %v329 = vsel %vm324, %v286, 0
      %v332 = vsel %vm324, %v287, 0
      %v335 = vsel %vm324, %v288, 0
      %v338 = vsel %vm324, %v289, 0
      %v341 = vsel %vm324, %v290, 0
      %v344 = vsel %vm324, %v291, 0
      %v347 = vsel %vm324, %v292, 0
      %v350 = vsel %vm324, %v293, 0
      %v353 = vsel %vm324, %v294, 0
      %v356 = vsel %vm324, %v295, 0
      %v359 = vsel %vm324, %v296, 0
      %v362 = vsel %vm324, %v297, 0
      %v365 = vsel %vm324, %v298, 0
      %v368 = vsel %vm324, %v299, 0
      %v371 = vsel %vm324, %v300, 0
      %373 = vmatprep.subr.bf16.mxu0 0
      %374 = vmatpush1.bf16.msra.mxu0 %v320
      %375 = vmatprep.subr.bf16.mxu0 0
      %376 = vmatpush1.bf16.msra.mxu0 %v321
      %377 = vmatprep.subr.bf16.mxu0 0
      %378 = vmatpush1.bf16.msra.mxu0 0
      %379 = vmatprep.subr.bf16.mxu0 0
      %380 = vmatpush1.bf16.msra.mxu0 0
      %381 = vmatprep.subr.bf16.mxu0 0
      %382 = vmatpush1.bf16.msra.mxu0 0
      %383 = vmatprep.subr.bf16.mxu0 0
      %384 = vmatpush1.bf16.msra.mxu0 0
      %385 = vmatprep.subr.bf16.mxu0 0
      %386 = vmatpush1.bf16.msra.mxu0 0
      %387 = vmatprep.subr.bf16.mxu0 0
      %388 = vmatpush1.bf16.msra.mxu0 0
      %389 = vmatprep.subr.bf16.mxu0 0
      %390 = vmatpush1.bf16.msra.mxu0 0
      %391 = vmatprep.subr.bf16.mxu0 0
      %392 = vmatpush1.bf16.msra.mxu0 0
      %393 = vmatprep.subr.bf16.mxu0 0
      %394 = vmatpush1.bf16.msra.mxu0 0
      %395 = vmatprep.subr.bf16.mxu0 0
      %396 = vmatpush1.bf16.msra.mxu0 0
      %397 = vmatprep.subr.bf16.mxu0 0
      %398 = vmatpush1.bf16.msra.mxu0 0
      %399 = vmatprep.subr.bf16.mxu0 0
      %400 = vmatpush1.bf16.msra.mxu0 0
      %401 = vmatprep.subr.bf16.mxu0 0
      %402 = vmatpush1.bf16.msra.mxu0 0
      %403 = vmatprep.subr.bf16.mxu0 0
      %404 = vmatpush1.bf16.msra.mxu0 0
      %405 = vmatprep.mubr.bf16.mxu0 0
      %406 = vmatmul.mubr.bf16.gmra.mrb[0].mxu0 %v326
      %v407 = vpop.f32.mrb[0].mxu0
      %v408 = vadd.f32 %v310, %v407
      %v409 = vpop.f32.mrb[0].mxu0
      %v410 = vpop.f32.mrb[0].mxu0
      %v411 = vadd.f32 %v310, %v410
      %v412 = vpop.f32.mrb[0].mxu0
      %413 = vmatprep.mubr.bf16.mxu0 0
      %414 = vmatmul.mubr.bf16.gmra.mrb[0].mxu0 %v329
      %v415 = vpop.f32.mrb[0].mxu0
      %v416 = vadd.f32 %v310, %v415
      %v417 = vpop.f32.mrb[0].mxu0
      %v418 = vpop.f32.mrb[0].mxu0
      %v419 = vadd.f32 %v310, %v418
      %v420 = vpop.f32.mrb[0].mxu0
      %421 = vmatprep.mubr.bf16.mxu0 0
      %422 = vmatmul.mubr.bf16.gmra.mrb[0].mxu0 %v332
      %v423 = vpop.f32.mrb[0].mxu0
      %v424 = vadd.f32 %v310, %v423
      %v425 = vpop.f32.mrb[0].mxu0
      %v426 = vpop.f32.mrb[0].mxu0
      %v427 = vadd.f32 %v310, %v426
      %v428 = vpop.f32.mrb[0].mxu0
      %429 = vmatprep.mubr.bf16.mxu0 0
      %430 = vmatmul.mubr.bf16.gmra.mrb[0].mxu0 %v335
      %v431 = vpop.f32.mrb[0].mxu0
      %v432 = vadd.f32 %v310, %v431
      %v433 = vpop.f32.mrb[0].mxu0
      %v434 = vpop.f32.mrb[0].mxu0
      %v435 = vadd.f32 %v310, %v434
      %v436 = vpop.f32.mrb[0].mxu0
      %437 = vmatprep.mubr.bf16.mxu0 0
      %438 = vmatmul.mubr.bf16.gmra.mrb[0].mxu0 %v338
      %v439 = vpop.f32.mrb[0].mxu0
      %v440 = vadd.f32 %v310, %v439
      %v441 = vpop.f32.mrb[0].mxu0
      %v442 = vpop.f32.mrb[0].mxu0
      %v443 = vadd.f32 %v310, %v442
      %v444 = vpop.f32.mrb[0].mxu0
      %445 = vmatprep.mubr.bf16.mxu0 0
      %446 = vmatmul.mubr.bf16.gmra.mrb[0].mxu0 %v341
      %v447 = vpop.f32.mrb[0].mxu0
      %v448 = vadd.f32 %v310, %v447
      %v449 = vpop.f32.mrb[0].mxu0
      %v450 = vpop.f32.mrb[0].mxu0
      %v451 = vadd.f32 %v310, %v450
      %v452 = vpop.f32.mrb[0].mxu0
      %453 = vmatprep.mubr.bf16.mxu0 0
      %454 = vmatmul.mubr.bf16.gmra.mrb[0].mxu0 %v344
      %v455 = vpop.f32.mrb[0].mxu0
      %v456 = vadd.f32 %v310, %v455
      %v457 = vpop.f32.mrb[0].mxu0
      %v458 = vpop.f32.mrb[0].mxu0
      %v459 = vadd.f32 %v310, %v458
      %v460 = vpop.f32.mrb[0].mxu0
      %461 = vmatprep.mubr.bf16.mxu0 0
      %462 = vmatmul.mubr.bf16.gmra.mrb[0].mxu0 %v347
      %v463 = vpop.f32.mrb[0].mxu0
      %v464 = vadd.f32 %v310, %v463
      %v465 = vpop.f32.mrb[0].mxu0
      %v466 = vpop.f32.mrb[0].mxu0
      %v467 = vadd.f32 %v310, %v466
      %v468 = vpop.f32.mrb[0].mxu0
      %469 = vmatprep.mubr.bf16.mxu0 0
      %470 = vmatmul.mubr.bf16.gmra.mrb[0].mxu0 %v350
      %v471 = vpop.f32.mrb[0].mxu0
      %v472 = vadd.f32 %v310, %v471
      %v473 = vpop.f32.mrb[0].mxu0
      %v474 = vpop.f32.mrb[0].mxu0
      %v475 = vadd.f32 %v310, %v474
      %v476 = vpop.f32.mrb[0].mxu0
      %477 = vmatprep.mubr.bf16.mxu0 0
      %478 = vmatmul.mubr.bf16.gmra.mrb[0].mxu0 %v353
      %v479 = vpop.f32.mrb[0].mxu0
      %v480 = vadd.f32 %v310, %v479
      %v481 = vpop.f32.mrb[0].mxu0
      %v482 = vpop.f32.mrb[0].mxu0
      %v483 = vadd.f32 %v310, %v482
      %v484 = vpop.f32.mrb[0].mxu0
      %485 = vmatprep.mubr.bf16.mxu0 0
      %486 = vmatmul.mubr.bf16.gmra.mrb[0].mxu0 %v356
      %v487 = vpop.f32.mrb[0].mxu0
      %v488 = vadd.f32 %v310, %v487
      %v489 = vpop.f32.mrb[0].mxu0
      %v490 = vpop.f32.mrb[0].mxu0
      %v491 = vadd.f32 %v310, %v490
      %v492 = vpop.f32.mrb[0].mxu0
      %493 = vmatprep.mubr.bf16.mxu0 0
      %494 = vmatmul.mubr.bf16.gmra.mrb[0].mxu0 %v359
      %v495 = vpop.f32.mrb[0].mxu0
      %v496 = vadd.f32 %v310, %v495
      %v497 = vpop.f32.mrb[0].mxu0
      %v498 = vpop.f32.mrb[0].mxu0
      %v499 = vadd.f32 %v310, %v498
      %v500 = vpop.f32.mrb[0].mxu0
      %501 = vmatprep.mubr.bf16.mxu0 0
      %502 = vmatmul.mubr.bf16.gmra.mrb[0].mxu0 %v362
      %v503 = vpop.f32.mrb[0].mxu0
      %v504 = vadd.f32 %v310, %v503
      %v505 = vpop.f32.mrb[0].mxu0
      %v506 = vpop.f32.mrb[0].mxu0
      %v507 = vadd.f32 %v310, %v506
      %v508 = vpop.f32.mrb[0].mxu0
      %509 = vmatprep.mubr.bf16.mxu0 0
      %510 = vmatmul.mubr.bf16.gmra.mrb[0].mxu0 %v365
      %v511 = vpop.f32.mrb[0].mxu0
      %v512 = vadd.f32 %v310, %v511
      %v513 = vpop.f32.mrb[0].mxu0
      %v514 = vpop.f32.mrb[0].mxu0
      %v515 = vadd.f32 %v310, %v514
      %v516 = vpop.f32.mrb[0].mxu0
      %517 = vmatprep.mubr.bf16.mxu0 0
      %518 = vmatmul.mubr.bf16.gmra.mrb[0].mxu0 %v368
      %v519 = vpop.f32.mrb[0].mxu0
      %v520 = vadd.f32 %v310, %v519
      %v521 = vpop.f32.mrb[0].mxu0
      %v522 = vpop.f32.mrb[0].mxu0
      %v523 = vadd.f32 %v310, %v522
      %v524 = vpop.f32.mrb[0].mxu0
      %525 = vmatprep.mubr.bf16.mxu0 0
      %526 = vmatmul.mubr.bf16.gmra.mrb[0].mxu0 %v371
      %v527 = vpop.f32.mrb[0].mxu0
      %v528 = vadd.f32 %v310, %v527
      %v529 = vpop.f32.mrb[0].mxu0
      %v530 = vpop.f32.mrb[0].mxu0
      %v531 = vadd.f32 %v310, %v530
      %v532 = vpop.f32.mrb[0].mxu0
      %533 = vdwg.mxu0
      %v534 = vmul.f32 %v408, 0.35355338
      %v535 = vmul.f32 %v411, 0.35355338
      %v536 = vmul.f32 %v416, 0.35355338
      %v537 = vmul.f32 %v419, 0.35355338
      %v538 = vmul.f32 %v424, 0.35355338
      %v539 = vmul.f32 %v427, 0.35355338
      %v540 = vmul.f32 %v432, 0.35355338
      %v541 = vmul.f32 %v435, 0.35355338
      %v542 = vmul.f32 %v440, 0.35355338
      %v543 = vmul.f32 %v443, 0.35355338
      %v544 = vmul.f32 %v448, 0.35355338
      %v545 = vmul.f32 %v451, 0.35355338
      %v546 = vmul.f32 %v456, 0.35355338
      %v547 = vmul.f32 %v459, 0.35355338
      %v548 = vmul.f32 %v464, 0.35355338
      %v549 = vmul.f32 %v467, 0.35355338
      %v550 = vmul.f32 %v472, 0.35355338
      %v551 = vmul.f32 %v475, 0.35355338
      %v552 = vmul.f32 %v480, 0.35355338
      %v553 = vmul.f32 %v483, 0.35355338
      %v554 = vmul.f32 %v488, 0.35355338
      %v555 = vmul.f32 %v491, 0.35355338
      %v556 = vmul.f32 %v496, 0.35355338
      %v557 = vmul.f32 %v499, 0.35355338
      %v558 = vmul.f32 %v504, 0.35355338
      %v559 = vmul.f32 %v507, 0.35355338
      %v560 = vmul.f32 %v512, 0.35355338
      %v561 = vmul.f32 %v515, 0.35355338
      %v562 = vmul.f32 %v520, 0.35355338
      %v563 = vmul.f32 %v523, 0.35355338
      %v564 = vmul.f32 %v528, 0.35355338
      %v565 = vmul.f32 %v531, 0.35355338
      %v566 = vld [vmem:[%s1] sm:$0xff]
      %v567 = vld [vmem:[%s1 + $0x8] sm:$0xff]
      %v568 = vld [vmem:[%s1 + $0x10] sm:$0xff]
      %v569 = vld [vmem:[%s1 + $0x18] sm:$0xff]
      %v570 = vld [vmem:[%s1 + $0x20] sm:$0xff]
      %v571 = vld [vmem:[%s1 + $0x28] sm:$0xff]
      %v572 = vld [vmem:[%s1 + $0x30] sm:$0xff]
      %v573 = vld [vmem:[%s1 + $0x38] sm:$0xff]
      %v574 = vld [vmem:[%s1 + $0x40] sm:$0xff]
      %v575 = vld [vmem:[%s1 + $0x48] sm:$0xff]
      %v576 = vld [vmem:[%s1 + $0x50] sm:$0xff]
      %v577 = vld [vmem:[%s1 + $0x58] sm:$0xff]
      %v578 = vld [vmem:[%s1 + $0x60] sm:$0xff]
      %v579 = vld [vmem:[%s1 + $0x68] sm:$0xff]
      %v580 = vld [vmem:[%s1 + $0x70] sm:$0xff]
      %v581 = vld [vmem:[%s1 + $0x78] sm:$0xff]
      %v582 = vld [vmem:[%s1 + $0x80] sm:$0xff]
      %v583 = vld [vmem:[%s1 + $0x88] sm:$0xff]
      %v584 = vld [vmem:[%s1 + $0x90] sm:$0xff]
      %v585 = vld [vmem:[%s1 + $0x98] sm:$0xff]
      %v586 = vld [vmem:[%s1 + $0xa0] sm:$0xff]
      %v587 = vld [vmem:[%s1 + $0xa8] sm:$0xff]
      %v588 = vld [vmem:[%s1 + $0xb0] sm:$0xff]
      %v589 = vld [vmem:[%s1 + $0xb8] sm:$0xff]
      %v590 = vld [vmem:[%s1 + $0xc0] sm:$0xff]
      %v591 = vld [vmem:[%s1 + $0xc8] sm:$0xff]
      %v592 = vld [vmem:[%s1 + $0xd0] sm:$0xff]
      %v593 = vld [vmem:[%s1 + $0xd8] sm:$0xff]
      %v594 = vld [vmem:[%s1 + $0xe0] sm:$0xff]
      %v595 = vld [vmem:[%s1 + $0xe8] sm:$0xff]
      %v596 = vld [vmem:[%s1 + $0xf0] sm:$0xff]
      %v597 = vld [vmem:[%s1 + $0xf8] sm:$0xff]
      %v598 = vpack.c.bf16 %v535, %v534
      %v599 = vpack.c.bf16 %v537, %v536
      %v600 = vpack.c.bf16 %v539, %v538
      %v601 = vpack.c.bf16 %v541, %v540
      %v602 = vpack.c.bf16 %v543, %v542
      %v603 = vpack.c.bf16 %v545, %v544
      %v604 = vpack.c.bf16 %v547, %v546
      %v605 = vpack.c.bf16 %v549, %v548
      %v606 = vpack.c.bf16 %v551, %v550
      %v607 = vpack.c.bf16 %v553, %v552
      %v608 = vpack.c.bf16 %v555, %v554
      %v609 = vpack.c.bf16 %v557, %v556
      %v610 = vpack.c.bf16 %v559, %v558
      %v611 = vpack.c.bf16 %v561, %v560
      %v612 = vpack.c.bf16 %v563, %v562
      %v613 = vpack.c.bf16 %v565, %v564
      %v614 = vpack.c.bf16 %v411, %v408
      %v615 = vpack.c.bf16 %v419, %v416
      %v616 = vpack.c.bf16 %v427, %v424
      %v617 = vpack.c.bf16 %v435, %v432
      %v618 = vpack.c.bf16 %v443, %v440
      %v619 = vpack.c.bf16 %v451, %v448
      %v620 = vpack.c.bf16 %v459, %v456
      %v621 = vpack.c.bf16 %v467, %v464
      %v622 = vpack.c.bf16 %v475, %v472
      %v623 = vpack.c.bf16 %v483, %v480
      %v624 = vpack.c.bf16 %v491, %v488
      %v625 = vpack.c.bf16 %v499, %v496
      %v626 = vpack.c.bf16 %v507, %v504
      %v627 = vpack.c.bf16 %v515, %v512
      %v628 = vpack.c.bf16 %v523, %v520
      %v629 = vpack.c.bf16 %v531, %v528
      %634 = vrot.lane.b32.xlu0 %v614, 96
      %v635 = vpop.permute.xlu0 %634
      %636 = vrot.lane.b32.xlu0 %v615, 96
      %v637 = vpop.permute.xlu0 %636
      %638 = vrot.lane.b32.xlu0 %v616, 96
      %v639 = vpop.permute.xlu0 %638
      %640 = vrot.lane.b32.xlu0 %v617, 96
      %v641 = vpop.permute.xlu0 %640
      %vm642 = vcmask 64512
      %v644 = vsel %vm642, %v598, 0
      %v647 = vsel %vm642, %v599, 0
      %v650 = vsel %vm642, %v600, 0
      %v653 = vsel %vm642, %v601, 0
      %v656 = vsel %vm642, %v635, 0
      %v659 = vsel %vm642, %v637, 0
      %v662 = vsel %vm642, %v639, 0
      %v665 = vsel %vm642, %v641, 0
      %667 = vmatprep.subr.bf16.mxu0 0
      %668 = vmatpush1.bf16.xpose.msra.mxu0 %v656
      %669 = vmatprep.subr.bf16.mxu0 0
      %670 = vmatpush1.bf16.xpose.msra.mxu0 %v659
      %671 = vmatprep.subr.bf16.mxu0 0
      %672 = vmatpush1.bf16.xpose.msra.mxu0 %v662
      %673 = vmatprep.subr.bf16.mxu0 0
      %674 = vmatpush1.bf16.xpose.msra.mxu0 %v665
      %675 = vmatprep.subr.bf16.mxu0 0
      %676 = vmatpush1.bf16.xpose.msra.mxu0 0
      %677 = vmatprep.subr.bf16.mxu0 0
      %678 = vmatpush1.bf16.xpose.msra.mxu0 0
      %679 = vmatprep.subr.bf16.mxu0 0
      %680 = vmatpush1.bf16.xpose.msra.mxu0 0
      %681 = vmatprep.subr.bf16.mxu0 0
      %682 = vmatpush1.bf16.xpose.msra.mxu0 0
      %683 = vmatprep.subr.bf16.mxu0 0
      %684 = vmatpush1.bf16.xpose.msra.mxu0 0
      %685 = vmatprep.subr.bf16.mxu0 0
      %686 = vmatpush1.bf16.xpose.msra.mxu0 0
      %687 = vmatprep.subr.bf16.mxu0 0
      %688 = vmatpush1.bf16.xpose.msra.mxu0 0
      %689 = vmatprep.subr.bf16.mxu0 0
      %690 = vmatpush1.bf16.xpose.msra.mxu0 0
      %691 = vmatprep.subr.bf16.mxu0 0
      %692 = vmatpush1.bf16.xpose.msra.mxu0 0
      %693 = vmatprep.subr.bf16.mxu0 0
      %694 = vmatpush1.bf16.xpose.msra.mxu0 0
      %695 = vmatprep.subr.bf16.mxu0 0
      %696 = vmatpush1.bf16.xpose.msra.mxu0 0
      %697 = vmatprep.subr.bf16.mxu0 0
      %698 = vmatpush1.bf16.xpose.msra.mxu0 0
      %699 = vmatprep.mubr.bf16.mxu0 0
      %700 = vmatmul.mubr.bf16.gmra.mrb[0].mxu0 %v644
      %v701 = vpop.f32.mrb[0].mxu0
      %v702 = vadd.f32 %v566, %v701
      %v703 = vpop.f32.mrb[0].mxu0
      %v704 = vpop.f32.mrb[0].mxu0
      %v705 = vadd.f32 %v567, %v704
      %v706 = vpop.f32.mrb[0].mxu0
      %707 = vmatprep.mubr.bf16.mxu0 0
      %708 = vmatmul.mubr.bf16.gmra.mrb[0].mxu0 %v647
      %v709 = vpop.f32.mrb[0].mxu0
      %v710 = vadd.f32 %v568, %v709
      %v711 = vpop.f32.mrb[0].mxu0
      %v712 = vpop.f32.mrb[0].mxu0
      %v713 = vadd.f32 %v569, %v712
      %v714 = vpop.f32.mrb[0].mxu0
      %715 = vmatprep.mubr.bf16.mxu0 0
      %716 = vmatmul.mubr.bf16.gmra.mrb[0].mxu0 %v650
      %v717 = vpop.f32.mrb[0].mxu0
      %v718 = vadd.f32 %v570, %v717
      %v719 = vpop.f32.mrb[0].mxu0
      %v720 = vpop.f32.mrb[0].mxu0
      %v721 = vadd.f32 %v571, %v720
      %v722 = vpop.f32.mrb[0].mxu0
      %723 = vmatprep.mubr.bf16.mxu0 0
      %724 = vmatmul.mubr.bf16.gmra.mrb[0].mxu0 %v653
      %v725 = vpop.f32.mrb[0].mxu0
      %v726 = vadd.f32 %v572, %v725
      %v727 = vpop.f32.mrb[0].mxu0
      %v728 = vpop.f32.mrb[0].mxu0
      %v729 = vadd.f32 %v573, %v728
      %v730 = vpop.f32.mrb[0].mxu0
      %731 = vdwg.mxu0
      %736 = vrot.lane.b32.xlu0 %v618, 96
      %v737 = vpop.permute.xlu0 %736
      %738 = vrot.lane.b32.xlu0 %v619, 96
      %v739 = vpop.permute.xlu0 %738
      %740 = vrot.lane.b32.xlu0 %v620, 96
      %v741 = vpop.permute.xlu0 %740
      %742 = vrot.lane.b32.xlu0 %v621, 96
      %v743 = vpop.permute.xlu0 %742
      %v745 = vsel %vm642, %v602, 0
      %v748 = vsel %vm642, %v603, 0
      %v751 = vsel %vm642, %v604, 0
      %v754 = vsel %vm642, %v605, 0
      %v757 = vsel %vm642, %v737, 0
      %v760 = vsel %vm642, %v739, 0
      %v763 = vsel %vm642, %v741, 0
      %v766 = vsel %vm642, %v743, 0
      %768 = vmatprep.subr.bf16.mxu0 0
      %769 = vmatpush1.bf16.xpose.msra.mxu0 %v757
      %770 = vmatprep.subr.bf16.mxu0 0
      %771 = vmatpush1.bf16.xpose.msra.mxu0 %v760
      %772 = vmatprep.subr.bf16.mxu0 0
      %773 = vmatpush1.bf16.xpose.msra.mxu0 %v763
      %774 = vmatprep.subr.bf16.mxu0 0
      %775 = vmatpush1.bf16.xpose.msra.mxu0 %v766
      %776 = vmatprep.subr.bf16.mxu0 0
      %777 = vmatpush1.bf16.xpose.msra.mxu0 0
      %778 = vmatprep.subr.bf16.mxu0 0
      %779 = vmatpush1.bf16.xpose.msra.mxu0 0
      %780 = vmatprep.subr.bf16.mxu0 0
      %781 = vmatpush1.bf16.xpose.msra.mxu0 0
      %782 = vmatprep.subr.bf16.mxu0 0
      %783 = vmatpush1.bf16.xpose.msra.mxu0 0
      %784 = vmatprep.subr.bf16.mxu0 0
      %785 = vmatpush1.bf16.xpose.msra.mxu0 0
      %786 = vmatprep.subr.bf16.mxu0 0
      %787 = vmatpush1.bf16.xpose.msra.mxu0 0
      %788 = vmatprep.subr.bf16.mxu0 0
      %789 = vmatpush1.bf16.xpose.msra.mxu0 0
      %790 = vmatprep.subr.bf16.mxu0 0
      %791 = vmatpush1.bf16.xpose.msra.mxu0 0
      %792 = vmatprep.subr.bf16.mxu0 0
      %793 = vmatpush1.bf16.xpose.msra.mxu0 0
      %794 = vmatprep.subr.bf16.mxu0 0
      %795 = vmatpush1.bf16.xpose.msra.mxu0 0
      %796 = vmatprep.subr.bf16.mxu0 0
      %797 = vmatpush1.bf16.xpose.msra.mxu0 0
      %798 = vmatprep.subr.bf16.mxu0 0
      %799 = vmatpush1.bf16.xpose.msra.mxu0 0
      %800 = vmatprep.mubr.bf16.mxu0 0
      %801 = vmatmul.mubr.bf16.gmra.mrb[0].mxu0 %v745
      %v802 = vpop.f32.mrb[0].mxu0
      %v803 = vadd.f32 %v574, %v802
      %v804 = vpop.f32.mrb[0].mxu0
      %v805 = vpop.f32.mrb[0].mxu0
      %v806 = vadd.f32 %v575, %v805
      %v807 = vpop.f32.mrb[0].mxu0
      %808 = vmatprep.mubr.bf16.mxu0 0
      %809 = vmatmul.mubr.bf16.gmra.mrb[0].mxu0 %v748
      %v810 = vpop.f32.mrb[0].mxu0
      %v811 = vadd.f32 %v576, %v810
      %v812 = vpop.f32.mrb[0].mxu0
      %v813 = vpop.f32.mrb[0].mxu0
      %v814 = vadd.f32 %v577, %v813
      %v815 = vpop.f32.mrb[0].mxu0
      %816 = vmatprep.mubr.bf16.mxu0 0
      %817 = vmatmul.mubr.bf16.gmra.mrb[0].mxu0 %v751
      %v818 = vpop.f32.mrb[0].mxu0
      %v819 = vadd.f32 %v578, %v818
      %v820 = vpop.f32.mrb[0].mxu0
      %v821 = vpop.f32.mrb[0].mxu0
      %v822 = vadd.f32 %v579, %v821
      %v823 = vpop.f32.mrb[0].mxu0
      %824 = vmatprep.mubr.bf16.mxu0 0
      %825 = vmatmul.mubr.bf16.gmra.mrb[0].mxu0 %v754
      %v826 = vpop.f32.mrb[0].mxu0
      %v827 = vadd.f32 %v580, %v826
      %v828 = vpop.f32.mrb[0].mxu0
      %v829 = vpop.f32.mrb[0].mxu0
      %v830 = vadd.f32 %v581, %v829
      %v831 = vpop.f32.mrb[0].mxu0
      %832 = vdwg.mxu0
      %837 = vrot.lane.b32.xlu0 %v622, 96
      %v838 = vpop.permute.xlu0 %837
      %839 = vrot.lane.b32.xlu0 %v623, 96
      %v840 = vpop.permute.xlu0 %839
      %841 = vrot.lane.b32.xlu0 %v624, 96
      %v842 = vpop.permute.xlu0 %841
      %843 = vrot.lane.b32.xlu0 %v625, 96
      %v844 = vpop.permute.xlu0 %843
      %v846 = vsel %vm642, %v606, 0
      %v849 = vsel %vm642, %v607, 0
      %v852 = vsel %vm642, %v608, 0
      %v855 = vsel %vm642, %v609, 0
      %v858 = vsel %vm642, %v838, 0
      %v861 = vsel %vm642, %v840, 0
      %v864 = vsel %vm642, %v842, 0
      %v867 = vsel %vm642, %v844, 0
      %869 = vmatprep.subr.bf16.mxu0 0
      %870 = vmatpush1.bf16.xpose.msra.mxu0 %v858
      %871 = vmatprep.subr.bf16.mxu0 0
      %872 = vmatpush1.bf16.xpose.msra.mxu0 %v861
      %873 = vmatprep.subr.bf16.mxu0 0
      %874 = vmatpush1.bf16.xpose.msra.mxu0 %v864
      %875 = vmatprep.subr.bf16.mxu0 0
      %876 = vmatpush1.bf16.xpose.msra.mxu0 %v867
      %877 = vmatprep.subr.bf16.mxu0 0
      %878 = vmatpush1.bf16.xpose.msra.mxu0 0
      %879 = vmatprep.subr.bf16.mxu0 0
      %880 = vmatpush1.bf16.xpose.msra.mxu0 0
      %881 = vmatprep.subr.bf16.mxu0 0
      %882 = vmatpush1.bf16.xpose.msra.mxu0 0
      %883 = vmatprep.subr.bf16.mxu0 0
      %884 = vmatpush1.bf16.xpose.msra.mxu0 0
      %885 = vmatprep.subr.bf16.mxu0 0
      %886 = vmatpush1.bf16.xpose.msra.mxu0 0
      %887 = vmatprep.subr.bf16.mxu0 0
      %888 = vmatpush1.bf16.xpose.msra.mxu0 0
      %889 = vmatprep.subr.bf16.mxu0 0
      %890 = vmatpush1.bf16.xpose.msra.mxu0 0
      %891 = vmatprep.subr.bf16.mxu0 0
      %892 = vmatpush1.bf16.xpose.msra.mxu0 0
      %893 = vmatprep.subr.bf16.mxu0 0
      %894 = vmatpush1.bf16.xpose.msra.mxu0 0
      %895 = vmatprep.subr.bf16.mxu0 0
      %896 = vmatpush1.bf16.xpose.msra.mxu0 0
      %897 = vmatprep.subr.bf16.mxu0 0
      %898 = vmatpush1.bf16.xpose.msra.mxu0 0
      %899 = vmatprep.subr.bf16.mxu0 0
      %900 = vmatpush1.bf16.xpose.msra.mxu0 0
      %901 = vmatprep.mubr.bf16.mxu0 0
      %902 = vmatmul.mubr.bf16.gmra.mrb[0].mxu0 %v846
      %v903 = vpop.f32.mrb[0].mxu0
      %v904 = vadd.f32 %v582, %v903
      %v905 = vpop.f32.mrb[0].mxu0
      %v906 = vpop.f32.mrb[0].mxu0
      %v907 = vadd.f32 %v583, %v906
      %v908 = vpop.f32.mrb[0].mxu0
      %909 = vmatprep.mubr.bf16.mxu0 0
      %910 = vmatmul.mubr.bf16.gmra.mrb[0].mxu0 %v849
      %v911 = vpop.f32.mrb[0].mxu0
      %v912 = vadd.f32 %v584, %v911
      %v913 = vpop.f32.mrb[0].mxu0
      %v914 = vpop.f32.mrb[0].mxu0
      %v915 = vadd.f32 %v585, %v914
      %v916 = vpop.f32.mrb[0].mxu0
      %917 = vmatprep.mubr.bf16.mxu0 0
      %918 = vmatmul.mubr.bf16.gmra.mrb[0].mxu0 %v852
      %v919 = vpop.f32.mrb[0].mxu0
      %v920 = vadd.f32 %v586, %v919
      %v921 = vpop.f32.mrb[0].mxu0
      %v922 = vpop.f32.mrb[0].mxu0
      %v923 = vadd.f32 %v587, %v922
      %v924 = vpop.f32.mrb[0].mxu0
      %925 = vmatprep.mubr.bf16.mxu0 0
      %926 = vmatmul.mubr.bf16.gmra.mrb[0].mxu0 %v855
      %v927 = vpop.f32.mrb[0].mxu0
      %v928 = vadd.f32 %v588, %v927
      %v929 = vpop.f32.mrb[0].mxu0
      %v930 = vpop.f32.mrb[0].mxu0
      %v931 = vadd.f32 %v589, %v930
      %v932 = vpop.f32.mrb[0].mxu0
      %933 = vdwg.mxu0
      %938 = vrot.lane.b32.xlu0 %v626, 96
      %v939 = vpop.permute.xlu0 %938
      %940 = vrot.lane.b32.xlu0 %v627, 96
      %v941 = vpop.permute.xlu0 %940
      %942 = vrot.lane.b32.xlu0 %v628, 96
      %v943 = vpop.permute.xlu0 %942
      %944 = vrot.lane.b32.xlu0 %v629, 96
      %v945 = vpop.permute.xlu0 %944
      %v947 = vsel %vm642, %v610, 0
      %v950 = vsel %vm642, %v611, 0
      %v953 = vsel %vm642, %v612, 0
      %v956 = vsel %vm642, %v613, 0
      %v959 = vsel %vm642, %v939, 0
      %v962 = vsel %vm642, %v941, 0
      %v965 = vsel %vm642, %v943, 0
      %v968 = vsel %vm642, %v945, 0
      %970 = vmatprep.subr.bf16.mxu0 0
      %971 = vmatpush1.bf16.xpose.msra.mxu0 %v959
      %972 = vmatprep.subr.bf16.mxu0 0
      %973 = vmatpush1.bf16.xpose.msra.mxu0 %v962
      %974 = vmatprep.subr.bf16.mxu0 0
      %975 = vmatpush1.bf16.xpose.msra.mxu0 %v965
      %976 = vmatprep.subr.bf16.mxu0 0
      %977 = vmatpush1.bf16.xpose.msra.mxu0 %v968
      %978 = vmatprep.subr.bf16.mxu0 0
      %979 = vmatpush1.bf16.xpose.msra.mxu0 0
      %980 = vmatprep.subr.bf16.mxu0 0
      %981 = vmatpush1.bf16.xpose.msra.mxu0 0
      %982 = vmatprep.subr.bf16.mxu0 0
      %983 = vmatpush1.bf16.xpose.msra.mxu0 0
      %984 = vmatprep.subr.bf16.mxu0 0
      %985 = vmatpush1.bf16.xpose.msra.mxu0 0
      %986 = vmatprep.subr.bf16.mxu0 0
      %987 = vmatpush1.bf16.xpose.msra.mxu0 0
      %988 = vmatprep.subr.bf16.mxu0 0
      %989 = vmatpush1.bf16.xpose.msra.mxu0 0
      %990 = vmatprep.subr.bf16.mxu0 0
      %991 = vmatpush1.bf16.xpose.msra.mxu0 0
      %992 = vmatprep.subr.bf16.mxu0 0
      %993 = vmatpush1.bf16.xpose.msra.mxu0 0
      %994 = vmatprep.subr.bf16.mxu0 0
      %995 = vmatpush1.bf16.xpose.msra.mxu0 0
      %996 = vmatprep.subr.bf16.mxu0 0
      %997 = vmatpush1.bf16.xpose.msra.mxu0 0
      %998 = vmatprep.subr.bf16.mxu0 0
      %999 = vmatpush1.bf16.xpose.msra.mxu0 0
      %1000 = vmatprep.subr.bf16.mxu0 0
      %1001 = vmatpush1.bf16.xpose.msra.mxu0 0
      %1002 = vmatprep.mubr.bf16.mxu0 0
      %1003 = vmatmul.mubr.bf16.gmra.mrb[0].mxu0 %v947
      %v1004 = vpop.f32.mrb[0].mxu0
      %v1005 = vadd.f32 %v590, %v1004
      %v1006 = vpop.f32.mrb[0].mxu0
      %v1007 = vpop.f32.mrb[0].mxu0
      %v1008 = vadd.f32 %v591, %v1007
      %v1009 = vpop.f32.mrb[0].mxu0
      %1010 = vmatprep.mubr.bf16.mxu0 0
      %1011 = vmatmul.mubr.bf16.gmra.mrb[0].mxu0 %v950
      %v1012 = vpop.f32.mrb[0].mxu0
      %v1013 = vadd.f32 %v592, %v1012
      %v1014 = vpop.f32.mrb[0].mxu0
      %v1015 = vpop.f32.mrb[0].mxu0
      %v1016 = vadd.f32 %v593, %v1015
      %v1017 = vpop.f32.mrb[0].mxu0
      %1018 = vmatprep.mubr.bf16.mxu0 0
      %1019 = vmatmul.mubr.bf16.gmra.mrb[0].mxu0 %v953
      %v1020 = vpop.f32.mrb[0].mxu0
      %v1021 = vadd.f32 %v594, %v1020
      %v1022 = vpop.f32.mrb[0].mxu0
      %v1023 = vpop.f32.mrb[0].mxu0
      %v1024 = vadd.f32 %v595, %v1023
      %v1025 = vpop.f32.mrb[0].mxu0
      %1026 = vmatprep.mubr.bf16.mxu0 0
      %1027 = vmatmul.mubr.bf16.gmra.mrb[0].mxu0 %v956
      %v1028 = vpop.f32.mrb[0].mxu0
      %v1029 = vadd.f32 %v596, %v1028
      %v1030 = vpop.f32.mrb[0].mxu0
      %v1031 = vpop.f32.mrb[0].mxu0
      %v1032 = vadd.f32 %v597, %v1031
      %v1033 = vpop.f32.mrb[0].mxu0
      %1034 = vdwg.mxu0
      %vm1035 = vcmask 523264
      %v1036 = vsel %vm1035, %v702, -inf
      %1037 = vmax.xlane.f32.xlu0 %v1036
      %v1038 = vpop.xlane.xlu0 %1037
      %v1039 = vsel %vm1035, %v705, -inf
      %1040 = vmax.xlane.f32.xlu0 %v1039
      %v1041 = vpop.xlane.xlu0 %1040
      %v1042 = vsel %vm1035, %v710, -inf
      %1043 = vmax.xlane.f32.xlu0 %v1042
      %v1044 = vpop.xlane.xlu0 %1043
      %v1045 = vsel %vm1035, %v713, -inf
      %1046 = vmax.xlane.f32.xlu0 %v1045
      %v1047 = vpop.xlane.xlu0 %1046
      %v1048 = vsel %vm1035, %v718, -inf
      %1049 = vmax.xlane.f32.xlu0 %v1048
      %v1050 = vpop.xlane.xlu0 %1049
      %v1051 = vsel %vm1035, %v721, -inf
      %1052 = vmax.xlane.f32.xlu0 %v1051
      %v1053 = vpop.xlane.xlu0 %1052
      %v1054 = vsel %vm1035, %v726, -inf
      %1055 = vmax.xlane.f32.xlu0 %v1054
      %v1056 = vpop.xlane.xlu0 %1055
      %v1057 = vsel %vm1035, %v729, -inf
      %1058 = vmax.xlane.f32.xlu0 %v1057
      %v1059 = vpop.xlane.xlu0 %1058
      %v1060 = vsel %vm1035, %v803, -inf
      %1061 = vmax.xlane.f32.xlu0 %v1060
      %v1062 = vpop.xlane.xlu0 %1061
      %v1063 = vsel %vm1035, %v806, -inf
      %1064 = vmax.xlane.f32.xlu0 %v1063
      %v1065 = vpop.xlane.xlu0 %1064
      %v1066 = vsel %vm1035, %v811, -inf
      %1067 = vmax.xlane.f32.xlu0 %v1066
      %v1068 = vpop.xlane.xlu0 %1067
      %v1069 = vsel %vm1035, %v814, -inf
      %1070 = vmax.xlane.f32.xlu0 %v1069
      %v1071 = vpop.xlane.xlu0 %1070
      %v1072 = vsel %vm1035, %v819, -inf
      %1073 = vmax.xlane.f32.xlu0 %v1072
      %v1074 = vpop.xlane.xlu0 %1073
      %v1075 = vsel %vm1035, %v822, -inf
      %1076 = vmax.xlane.f32.xlu0 %v1075
      %v1077 = vpop.xlane.xlu0 %1076
      %v1078 = vsel %vm1035, %v827, -inf
      %1079 = vmax.xlane.f32.xlu0 %v1078
      %v1080 = vpop.xlane.xlu0 %1079
      %v1081 = vsel %vm1035, %v830, -inf
      %1082 = vmax.xlane.f32.xlu0 %v1081
      %v1083 = vpop.xlane.xlu0 %1082
      %v1084 = vsel %vm1035, %v904, -inf
      %1085 = vmax.xlane.f32.xlu0 %v1084
      %v1086 = vpop.xlane.xlu0 %1085
      %v1087 = vsel %vm1035, %v907, -inf
      %1088 = vmax.xlane.f32.xlu0 %v1087
      %v1089 = vpop.xlane.xlu0 %1088
      %v1090 = vsel %vm1035, %v912, -inf
      %1091 = vmax.xlane.f32.xlu0 %v1090
      %v1092 = vpop.xlane.xlu0 %1091
      %v1093 = vsel %vm1035, %v915, -inf
      %1094 = vmax.xlane.f32.xlu0 %v1093
      %v1095 = vpop.xlane.xlu0 %1094
      %v1096 = vsel %vm1035, %v920, -inf
      %1097 = vmax.xlane.f32.xlu0 %v1096
      %v1098 = vpop.xlane.xlu0 %1097
      %v1099 = vsel %vm1035, %v923, -inf
      %1100 = vmax.xlane.f32.xlu0 %v1099
      %v1101 = vpop.xlane.xlu0 %1100
      %v1102 = vsel %vm1035, %v928, -inf
      %1103 = vmax.xlane.f32.xlu0 %v1102
      %v1104 = vpop.xlane.xlu0 %1103
      %v1105 = vsel %vm1035, %v931, -inf
      %1106 = vmax.xlane.f32.xlu0 %v1105
      %v1107 = vpop.xlane.xlu0 %1106
      %v1108 = vsel %vm1035, %v1005, -inf
      %1109 = vmax.xlane.f32.xlu0 %v1108
      %v1110 = vpop.xlane.xlu0 %1109
      %v1111 = vsel %vm1035, %v1008, -inf
      %1112 = vmax.xlane.f32.xlu0 %v1111
      %v1113 = vpop.xlane.xlu0 %1112
      %v1114 = vsel %vm1035, %v1013, -inf
      %1115 = vmax.xlane.f32.xlu0 %v1114
      %v1116 = vpop.xlane.xlu0 %1115
      %v1117 = vsel %vm1035, %v1016, -inf
      %1118 = vmax.xlane.f32.xlu0 %v1117
      %v1119 = vpop.xlane.xlu0 %1118
      %v1120 = vsel %vm1035, %v1021, -inf
      %1121 = vmax.xlane.f32.xlu0 %v1120
      %v1122 = vpop.xlane.xlu0 %1121
      %v1123 = vsel %vm1035, %v1024, -inf
      %1124 = vmax.xlane.f32.xlu0 %v1123
      %v1125 = vpop.xlane.xlu0 %1124
      %v1126 = vsel %vm1035, %v1029, -inf
      %1127 = vmax.xlane.f32.xlu0 %v1126
      %v1128 = vpop.xlane.xlu0 %1127
      %v1129 = vsel %vm1035, %v1032, -inf
      %1130 = vmax.xlane.f32.xlu0 %v1129
      %v1131 = vpop.xlane.xlu0 %1130
      %v1132 = vsub.f32 %v702, %v1038
      %v1133 = vsub.f32 %v705, %v1041
      %v1134 = vsub.f32 %v710, %v1044
      %v1135 = vsub.f32 %v713, %v1047
      %v1136 = vsub.f32 %v718, %v1050
      %v1137 = vsub.f32 %v721, %v1053
      %v1138 = vsub.f32 %v726, %v1056
      %v1139 = vsub.f32 %v729, %v1059
      %v1140 = vsub.f32 %v803, %v1062
      %v1141 = vsub.f32 %v806, %v1065
      %v1142 = vsub.f32 %v811, %v1068
      %v1143 = vsub.f32 %v814, %v1071
      %v1144 = vsub.f32 %v819, %v1074
      %v1145 = vsub.f32 %v822, %v1077
      %v1146 = vsub.f32 %v827, %v1080
      %v1147 = vsub.f32 %v830, %v1083
      %v1148 = vsub.f32 %v904, %v1086
      %v1149 = vsub.f32 %v907, %v1089
      %v1150 = vsub.f32 %v912, %v1092
      %v1151 = vsub.f32 %v915, %v1095
      %v1152 = vsub.f32 %v920, %v1098
      %v1153 = vsub.f32 %v923, %v1101
      %v1154 = vsub.f32 %v928, %v1104
      %v1155 = vsub.f32 %v931, %v1107
      %v1156 = vsub.f32 %v1005, %v1110
      %v1157 = vsub.f32 %v1008, %v1113
      %v1158 = vsub.f32 %v1013, %v1116
      %v1159 = vsub.f32 %v1016, %v1119
      %v1160 = vsub.f32 %v1021, %v1122
      %v1161 = vsub.f32 %v1024, %v1125
      %v1162 = vsub.f32 %v1029, %v1128
      %v1163 = vsub.f32 %v1032, %v1131
      %v1164 = vmul.f32 %v1132, 1.442695
      %v1165 = vpow.pop %v1164
      %v1166 = vmul.f32 %v1133, 1.442695
      %v1167 = vpow.pop %v1166
      %v1168 = vmul.f32 %v1134, 1.442695
      %v1169 = vpow.pop %v1168
      %v1170 = vmul.f32 %v1135, 1.442695
      %v1171 = vpow.pop %v1170
      %v1172 = vmul.f32 %v1136, 1.442695
      %v1173 = vpow.pop %v1172
      %v1174 = vmul.f32 %v1137, 1.442695
      %v1175 = vpow.pop %v1174
      %v1176 = vmul.f32 %v1138, 1.442695
      %v1177 = vpow.pop %v1176
      %v1178 = vmul.f32 %v1139, 1.442695
      %v1179 = vpow.pop %v1178
      %v1180 = vmul.f32 %v1140, 1.442695
      %v1181 = vpow.pop %v1180
      %v1182 = vmul.f32 %v1141, 1.442695
      %v1183 = vpow.pop %v1182
      %v1184 = vmul.f32 %v1142, 1.442695
      %v1185 = vpow.pop %v1184
      %v1186 = vmul.f32 %v1143, 1.442695
      %v1187 = vpow.pop %v1186
      %v1188 = vmul.f32 %v1144, 1.442695
      %v1189 = vpow.pop %v1188
      %v1190 = vmul.f32 %v1145, 1.442695
      %v1191 = vpow.pop %v1190
      %v1192 = vmul.f32 %v1146, 1.442695
      %v1193 = vpow.pop %v1192
      %v1194 = vmul.f32 %v1147, 1.442695
      %v1195 = vpow.pop %v1194
      %v1196 = vmul.f32 %v1148, 1.442695
      %v1197 = vpow.pop %v1196
      %v1198 = vmul.f32 %v1149, 1.442695
      %v1199 = vpow.pop %v1198
      %v1200 = vmul.f32 %v1150, 1.442695
      %v1201 = vpow.pop %v1200
      %v1202 = vmul.f32 %v1151, 1.442695
      %v1203 = vpow.pop %v1202
      %v1204 = vmul.f32 %v1152, 1.442695
      %v1205 = vpow.pop %v1204
      %v1206 = vmul.f32 %v1153, 1.442695
      %v1207 = vpow.pop %v1206
      %v1208 = vmul.f32 %v1154, 1.442695
      %v1209 = vpow.pop %v1208
      %v1210 = vmul.f32 %v1155, 1.442695
      %v1211 = vpow.pop %v1210
      %v1212 = vmul.f32 %v1156, 1.442695
      %v1213 = vpow.pop %v1212
      %v1214 = vmul.f32 %v1157, 1.442695
      %v1215 = vpow.pop %v1214
      %v1216 = vmul.f32 %v1158, 1.442695
      %v1217 = vpow.pop %v1216
      %v1218 = vmul.f32 %v1159, 1.442695
      %v1219 = vpow.pop %v1218
      %v1220 = vmul.f32 %v1160, 1.442695
      %v1221 = vpow.pop %v1220
      %v1222 = vmul.f32 %v1161, 1.442695
      %v1223 = vpow.pop %v1222
      %v1224 = vmul.f32 %v1162, 1.442695
      %v1225 = vpow.pop %v1224
      %v1226 = vmul.f32 %v1163, 1.442695
      %v1227 = vpow.pop %v1226
      %v1228 = vsel %vm1035, %v1165, 0.0
      %1229 = vadd.xlane.f32.xlu0 %v1228
      %v1230 = vpop.xlane.xlu0 %1229
      %v1231 = vsel %vm1035, %v1167, 0.0
      %1232 = vadd.xlane.f32.xlu0 %v1231
      %v1233 = vpop.xlane.xlu0 %1232
      %v1234 = vsel %vm1035, %v1169, 0.0
      %1235 = vadd.xlane.f32.xlu0 %v1234
      %v1236 = vpop.xlane.xlu0 %1235
      %v1237 = vsel %vm1035, %v1171, 0.0
      %1238 = vadd.xlane.f32.xlu0 %v1237
      %v1239 = vpop.xlane.xlu0 %1238
      %v1240 = vsel %vm1035, %v1173, 0.0
      %1241 = vadd.xlane.f32.xlu0 %v1240
      %v1242 = vpop.xlane.xlu0 %1241
      %v1243 = vsel %vm1035, %v1175, 0.0
      %1244 = vadd.xlane.f32.xlu0 %v1243
      %v1245 = vpop.xlane.xlu0 %1244
      %v1246 = vsel %vm1035, %v1177, 0.0
      %1247 = vadd.xlane.f32.xlu0 %v1246
      %v1248 = vpop.xlane.xlu0 %1247
      %v1249 = vsel %vm1035, %v1179, 0.0
      %1250 = vadd.xlane.f32.xlu0 %v1249
      %v1251 = vpop.xlane.xlu0 %1250
      %v1252 = vsel %vm1035, %v1181, 0.0
      %1253 = vadd.xlane.f32.xlu0 %v1252
      %v1254 = vpop.xlane.xlu0 %1253
      %v1255 = vsel %vm1035, %v1183, 0.0
      %1256 = vadd.xlane.f32.xlu0 %v1255
      %v1257 = vpop.xlane.xlu0 %1256
      %v1258 = vsel %vm1035, %v1185, 0.0
      %1259 = vadd.xlane.f32.xlu0 %v1258
      %v1260 = vpop.xlane.xlu0 %1259
      %v1261 = vsel %vm1035, %v1187, 0.0
      %1262 = vadd.xlane.f32.xlu0 %v1261
      %v1263 = vpop.xlane.xlu0 %1262
      %v1264 = vsel %vm1035, %v1189, 0.0
      %1265 = vadd.xlane.f32.xlu0 %v1264
      %v1266 = vpop.xlane.xlu0 %1265
      %v1267 = vsel %vm1035, %v1191, 0.0
      %1268 = vadd.xlane.f32.xlu0 %v1267
      %v1269 = vpop.xlane.xlu0 %1268
      %v1270 = vsel %vm1035, %v1193, 0.0
      %1271 = vadd.xlane.f32.xlu0 %v1270
      %v1272 = vpop.xlane.xlu0 %1271
      %v1273 = vsel %vm1035, %v1195, 0.0
      %1274 = vadd.xlane.f32.xlu0 %v1273
      %v1275 = vpop.xlane.xlu0 %1274
      %v1276 = vsel %vm1035, %v1197, 0.0
      %1277 = vadd.xlane.f32.xlu0 %v1276
      %v1278 = vpop.xlane.xlu0 %1277
      %v1279 = vsel %vm1035, %v1199, 0.0
      %1280 = vadd.xlane.f32.xlu0 %v1279
      %v1281 = vpop.xlane.xlu0 %1280
      %v1282 = vsel %vm1035, %v1201, 0.0
      %1283 = vadd.xlane.f32.xlu0 %v1282
      %v1284 = vpop.xlane.xlu0 %1283
      %v1285 = vsel %vm1035, %v1203, 0.0
      %1286 = vadd.xlane.f32.xlu0 %v1285
      %v1287 = vpop.xlane.xlu0 %1286
      %v1288 = vsel %vm1035, %v1205, 0.0
      %1289 = vadd.xlane.f32.xlu0 %v1288
      %v1290 = vpop.xlane.xlu0 %1289
      %v1291 = vsel %vm1035, %v1207, 0.0
      %1292 = vadd.xlane.f32.xlu0 %v1291
      %v1293 = vpop.xlane.xlu0 %1292
      %v1294 = vsel %vm1035, %v1209, 0.0
      %1295 = vadd.xlane.f32.xlu0 %v1294
      %v1296 = vpop.xlane.xlu0 %1295
      %v1297 = vsel %vm1035, %v1211, 0.0
      %1298 = vadd.xlane.f32.xlu0 %v1297
      %v1299 = vpop.xlane.xlu0 %1298
      %v1300 = vsel %vm1035, %v1213, 0.0
      %1301 = vadd.xlane.f32.xlu0 %v1300
      %v1302 = vpop.xlane.xlu0 %1301
      %v1303 = vsel %vm1035, %v1215, 0.0
      %1304 = vadd.xlane.f32.xlu0 %v1303
      %v1305 = vpop.xlane.xlu0 %1304
      %v1306 = vsel %vm1035, %v1217, 0.0
      %1307 = vadd.xlane.f32.xlu0 %v1306
      %v1308 = vpop.xlane.xlu0 %1307
      %v1309 = vsel %vm1035, %v1219, 0.0
      %1310 = vadd.xlane.f32.xlu0 %v1309
      %v1311 = vpop.xlane.xlu0 %1310
      %v1312 = vsel %vm1035, %v1221, 0.0
      %1313 = vadd.xlane.f32.xlu0 %v1312
      %v1314 = vpop.xlane.xlu0 %1313
      %v1315 = vsel %vm1035, %v1223, 0.0
      %1316 = vadd.xlane.f32.xlu0 %v1315
      %v1317 = vpop.xlane.xlu0 %1316
      %v1318 = vsel %vm1035, %v1225, 0.0
      %1319 = vadd.xlane.f32.xlu0 %v1318
      %v1320 = vpop.xlane.xlu0 %1319
      %v1321 = vsel %vm1035, %v1227, 0.0
      %1322 = vadd.xlane.f32.xlu0 %v1321
      %v1323 = vpop.xlane.xlu0 %1322
      %v1324 = vrcp.pop %v1230
      %v1325 = vrcp.pop %v1233
      %v1326 = vrcp.pop %v1236
      %v1327 = vrcp.pop %v1239
      %v1328 = vrcp.pop %v1242
      %v1329 = vrcp.pop %v1245
      %v1330 = vrcp.pop %v1248
      %v1331 = vrcp.pop %v1251
      %v1332 = vrcp.pop %v1254
      %v1333 = vrcp.pop %v1257
      %v1334 = vrcp.pop %v1260
      %v1335 = vrcp.pop %v1263
      %v1336 = vrcp.pop %v1266
      %v1337 = vrcp.pop %v1269
      %v1338 = vrcp.pop %v1272
      %v1339 = vrcp.pop %v1275
      %v1340 = vrcp.pop %v1278
      %v1341 = vrcp.pop %v1281
      %v1342 = vrcp.pop %v1284
      %v1343 = vrcp.pop %v1287
      %v1344 = vrcp.pop %v1290
      %v1345 = vrcp.pop %v1293
      %v1346 = vrcp.pop %v1296
      %v1347 = vrcp.pop %v1299
      %v1348 = vrcp.pop %v1302
      %v1349 = vrcp.pop %v1305
      %v1350 = vrcp.pop %v1308
      %v1351 = vrcp.pop %v1311
      %v1352 = vrcp.pop %v1314
      %v1353 = vrcp.pop %v1317
      %v1354 = vrcp.pop %v1320
      %v1355 = vrcp.pop %v1323
      %v1356 = vmul.f32 %v1165, %v1324
      %v1357 = vmul.f32 %v1167, %v1325
      %v1358 = vmul.f32 %v1169, %v1326
      %v1359 = vmul.f32 %v1171, %v1327
      %v1360 = vmul.f32 %v1173, %v1328
      %v1361 = vmul.f32 %v1175, %v1329
      %v1362 = vmul.f32 %v1177, %v1330
      %v1363 = vmul.f32 %v1179, %v1331
      %v1364 = vmul.f32 %v1181, %v1332
      %v1365 = vmul.f32 %v1183, %v1333
      %v1366 = vmul.f32 %v1185, %v1334
      %v1367 = vmul.f32 %v1187, %v1335
      %v1368 = vmul.f32 %v1189, %v1336
      %v1369 = vmul.f32 %v1191, %v1337
      %v1370 = vmul.f32 %v1193, %v1338
      %v1371 = vmul.f32 %v1195, %v1339
      %v1372 = vmul.f32 %v1197, %v1340
      %v1373 = vmul.f32 %v1199, %v1341
      %v1374 = vmul.f32 %v1201, %v1342
      %v1375 = vmul.f32 %v1203, %v1343
      %v1376 = vmul.f32 %v1205, %v1344
      %v1377 = vmul.f32 %v1207, %v1345
      %v1378 = vmul.f32 %v1209, %v1346
      %v1379 = vmul.f32 %v1211, %v1347
      %v1380 = vmul.f32 %v1213, %v1348
      %v1381 = vmul.f32 %v1215, %v1349
      %v1382 = vmul.f32 %v1217, %v1350
      %v1383 = vmul.f32 %v1219, %v1351
      %v1384 = vmul.f32 %v1221, %v1352
      %v1385 = vmul.f32 %v1223, %v1353
      %v1386 = vmul.f32 %v1225, %v1354
      %v1387 = vmul.f32 %v1227, %v1355
      %v1388 = vpack.c.bf16 %v1357, %v1356
      %v1389 = vpack.c.bf16 %v1359, %v1358
      %v1390 = vpack.c.bf16 %v1361, %v1360
      %v1391 = vpack.c.bf16 %v1363, %v1362
      %v1392 = vpack.c.bf16 %v1365, %v1364
      %v1393 = vpack.c.bf16 %v1367, %v1366
      %v1394 = vpack.c.bf16 %v1369, %v1368
      %v1395 = vpack.c.bf16 %v1371, %v1370
      %v1396 = vpack.c.bf16 %v1373, %v1372
      %v1397 = vpack.c.bf16 %v1375, %v1374
      %v1398 = vpack.c.bf16 %v1377, %v1376
      %v1399 = vpack.c.bf16 %v1379, %v1378
      %v1400 = vpack.c.bf16 %v1381, %v1380
      %v1401 = vpack.c.bf16 %v1383, %v1382
      %v1402 = vpack.c.bf16 %v1385, %v1384
      %v1403 = vpack.c.bf16 %v1387, %v1386
      %1404 = vrot.lane.b32.xlu0 %v614, 64
      %v1405 = vpop.permute.xlu0 %1404
      %1406 = vrot.lane.b32.xlu0 %v615, 64
      %v1407 = vpop.permute.xlu0 %1406
      %1408 = vrot.lane.b32.xlu0 %v616, 64
      %v1409 = vpop.permute.xlu0 %1408
      %1410 = vrot.lane.b32.xlu0 %v617, 64
      %v1411 = vpop.permute.xlu0 %1410
      %v1417 = vsel %vm1035, %v1388, 0
      %v1420 = vsel %vm1035, %v1389, 0
      %v1423 = vsel %vm1035, %v1390, 0
      %v1426 = vsel %vm1035, %v1391, 0
      %1428 = vmatprep.subr.bf16.mxu0 0
      %1429 = vmatpush1.bf16.msra.mxu0 %v1405
      %1430 = vmatprep.subr.bf16.mxu0 0
      %1431 = vmatpush1.bf16.msra.mxu0 %v1407
      %1432 = vmatprep.subr.bf16.mxu0 0
      %1433 = vmatpush1.bf16.msra.mxu0 %v1409
      %1434 = vmatprep.subr.bf16.mxu0 0
      %1435 = vmatpush1.bf16.msra.mxu0 %v1411
      %1436 = vmatprep.subr.bf16.mxu0 0
      %1437 = vmatpush1.bf16.msra.mxu0 0
      %1438 = vmatprep.subr.bf16.mxu0 0
      %1439 = vmatpush1.bf16.msra.mxu0 0
      %1440 = vmatprep.subr.bf16.mxu0 0
      %1441 = vmatpush1.bf16.msra.mxu0 0
      %1442 = vmatprep.subr.bf16.mxu0 0
      %1443 = vmatpush1.bf16.msra.mxu0 0
      %1444 = vmatprep.subr.bf16.mxu0 0
      %1445 = vmatpush1.bf16.msra.mxu0 0
      %1446 = vmatprep.subr.bf16.mxu0 0
      %1447 = vmatpush1.bf16.msra.mxu0 0
      %1448 = vmatprep.subr.bf16.mxu0 0
      %1449 = vmatpush1.bf16.msra.mxu0 0
      %1450 = vmatprep.subr.bf16.mxu0 0
      %1451 = vmatpush1.bf16.msra.mxu0 0
      %1452 = vmatprep.subr.bf16.mxu0 0
      %1453 = vmatpush1.bf16.msra.mxu0 0
      %1454 = vmatprep.subr.bf16.mxu0 0
      %1455 = vmatpush1.bf16.msra.mxu0 0
      %1456 = vmatprep.subr.bf16.mxu0 0
      %1457 = vmatpush1.bf16.msra.mxu0 0
      %1458 = vmatprep.subr.bf16.mxu0 0
      %1459 = vmatpush1.bf16.msra.mxu0 0
      %1460 = vmatprep.mubr.bf16.mxu0 0
      %1461 = vmatmul.mubr.bf16.gmra.mrb[0].mxu0 %v1417
      %v1462 = vpop.f32.mrb[0].mxu0
      %v1463 = vadd.f32 0.0, %v1462
      %v1464 = vpop.f32.mrb[0].mxu0
      %v1465 = vpop.f32.mrb[0].mxu0
      %v1466 = vadd.f32 0.0, %v1465
      %v1467 = vpop.f32.mrb[0].mxu0
      %1468 = vmatprep.mubr.bf16.mxu0 0
      %1469 = vmatmul.mubr.bf16.gmra.mrb[0].mxu0 %v1420
      %v1470 = vpop.f32.mrb[0].mxu0
      %v1471 = vadd.f32 0.0, %v1470
      %v1472 = vpop.f32.mrb[0].mxu0
      %v1473 = vpop.f32.mrb[0].mxu0
      %v1474 = vadd.f32 0.0, %v1473
      %v1475 = vpop.f32.mrb[0].mxu0
      %1476 = vmatprep.mubr.bf16.mxu0 0
      %1477 = vmatmul.mubr.bf16.gmra.mrb[0].mxu0 %v1423
      %v1478 = vpop.f32.mrb[0].mxu0
      %v1479 = vadd.f32 0.0, %v1478
      %v1480 = vpop.f32.mrb[0].mxu0
      %v1481 = vpop.f32.mrb[0].mxu0
      %v1482 = vadd.f32 0.0, %v1481
      %v1483 = vpop.f32.mrb[0].mxu0
      %1484 = vmatprep.mubr.bf16.mxu0 0
      %1485 = vmatmul.mubr.bf16.gmra.mrb[0].mxu0 %v1426
      %v1486 = vpop.f32.mrb[0].mxu0
      %v1487 = vadd.f32 0.0, %v1486
      %v1488 = vpop.f32.mrb[0].mxu0
      %v1489 = vpop.f32.mrb[0].mxu0
      %v1490 = vadd.f32 0.0, %v1489
      %v1491 = vpop.f32.mrb[0].mxu0
      %1492 = vdwg.mxu0
      %1493 = vrot.lane.b32.xlu0 %v618, 64
      %v1494 = vpop.permute.xlu0 %1493
      %1495 = vrot.lane.b32.xlu0 %v619, 64
      %v1496 = vpop.permute.xlu0 %1495
      %1497 = vrot.lane.b32.xlu0 %v620, 64
      %v1498 = vpop.permute.xlu0 %1497
      %1499 = vrot.lane.b32.xlu0 %v621, 64
      %v1500 = vpop.permute.xlu0 %1499
      %v1506 = vsel %vm1035, %v1392, 0
      %v1509 = vsel %vm1035, %v1393, 0
      %v1512 = vsel %vm1035, %v1394, 0
      %v1515 = vsel %vm1035, %v1395, 0
      %1517 = vmatprep.subr.bf16.mxu0 0
      %1518 = vmatpush1.bf16.msra.mxu0 %v1494
      %1519 = vmatprep.subr.bf16.mxu0 0
      %1520 = vmatpush1.bf16.msra.mxu0 %v1496
      %1521 = vmatprep.subr.bf16.mxu0 0
      %1522 = vmatpush1.bf16.msra.mxu0 %v1498
      %1523 = vmatprep.subr.bf16.mxu0 0
      %1524 = vmatpush1.bf16.msra.mxu0 %v1500
      %1525 = vmatprep.subr.bf16.mxu0 0
      %1526 = vmatpush1.bf16.msra.mxu0 0
      %1527 = vmatprep.subr.bf16.mxu0 0
      %1528 = vmatpush1.bf16.msra.mxu0 0
      %1529 = vmatprep.subr.bf16.mxu0 0
      %1530 = vmatpush1.bf16.msra.mxu0 0
      %1531 = vmatprep.subr.bf16.mxu0 0
      %1532 = vmatpush1.bf16.msra.mxu0 0
      %1533 = vmatprep.subr.bf16.mxu0 0
      %1534 = vmatpush1.bf16.msra.mxu0 0
      %1535 = vmatprep.subr.bf16.mxu0 0
      %1536 = vmatpush1.bf16.msra.mxu0 0
      %1537 = vmatprep.subr.bf16.mxu0 0
      %1538 = vmatpush1.bf16.msra.mxu0 0
      %1539 = vmatprep.subr.bf16.mxu0 0
      %1540 = vmatpush1.bf16.msra.mxu0 0
      %1541 = vmatprep.subr.bf16.mxu0 0
      %1542 = vmatpush1.bf16.msra.mxu0 0
      %1543 = vmatprep.subr.bf16.mxu0 0
      %1544 = vmatpush1.bf16.msra.mxu0 0
      %1545 = vmatprep.subr.bf16.mxu0 0
      %1546 = vmatpush1.bf16.msra.mxu0 0
      %1547 = vmatprep.subr.bf16.mxu0 0
      %1548 = vmatpush1.bf16.msra.mxu0 0
      %1549 = vmatprep.mubr.bf16.mxu0 0
      %1550 = vmatmul.mubr.bf16.gmra.mrb[0].mxu0 %v1506
      %v1551 = vpop.f32.mrb[0].mxu0
      %v1552 = vadd.f32 0.0, %v1551
      %v1553 = vpop.f32.mrb[0].mxu0
      %v1554 = vpop.f32.mrb[0].mxu0
      %v1555 = vadd.f32 0.0, %v1554
      %v1556 = vpop.f32.mrb[0].mxu0
      %1557 = vmatprep.mubr.bf16.mxu0 0
      %1558 = vmatmul.mubr.bf16.gmra.mrb[0].mxu0 %v1509
      %v1559 = vpop.f32.mrb[0].mxu0
      %v1560 = vadd.f32 0.0, %v1559
      %v1561 = vpop.f32.mrb[0].mxu0
      %v1562 = vpop.f32.mrb[0].mxu0
      %v1563 = vadd.f32 0.0, %v1562
      %v1564 = vpop.f32.mrb[0].mxu0
      %1565 = vmatprep.mubr.bf16.mxu0 0
      %1566 = vmatmul.mubr.bf16.gmra.mrb[0].mxu0 %v1512
      %v1567 = vpop.f32.mrb[0].mxu0
      %v1568 = vadd.f32 0.0, %v1567
      %v1569 = vpop.f32.mrb[0].mxu0
      %v1570 = vpop.f32.mrb[0].mxu0
      %v1571 = vadd.f32 0.0, %v1570
      %v1572 = vpop.f32.mrb[0].mxu0
      %1573 = vmatprep.mubr.bf16.mxu0 0
      %1574 = vmatmul.mubr.bf16.gmra.mrb[0].mxu0 %v1515
      %v1575 = vpop.f32.mrb[0].mxu0
      %v1576 = vadd.f32 0.0, %v1575
      %v1577 = vpop.f32.mrb[0].mxu0
      %v1578 = vpop.f32.mrb[0].mxu0
      %v1579 = vadd.f32 0.0, %v1578
      %v1580 = vpop.f32.mrb[0].mxu0
      %1581 = vdwg.mxu0
      %1582 = vrot.lane.b32.xlu0 %v622, 64
      %v1583 = vpop.permute.xlu0 %1582
      %1584 = vrot.lane.b32.xlu0 %v623, 64
      %v1585 = vpop.permute.xlu0 %1584
      %1586 = vrot.lane.b32.xlu0 %v624, 64
      %v1587 = vpop.permute.xlu0 %1586
      %1588 = vrot.lane.b32.xlu0 %v625, 64
      %v1589 = vpop.permute.xlu0 %1588
      %v1595 = vsel %vm1035, %v1396, 0
      %v1598 = vsel %vm1035, %v1397, 0
      %v1601 = vsel %vm1035, %v1398, 0
      %v1604 = vsel %vm1035, %v1399, 0
      %1606 = vmatprep.subr.bf16.mxu0 0
      %1607 = vmatpush1.bf16.msra.mxu0 %v1583
      %1608 = vmatprep.subr.bf16.mxu0 0
      %1609 = vmatpush1.bf16.msra.mxu0 %v1585
      %1610 = vmatprep.subr.bf16.mxu0 0
      %1611 = vmatpush1.bf16.msra.mxu0 %v1587
      %1612 = vmatprep.subr.bf16.mxu0 0
      %1613 = vmatpush1.bf16.msra.mxu0 %v1589
      %1614 = vmatprep.subr.bf16.mxu0 0
      %1615 = vmatpush1.bf16.msra.mxu0 0
      %1616 = vmatprep.subr.bf16.mxu0 0
      %1617 = vmatpush1.bf16.msra.mxu0 0
      %1618 = vmatprep.subr.bf16.mxu0 0
      %1619 = vmatpush1.bf16.msra.mxu0 0
      %1620 = vmatprep.subr.bf16.mxu0 0
      %1621 = vmatpush1.bf16.msra.mxu0 0
      %1622 = vmatprep.subr.bf16.mxu0 0
      %1623 = vmatpush1.bf16.msra.mxu0 0
      %1624 = vmatprep.subr.bf16.mxu0 0
      %1625 = vmatpush1.bf16.msra.mxu0 0
      %1626 = vmatprep.subr.bf16.mxu0 0
      %1627 = vmatpush1.bf16.msra.mxu0 0
      %1628 = vmatprep.subr.bf16.mxu0 0
      %1629 = vmatpush1.bf16.msra.mxu0 0
      %1630 = vmatprep.subr.bf16.mxu0 0
      %1631 = vmatpush1.bf16.msra.mxu0 0
      %1632 = vmatprep.subr.bf16.mxu0 0
      %1633 = vmatpush1.bf16.msra.mxu0 0
      %1634 = vmatprep.subr.bf16.mxu0 0
      %1635 = vmatpush1.bf16.msra.mxu0 0
      %1636 = vmatprep.subr.bf16.mxu0 0
      %1637 = vmatpush1.bf16.msra.mxu0 0
      %1638 = vmatprep.mubr.bf16.mxu0 0
      %1639 = vmatmul.mubr.bf16.gmra.mrb[0].mxu0 %v1595
      %v1640 = vpop.f32.mrb[0].mxu0
      %v1641 = vadd.f32 0.0, %v1640
      %v1642 = vpop.f32.mrb[0].mxu0
      %v1643 = vpop.f32.mrb[0].mxu0
      %v1644 = vadd.f32 0.0, %v1643
      %v1645 = vpop.f32.mrb[0].mxu0
      %1646 = vmatprep.mubr.bf16.mxu0 0
      %1647 = vmatmul.mubr.bf16.gmra.mrb[0].mxu0 %v1598
      %v1648 = vpop.f32.mrb[0].mxu0
      %v1649 = vadd.f32 0.0, %v1648
      %v1650 = vpop.f32.mrb[0].mxu0
      %v1651 = vpop.f32.mrb[0].mxu0
      %v1652 = vadd.f32 0.0, %v1651
      %v1653 = vpop.f32.mrb[0].mxu0
      %1654 = vmatprep.mubr.bf16.mxu0 0
      %1655 = vmatmul.mubr.bf16.gmra.mrb[0].mxu0 %v1601
      %v1656 = vpop.f32.mrb[0].mxu0
      %v1657 = vadd.f32 0.0, %v1656
      %v1658 = vpop.f32.mrb[0].mxu0
      %v1659 = vpop.f32.mrb[0].mxu0
      %v1660 = vadd.f32 0.0, %v1659
      %v1661 = vpop.f32.mrb[0].mxu0
      %1662 = vmatprep.mubr.bf16.mxu0 0
      %1663 = vmatmul.mubr.bf16.gmra.mrb[0].mxu0 %v1604
      %v1664 = vpop.f32.mrb[0].mxu0
      %v1665 = vadd.f32 0.0, %v1664
      %v1666 = vpop.f32.mrb[0].mxu0
      %v1667 = vpop.f32.mrb[0].mxu0
      %v1668 = vadd.f32 0.0, %v1667
      %v1669 = vpop.f32.mrb[0].mxu0
      %1670 = vdwg.mxu0
      %1671 = vrot.lane.b32.xlu0 %v626, 64
      %v1672 = vpop.permute.xlu0 %1671
      %1673 = vrot.lane.b32.xlu0 %v627, 64
      %v1674 = vpop.permute.xlu0 %1673
      %1675 = vrot.lane.b32.xlu0 %v628, 64
      %v1676 = vpop.permute.xlu0 %1675
      %1677 = vrot.lane.b32.xlu0 %v629, 64
      %v1678 = vpop.permute.xlu0 %1677
      %v1684 = vsel %vm1035, %v1400, 0
      %v1687 = vsel %vm1035, %v1401, 0
      %v1690 = vsel %vm1035, %v1402, 0
      %v1693 = vsel %vm1035, %v1403, 0
      %1695 = vmatprep.subr.bf16.mxu0 0
      %1696 = vmatpush1.bf16.msra.mxu0 %v1672
      %1697 = vmatprep.subr.bf16.mxu0 0
      %1698 = vmatpush1.bf16.msra.mxu0 %v1674
      %1699 = vmatprep.subr.bf16.mxu0 0
      %1700 = vmatpush1.bf16.msra.mxu0 %v1676
      %1701 = vmatprep.subr.bf16.mxu0 0
      %1702 = vmatpush1.bf16.msra.mxu0 %v1678
      %1703 = vmatprep.subr.bf16.mxu0 0
      %1704 = vmatpush1.bf16.msra.mxu0 0
      %1705 = vmatprep.subr.bf16.mxu0 0
      %1706 = vmatpush1.bf16.msra.mxu0 0
      %1707 = vmatprep.subr.bf16.mxu0 0
      %1708 = vmatpush1.bf16.msra.mxu0 0
      %1709 = vmatprep.subr.bf16.mxu0 0
      %1710 = vmatpush1.bf16.msra.mxu0 0
      %1711 = vmatprep.subr.bf16.mxu0 0
      %1712 = vmatpush1.bf16.msra.mxu0 0
      %1713 = vmatprep.subr.bf16.mxu0 0
      %1714 = vmatpush1.bf16.msra.mxu0 0
      %1715 = vmatprep.subr.bf16.mxu0 0
      %1716 = vmatpush1.bf16.msra.mxu0 0
      %1717 = vmatprep.subr.bf16.mxu0 0
      %1718 = vmatpush1.bf16.msra.mxu0 0
      %1719 = vmatprep.subr.bf16.mxu0 0
      %1720 = vmatpush1.bf16.msra.mxu0 0
      %1721 = vmatprep.subr.bf16.mxu0 0
      %1722 = vmatpush1.bf16.msra.mxu0 0
      %1723 = vmatprep.subr.bf16.mxu0 0
      %1724 = vmatpush1.bf16.msra.mxu0 0
      %1725 = vmatprep.subr.bf16.mxu0 0
      %1726 = vmatpush1.bf16.msra.mxu0 0
      %1727 = vmatprep.mubr.bf16.mxu0 0
      %1728 = vmatmul.mubr.bf16.gmra.mrb[0].mxu0 %v1684
      %v1729 = vpop.f32.mrb[0].mxu0
      %v1730 = vadd.f32 0.0, %v1729
      %v1731 = vpop.f32.mrb[0].mxu0
      %v1732 = vpop.f32.mrb[0].mxu0
      %v1733 = vadd.f32 0.0, %v1732
      %v1734 = vpop.f32.mrb[0].mxu0
      %1735 = vmatprep.mubr.bf16.mxu0 0
      %1736 = vmatmul.mubr.bf16.gmra.mrb[0].mxu0 %v1687
      %v1737 = vpop.f32.mrb[0].mxu0
      %v1738 = vadd.f32 0.0, %v1737
      %v1739 = vpop.f32.mrb[0].mxu0
      %v1740 = vpop.f32.mrb[0].mxu0
      %v1741 = vadd.f32 0.0, %v1740
      %v1742 = vpop.f32.mrb[0].mxu0
      %1743 = vmatprep.mubr.bf16.mxu0 0
      %1744 = vmatmul.mubr.bf16.gmra.mrb[0].mxu0 %v1690
      %v1745 = vpop.f32.mrb[0].mxu0
      %v1746 = vadd.f32 0.0, %v1745
      %v1747 = vpop.f32.mrb[0].mxu0
      %v1748 = vpop.f32.mrb[0].mxu0
      %v1749 = vadd.f32 0.0, %v1748
      %v1750 = vpop.f32.mrb[0].mxu0
      %1751 = vmatprep.mubr.bf16.mxu0 0
      %1752 = vmatmul.mubr.bf16.gmra.mrb[0].mxu0 %v1693
      %v1753 = vpop.f32.mrb[0].mxu0
      %v1754 = vadd.f32 0.0, %v1753
      %v1755 = vpop.f32.mrb[0].mxu0
      %v1756 = vpop.f32.mrb[0].mxu0
      %v1757 = vadd.f32 0.0, %v1756
      %v1758 = vpop.f32.mrb[0].mxu0
      %1759 = vdwg.mxu0
      %1764 = vrot.lane.b32.xlu0 %v598, 120
      %v1765 = vpop.permute.xlu0 %1764
      %1766 = vrot.lane.b32.xlu0 %v599, 120
      %v1767 = vpop.permute.xlu0 %1766
      %1768 = vrot.lane.b32.xlu0 %v600, 120
      %v1769 = vpop.permute.xlu0 %1768
      %1770 = vrot.lane.b32.xlu0 %v601, 120
      %v1771 = vpop.permute.xlu0 %1770
      %1772 = vrot.lane.b32.xlu0 %v614, 88
      %v1773 = vpop.permute.xlu0 %1772
      %1774 = vrot.lane.b32.xlu0 %v615, 88
      %v1775 = vpop.permute.xlu0 %1774
      %1776 = vrot.lane.b32.xlu0 %v616, 88
      %v1777 = vpop.permute.xlu0 %1776
      %1778 = vrot.lane.b32.xlu0 %v617, 88
      %v1779 = vpop.permute.xlu0 %1778
      %v1781 = vsel %vm642, %v1765, 0
      %v1784 = vsel %vm642, %v1767, 0
      %v1787 = vsel %vm642, %v1769, 0
      %v1790 = vsel %vm642, %v1771, 0
      %v1793 = vsel %vm642, %v1773, 0
      %v1796 = vsel %vm642, %v1775, 0
      %v1799 = vsel %vm642, %v1777, 0
      %v1802 = vsel %vm642, %v1779, 0
      %1804 = vmatprep.subr.bf16.mxu0 0
      %1805 = vmatpush1.bf16.xpose.msra.mxu0 %v1793
      %1806 = vmatprep.subr.bf16.mxu0 0
      %1807 = vmatpush1.bf16.xpose.msra.mxu0 %v1796
      %1808 = vmatprep.subr.bf16.mxu0 0
      %1809 = vmatpush1.bf16.xpose.msra.mxu0 %v1799
      %1810 = vmatprep.subr.bf16.mxu0 0
      %1811 = vmatpush1.bf16.xpose.msra.mxu0 %v1802
      %1812 = vmatprep.subr.bf16.mxu0 0
      %1813 = vmatpush1.bf16.xpose.msra.mxu0 0
      %1814 = vmatprep.subr.bf16.mxu0 0
      %1815 = vmatpush1.bf16.xpose.msra.mxu0 0
      %1816 = vmatprep.subr.bf16.mxu0 0
      %1817 = vmatpush1.bf16.xpose.msra.mxu0 0
      %1818 = vmatprep.subr.bf16.mxu0 0
      %1819 = vmatpush1.bf16.xpose.msra.mxu0 0
      %1820 = vmatprep.subr.bf16.mxu0 0
      %1821 = vmatpush1.bf16.xpose.msra.mxu0 0
      %1822 = vmatprep.subr.bf16.mxu0 0
      %1823 = vmatpush1.bf16.xpose.msra.mxu0 0
      %1824 = vmatprep.subr.bf16.mxu0 0
      %1825 = vmatpush1.bf16.xpose.msra.mxu0 0
      %1826 = vmatprep.subr.bf16.mxu0 0
      %1827 = vmatpush1.bf16.xpose.msra.mxu0 0
      %1828 = vmatprep.subr.bf16.mxu0 0
      %1829 = vmatpush1.bf16.xpose.msra.mxu0 0
      %1830 = vmatprep.subr.bf16.mxu0 0
      %1831 = vmatpush1.bf16.xpose.msra.mxu0 0
      %1832 = vmatprep.subr.bf16.mxu0 0
      %1833 = vmatpush1.bf16.xpose.msra.mxu0 0
      %1834 = vmatprep.subr.bf16.mxu0 0
      %1835 = vmatpush1.bf16.xpose.msra.mxu0 0
      %1836 = vmatprep.mubr.bf16.mxu0 0
      %1837 = vmatmul.mubr.bf16.gmra.mrb[0].mxu0 %v1781
      %v1838 = vpop.f32.mrb[0].mxu0
      %v1839 = vadd.f32 %v566, %v1838
      %v1840 = vpop.f32.mrb[0].mxu0
      %v1841 = vpop.f32.mrb[0].mxu0
      %v1842 = vadd.f32 %v567, %v1841
      %v1843 = vpop.f32.mrb[0].mxu0
      %1844 = vmatprep.mubr.bf16.mxu0 0
      %1845 = vmatmul.mubr.bf16.gmra.mrb[0].mxu0 %v1784
      %v1846 = vpop.f32.mrb[0].mxu0
      %v1847 = vadd.f32 %v568, %v1846
      %v1848 = vpop.f32.mrb[0].mxu0
      %v1849 = vpop.f32.mrb[0].mxu0
      %v1850 = vadd.f32 %v569, %v1849
      %v1851 = vpop.f32.mrb[0].mxu0
      %1852 = vmatprep.mubr.bf16.mxu0 0
      %1853 = vmatmul.mubr.bf16.gmra.mrb[0].mxu0 %v1787
      %v1854 = vpop.f32.mrb[0].mxu0
      %v1855 = vadd.f32 %v570, %v1854
      %v1856 = vpop.f32.mrb[0].mxu0
      %v1857 = vpop.f32.mrb[0].mxu0
      %v1858 = vadd.f32 %v571, %v1857
      %v1859 = vpop.f32.mrb[0].mxu0
      %1860 = vmatprep.mubr.bf16.mxu0 0
      %1861 = vmatmul.mubr.bf16.gmra.mrb[0].mxu0 %v1790
      %v1862 = vpop.f32.mrb[0].mxu0
      %v1863 = vadd.f32 %v572, %v1862
      %v1864 = vpop.f32.mrb[0].mxu0
      %v1865 = vpop.f32.mrb[0].mxu0
      %v1866 = vadd.f32 %v573, %v1865
      %v1867 = vpop.f32.mrb[0].mxu0
      %1868 = vdwg.mxu0
      %1873 = vrot.lane.b32.xlu0 %v602, 120
      %v1874 = vpop.permute.xlu0 %1873
      %1875 = vrot.lane.b32.xlu0 %v603, 120
      %v1876 = vpop.permute.xlu0 %1875
      %1877 = vrot.lane.b32.xlu0 %v604, 120
      %v1878 = vpop.permute.xlu0 %1877
      %1879 = vrot.lane.b32.xlu0 %v605, 120
      %v1880 = vpop.permute.xlu0 %1879
      %1881 = vrot.lane.b32.xlu0 %v618, 88
      %v1882 = vpop.permute.xlu0 %1881
      %1883 = vrot.lane.b32.xlu0 %v619, 88
      %v1884 = vpop.permute.xlu0 %1883
      %1885 = vrot.lane.b32.xlu0 %v620, 88
      %v1886 = vpop.permute.xlu0 %1885
      %1887 = vrot.lane.b32.xlu0 %v621, 88
      %v1888 = vpop.permute.xlu0 %1887
      %v1890 = vsel %vm642, %v1874, 0
      %v1893 = vsel %vm642, %v1876, 0
      %v1896 = vsel %vm642, %v1878, 0
      %v1899 = vsel %vm642, %v1880, 0
      %v1902 = vsel %vm642, %v1882, 0
      %v1905 = vsel %vm642, %v1884, 0
      %v1908 = vsel %vm642, %v1886, 0
      %v1911 = vsel %vm642, %v1888, 0
      %1913 = vmatprep.subr.bf16.mxu0 0
      %1914 = vmatpush1.bf16.xpose.msra.mxu0 %v1902
      %1915 = vmatprep.subr.bf16.mxu0 0
      %1916 = vmatpush1.bf16.xpose.msra.mxu0 %v1905
      %1917 = vmatprep.subr.bf16.mxu0 0
      %1918 = vmatpush1.bf16.xpose.msra.mxu0 %v1908
      %1919 = vmatprep.subr.bf16.mxu0 0
      %1920 = vmatpush1.bf16.xpose.msra.mxu0 %v1911
      %1921 = vmatprep.subr.bf16.mxu0 0
      %1922 = vmatpush1.bf16.xpose.msra.mxu0 0
      %1923 = vmatprep.subr.bf16.mxu0 0
      %1924 = vmatpush1.bf16.xpose.msra.mxu0 0
      %1925 = vmatprep.subr.bf16.mxu0 0
      %1926 = vmatpush1.bf16.xpose.msra.mxu0 0
      %1927 = vmatprep.subr.bf16.mxu0 0
      %1928 = vmatpush1.bf16.xpose.msra.mxu0 0
      %1929 = vmatprep.subr.bf16.mxu0 0
      %1930 = vmatpush1.bf16.xpose.msra.mxu0 0
      %1931 = vmatprep.subr.bf16.mxu0 0
      %1932 = vmatpush1.bf16.xpose.msra.mxu0 0
      %1933 = vmatprep.subr.bf16.mxu0 0
      %1934 = vmatpush1.bf16.xpose.msra.mxu0 0
      %1935 = vmatprep.subr.bf16.mxu0 0
      %1936 = vmatpush1.bf16.xpose.msra.mxu0 0
      %1937 = vmatprep.subr.bf16.mxu0 0
      %1938 = vmatpush1.bf16.xpose.msra.mxu0 0
      %1939 = vmatprep.subr.bf16.mxu0 0
      %1940 = vmatpush1.bf16.xpose.msra.mxu0 0
      %1941 = vmatprep.subr.bf16.mxu0 0
      %1942 = vmatpush1.bf16.xpose.msra.mxu0 0
      %1943 = vmatprep.subr.bf16.mxu0 0
      %1944 = vmatpush1.bf16.xpose.msra.mxu0 0
      %1945 = vmatprep.mubr.bf16.mxu0 0
      %1946 = vmatmul.mubr.bf16.gmra.mrb[0].mxu0 %v1890
      %v1947 = vpop.f32.mrb[0].mxu0
      %v1948 = vadd.f32 %v574, %v1947
      %v1949 = vpop.f32.mrb[0].mxu0
      %v1950 = vpop.f32.mrb[0].mxu0
      %v1951 = vadd.f32 %v575, %v1950
      %v1952 = vpop.f32.mrb[0].mxu0
      %1953 = vmatprep.mubr.bf16.mxu0 0
      %1954 = vmatmul.mubr.bf16.gmra.mrb[0].mxu0 %v1893
      %v1955 = vpop.f32.mrb[0].mxu0
      %v1956 = vadd.f32 %v576, %v1955
      %v1957 = vpop.f32.mrb[0].mxu0
      %v1958 = vpop.f32.mrb[0].mxu0
      %v1959 = vadd.f32 %v577, %v1958
      %v1960 = vpop.f32.mrb[0].mxu0
      %1961 = vmatprep.mubr.bf16.mxu0 0
      %1962 = vmatmul.mubr.bf16.gmra.mrb[0].mxu0 %v1896
      %v1963 = vpop.f32.mrb[0].mxu0
      %v1964 = vadd.f32 %v578, %v1963
      %v1965 = vpop.f32.mrb[0].mxu0
      %v1966 = vpop.f32.mrb[0].mxu0
      %v1967 = vadd.f32 %v579, %v1966
      %v1968 = vpop.f32.mrb[0].mxu0
      %1969 = vmatprep.mubr.bf16.mxu0 0
      %1970 = vmatmul.mubr.bf16.gmra.mrb[0].mxu0 %v1899
      %v1971 = vpop.f32.mrb[0].mxu0
      %v1972 = vadd.f32 %v580, %v1971
      %v1973 = vpop.f32.mrb[0].mxu0
      %v1974 = vpop.f32.mrb[0].mxu0
      %v1975 = vadd.f32 %v581, %v1974
      %v1976 = vpop.f32.mrb[0].mxu0
      %1977 = vdwg.mxu0
      %1982 = vrot.lane.b32.xlu0 %v606, 120
      %v1983 = vpop.permute.xlu0 %1982
      %1984 = vrot.lane.b32.xlu0 %v607, 120
      %v1985 = vpop.permute.xlu0 %1984
      %1986 = vrot.lane.b32.xlu0 %v608, 120
      %v1987 = vpop.permute.xlu0 %1986
      %1988 = vrot.lane.b32.xlu0 %v609, 120
      %v1989 = vpop.permute.xlu0 %1988
      %1990 = vrot.lane.b32.xlu0 %v622, 88
      %v1991 = vpop.permute.xlu0 %1990
      %1992 = vrot.lane.b32.xlu0 %v623, 88
      %v1993 = vpop.permute.xlu0 %1992
      %1994 = vrot.lane.b32.xlu0 %v624, 88
      %v1995 = vpop.permute.xlu0 %1994
      %1996 = vrot.lane.b32.xlu0 %v625, 88
      %v1997 = vpop.permute.xlu0 %1996
      %v1999 = vsel %vm642, %v1983, 0
      %v2002 = vsel %vm642, %v1985, 0
      %v2005 = vsel %vm642, %v1987, 0
      %v2008 = vsel %vm642, %v1989, 0
      %v2011 = vsel %vm642, %v1991, 0
      %v2014 = vsel %vm642, %v1993, 0
      %v2017 = vsel %vm642, %v1995, 0
      %v2020 = vsel %vm642, %v1997, 0
      %2022 = vmatprep.subr.bf16.mxu0 0
      %2023 = vmatpush1.bf16.xpose.msra.mxu0 %v2011
      %2024 = vmatprep.subr.bf16.mxu0 0
      %2025 = vmatpush1.bf16.xpose.msra.mxu0 %v2014
      %2026 = vmatprep.subr.bf16.mxu0 0
      %2027 = vmatpush1.bf16.xpose.msra.mxu0 %v2017
      %2028 = vmatprep.subr.bf16.mxu0 0
      %2029 = vmatpush1.bf16.xpose.msra.mxu0 %v2020
      %2030 = vmatprep.subr.bf16.mxu0 0
      %2031 = vmatpush1.bf16.xpose.msra.mxu0 0
      %2032 = vmatprep.subr.bf16.mxu0 0
      %2033 = vmatpush1.bf16.xpose.msra.mxu0 0
      %2034 = vmatprep.subr.bf16.mxu0 0
      %2035 = vmatpush1.bf16.xpose.msra.mxu0 0
      %2036 = vmatprep.subr.bf16.mxu0 0
      %2037 = vmatpush1.bf16.xpose.msra.mxu0 0
      %2038 = vmatprep.subr.bf16.mxu0 0
      %2039 = vmatpush1.bf16.xpose.msra.mxu0 0
      %2040 = vmatprep.subr.bf16.mxu0 0
      %2041 = vmatpush1.bf16.xpose.msra.mxu0 0
      %2042 = vmatprep.subr.bf16.mxu0 0
      %2043 = vmatpush1.bf16.xpose.msra.mxu0 0
      %2044 = vmatprep.subr.bf16.mxu0 0
      %2045 = vmatpush1.bf16.xpose.msra.mxu0 0
      %2046 = vmatprep.subr.bf16.mxu0 0
      %2047 = vmatpush1.bf16.xpose.msra.mxu0 0
      %2048 = vmatprep.subr.bf16.mxu0 0
      %2049 = vmatpush1.bf16.xpose.msra.mxu0 0
      %2050 = vmatprep.subr.bf16.mxu0 0
      %2051 = vmatpush1.bf16.xpose.msra.mxu0 0
      %2052 = vmatprep.subr.bf16.mxu0 0
      %2053 = vmatpush1.bf16.xpose.msra.mxu0 0
      %2054 = vmatprep.mubr.bf16.mxu0 0
      %2055 = vmatmul.mubr.bf16.gmra.mrb[0].mxu0 %v1999
      %v2056 = vpop.f32.mrb[0].mxu0
      %v2057 = vadd.f32 %v582, %v2056
      %v2058 = vpop.f32.mrb[0].mxu0
      %v2059 = vpop.f32.mrb[0].mxu0
      %v2060 = vadd.f32 %v583, %v2059
      %v2061 = vpop.f32.mrb[0].mxu0
      %2062 = vmatprep.mubr.bf16.mxu0 0
      %2063 = vmatmul.mubr.bf16.gmra.mrb[0].mxu0 %v2002
      %v2064 = vpop.f32.mrb[0].mxu0
      %v2065 = vadd.f32 %v584, %v2064
      %v2066 = vpop.f32.mrb[0].mxu0
      %v2067 = vpop.f32.mrb[0].mxu0
      %v2068 = vadd.f32 %v585, %v2067
      %v2069 = vpop.f32.mrb[0].mxu0
      %2070 = vmatprep.mubr.bf16.mxu0 0
      %2071 = vmatmul.mubr.bf16.gmra.mrb[0].mxu0 %v2005
      %v2072 = vpop.f32.mrb[0].mxu0
      %v2073 = vadd.f32 %v586, %v2072
      %v2074 = vpop.f32.mrb[0].mxu0
      %v2075 = vpop.f32.mrb[0].mxu0
      %v2076 = vadd.f32 %v587, %v2075
      %v2077 = vpop.f32.mrb[0].mxu0
      %2078 = vmatprep.mubr.bf16.mxu0 0
      %2079 = vmatmul.mubr.bf16.gmra.mrb[0].mxu0 %v2008
      %v2080 = vpop.f32.mrb[0].mxu0
      %v2081 = vadd.f32 %v588, %v2080
      %v2082 = vpop.f32.mrb[0].mxu0
      %v2083 = vpop.f32.mrb[0].mxu0
      %v2084 = vadd.f32 %v589, %v2083
      %v2085 = vpop.f32.mrb[0].mxu0
      %2086 = vdwg.mxu0
      %2091 = vrot.lane.b32.xlu0 %v610, 120
      %v2092 = vpop.permute.xlu0 %2091
      %2093 = vrot.lane.b32.xlu0 %v611, 120
      %v2094 = vpop.permute.xlu0 %2093
      %2095 = vrot.lane.b32.xlu0 %v612, 120
      %v2096 = vpop.permute.xlu0 %2095
      %2097 = vrot.lane.b32.xlu0 %v613, 120
      %v2098 = vpop.permute.xlu0 %2097
      %2099 = vrot.lane.b32.xlu0 %v626, 88
      %v2100 = vpop.permute.xlu0 %2099
      %2101 = vrot.lane.b32.xlu0 %v627, 88
      %v2102 = vpop.permute.xlu0 %2101
      %2103 = vrot.lane.b32.xlu0 %v628, 88
      %v2104 = vpop.permute.xlu0 %2103
      %2105 = vrot.lane.b32.xlu0 %v629, 88
      %v2106 = vpop.permute.xlu0 %2105
      %v2108 = vsel %vm642, %v2092, 0
      %v2111 = vsel %vm642, %v2094, 0
      %v2114 = vsel %vm642, %v2096, 0
      %v2117 = vsel %vm642, %v2098, 0
      %v2120 = vsel %vm642, %v2100, 0
      %v2123 = vsel %vm642, %v2102, 0
      %v2126 = vsel %vm642, %v2104, 0
      %v2129 = vsel %vm642, %v2106, 0
      %2131 = vmatprep.subr.bf16.mxu0 0
      %2132 = vmatpush1.bf16.xpose.msra.mxu0 %v2120
      %2133 = vmatprep.subr.bf16.mxu0 0
      %2134 = vmatpush1.bf16.xpose.msra.mxu0 %v2123
      %2135 = vmatprep.subr.bf16.mxu0 0
      %2136 = vmatpush1.bf16.xpose.msra.mxu0 %v2126
      %2137 = vmatprep.subr.bf16.mxu0 0
      %2138 = vmatpush1.bf16.xpose.msra.mxu0 %v2129
      %2139 = vmatprep.subr.bf16.mxu0 0
      %2140 = vmatpush1.bf16.xpose.msra.mxu0 0
      %2141 = vmatprep.subr.bf16.mxu0 0
      %2142 = vmatpush1.bf16.xpose.msra.mxu0 0
      %2143 = vmatprep.subr.bf16.mxu0 0
      %2144 = vmatpush1.bf16.xpose.msra.mxu0 0
      %2145 = vmatprep.subr.bf16.mxu0 0
      %2146 = vmatpush1.bf16.xpose.msra.mxu0 0
      %2147 = vmatprep.subr.bf16.mxu0 0
      %2148 = vmatpush1.bf16.xpose.msra.mxu0 0
      %2149 = vmatprep.subr.bf16.mxu0 0
      %2150 = vmatpush1.bf16.xpose.msra.mxu0 0
      %2151 = vmatprep.subr.bf16.mxu0 0
      %2152 = vmatpush1.bf16.xpose.msra.mxu0 0
      %2153 = vmatprep.subr.bf16.mxu0 0
      %2154 = vmatpush1.bf16.xpose.msra.mxu0 0
      %2155 = vmatprep.subr.bf16.mxu0 0
      %2156 = vmatpush1.bf16.xpose.msra.mxu0 0
      %2157 = vmatprep.subr.bf16.mxu0 0
      %2158 = vmatpush1.bf16.xpose.msra.mxu0 0
      %2159 = vmatprep.subr.bf16.mxu0 0
      %2160 = vmatpush1.bf16.xpose.msra.mxu0 0
      %2161 = vmatprep.subr.bf16.mxu0 0
      %2162 = vmatpush1.bf16.xpose.msra.mxu0 0
      %2163 = vmatprep.mubr.bf16.mxu0 0
      %2164 = vmatmul.mubr.bf16.gmra.mrb[0].mxu0 %v2108
      %v2165 = vpop.f32.mrb[0].mxu0
      %v2166 = vadd.f32 %v590, %v2165
      %v2167 = vpop.f32.mrb[0].mxu0
      %v2168 = vpop.f32.mrb[0].mxu0
      %v2169 = vadd.f32 %v591, %v2168
      %v2170 = vpop.f32.mrb[0].mxu0
      %2171 = vmatprep.mubr.bf16.mxu0 0
      %2172 = vmatmul.mubr.bf16.gmra.mrb[0].mxu0 %v2111
      %v2173 = vpop.f32.mrb[0].mxu0
      %v2174 = vadd.f32 %v592, %v2173
      %v2175 = vpop.f32.mrb[0].mxu0
      %v2176 = vpop.f32.mrb[0].mxu0
      %v2177 = vadd.f32 %v593, %v2176
      %v2178 = vpop.f32.mrb[0].mxu0
      %2179 = vmatprep.mubr.bf16.mxu0 0
      %2180 = vmatmul.mubr.bf16.gmra.mrb[0].mxu0 %v2114
      %v2181 = vpop.f32.mrb[0].mxu0
      %v2182 = vadd.f32 %v594, %v2181
      %v2183 = vpop.f32.mrb[0].mxu0
      %v2184 = vpop.f32.mrb[0].mxu0
      %v2185 = vadd.f32 %v595, %v2184
      %v2186 = vpop.f32.mrb[0].mxu0
      %2187 = vmatprep.mubr.bf16.mxu0 0
      %2188 = vmatmul.mubr.bf16.gmra.mrb[0].mxu0 %v2117
      %v2189 = vpop.f32.mrb[0].mxu0
      %v2190 = vadd.f32 %v596, %v2189
      %v2191 = vpop.f32.mrb[0].mxu0
      %v2192 = vpop.f32.mrb[0].mxu0
      %v2193 = vadd.f32 %v597, %v2192
      %v2194 = vpop.f32.mrb[0].mxu0
      %2195 = vdwg.mxu0
      %v2196 = vsel %vm1035, %v1839, -inf
      %2197 = vmax.xlane.f32.xlu0 %v2196
      %v2198 = vpop.xlane.xlu0 %2197
      %v2199 = vsel %vm1035, %v1842, -inf
      %2200 = vmax.xlane.f32.xlu0 %v2199
      %v2201 = vpop.xlane.xlu0 %2200
      %v2202 = vsel %vm1035, %v1847, -inf
      %2203 = vmax.xlane.f32.xlu0 %v2202
      %v2204 = vpop.xlane.xlu0 %2203
      %v2205 = vsel %vm1035, %v1850, -inf
      %2206 = vmax.xlane.f32.xlu0 %v2205
      %v2207 = vpop.xlane.xlu0 %2206
      %v2208 = vsel %vm1035, %v1855, -inf
      %2209 = vmax.xlane.f32.xlu0 %v2208
      %v2210 = vpop.xlane.xlu0 %2209
      %v2211 = vsel %vm1035, %v1858, -inf
      %2212 = vmax.xlane.f32.xlu0 %v2211
      %v2213 = vpop.xlane.xlu0 %2212
      %v2214 = vsel %vm1035, %v1863, -inf
      %2215 = vmax.xlane.f32.xlu0 %v2214
      %v2216 = vpop.xlane.xlu0 %2215
      %v2217 = vsel %vm1035, %v1866, -inf
      %2218 = vmax.xlane.f32.xlu0 %v2217
      %v2219 = vpop.xlane.xlu0 %2218
      %v2220 = vsel %vm1035, %v1948, -inf
      %2221 = vmax.xlane.f32.xlu0 %v2220
      %v2222 = vpop.xlane.xlu0 %2221
      %v2223 = vsel %vm1035, %v1951, -inf
      %2224 = vmax.xlane.f32.xlu0 %v2223
      %v2225 = vpop.xlane.xlu0 %2224
      %v2226 = vsel %vm1035, %v1956, -inf
      %2227 = vmax.xlane.f32.xlu0 %v2226
      %v2228 = vpop.xlane.xlu0 %2227
      %v2229 = vsel %vm1035, %v1959, -inf
      %2230 = vmax.xlane.f32.xlu0 %v2229
      %v2231 = vpop.xlane.xlu0 %2230
      %v2232 = vsel %vm1035, %v1964, -inf
      %2233 = vmax.xlane.f32.xlu0 %v2232
      %v2234 = vpop.xlane.xlu0 %2233
      %v2235 = vsel %vm1035, %v1967, -inf
      %2236 = vmax.xlane.f32.xlu0 %v2235
      %v2237 = vpop.xlane.xlu0 %2236
      %v2238 = vsel %vm1035, %v1972, -inf
      %2239 = vmax.xlane.f32.xlu0 %v2238
      %v2240 = vpop.xlane.xlu0 %2239
      %v2241 = vsel %vm1035, %v1975, -inf
      %2242 = vmax.xlane.f32.xlu0 %v2241
      %v2243 = vpop.xlane.xlu0 %2242
      %v2244 = vsel %vm1035, %v2057, -inf
      %2245 = vmax.xlane.f32.xlu0 %v2244
      %v2246 = vpop.xlane.xlu0 %2245
      %v2247 = vsel %vm1035, %v2060, -inf
      %2248 = vmax.xlane.f32.xlu0 %v2247
      %v2249 = vpop.xlane.xlu0 %2248
      %v2250 = vsel %vm1035, %v2065, -inf
      %2251 = vmax.xlane.f32.xlu0 %v2250
      %v2252 = vpop.xlane.xlu0 %2251
      %v2253 = vsel %vm1035, %v2068, -inf
      %2254 = vmax.xlane.f32.xlu0 %v2253
      %v2255 = vpop.xlane.xlu0 %2254
      %v2256 = vsel %vm1035, %v2073, -inf
      %2257 = vmax.xlane.f32.xlu0 %v2256
      %v2258 = vpop.xlane.xlu0 %2257
      %v2259 = vsel %vm1035, %v2076, -inf
      %2260 = vmax.xlane.f32.xlu0 %v2259
      %v2261 = vpop.xlane.xlu0 %2260
      %v2262 = vsel %vm1035, %v2081, -inf
      %2263 = vmax.xlane.f32.xlu0 %v2262
      %v2264 = vpop.xlane.xlu0 %2263
      %v2265 = vsel %vm1035, %v2084, -inf
      %2266 = vmax.xlane.f32.xlu0 %v2265
      %v2267 = vpop.xlane.xlu0 %2266
      %v2268 = vsel %vm1035, %v2166, -inf
      %2269 = vmax.xlane.f32.xlu0 %v2268
      %v2270 = vpop.xlane.xlu0 %2269
      %v2271 = vsel %vm1035, %v2169, -inf
      %2272 = vmax.xlane.f32.xlu0 %v2271
      %v2273 = vpop.xlane.xlu0 %2272
      %v2274 = vsel %vm1035, %v2174, -inf
      %2275 = vmax.xlane.f32.xlu0 %v2274
      %v2276 = vpop.xlane.xlu0 %2275
      %v2277 = vsel %vm1035, %v2177, -inf
      %2278 = vmax.xlane.f32.xlu0 %v2277
      %v2279 = vpop.xlane.xlu0 %2278
      %v2280 = vsel %vm1035, %v2182, -inf
      %2281 = vmax.xlane.f32.xlu0 %v2280
      %v2282 = vpop.xlane.xlu0 %2281
      %v2283 = vsel %vm1035, %v2185, -inf
      %2284 = vmax.xlane.f32.xlu0 %v2283
      %v2285 = vpop.xlane.xlu0 %2284
      %v2286 = vsel %vm1035, %v2190, -inf
      %2287 = vmax.xlane.f32.xlu0 %v2286
      %v2288 = vpop.xlane.xlu0 %2287
      %v2289 = vsel %vm1035, %v2193, -inf
      %2290 = vmax.xlane.f32.xlu0 %v2289
      %v2291 = vpop.xlane.xlu0 %2290
      %v2292 = vsub.f32 %v1839, %v2198
      %v2293 = vsub.f32 %v1842, %v2201
      %v2294 = vsub.f32 %v1847, %v2204
      %v2295 = vsub.f32 %v1850, %v2207
      %v2296 = vsub.f32 %v1855, %v2210
      %v2297 = vsub.f32 %v1858, %v2213
      %v2298 = vsub.f32 %v1863, %v2216
      %v2299 = vsub.f32 %v1866, %v2219
      %v2300 = vsub.f32 %v1948, %v2222
      %v2301 = vsub.f32 %v1951, %v2225
      %v2302 = vsub.f32 %v1956, %v2228
      %v2303 = vsub.f32 %v1959, %v2231
      %v2304 = vsub.f32 %v1964, %v2234
      %v2305 = vsub.f32 %v1967, %v2237
      %v2306 = vsub.f32 %v1972, %v2240
      %v2307 = vsub.f32 %v1975, %v2243
      %v2308 = vsub.f32 %v2057, %v2246
      %v2309 = vsub.f32 %v2060, %v2249
      %v2310 = vsub.f32 %v2065, %v2252
      %v2311 = vsub.f32 %v2068, %v2255
      %v2312 = vsub.f32 %v2073, %v2258
      %v2313 = vsub.f32 %v2076, %v2261
      %v2314 = vsub.f32 %v2081, %v2264
      %v2315 = vsub.f32 %v2084, %v2267
      %v2316 = vsub.f32 %v2166, %v2270
      %v2317 = vsub.f32 %v2169, %v2273
      %v2318 = vsub.f32 %v2174, %v2276
      %v2319 = vsub.f32 %v2177, %v2279
      %v2320 = vsub.f32 %v2182, %v2282
      %v2321 = vsub.f32 %v2185, %v2285
      %v2322 = vsub.f32 %v2190, %v2288
      %v2323 = vsub.f32 %v2193, %v2291
      %v2324 = vmul.f32 %v2292, 1.442695
      %v2325 = vpow.pop %v2324
      %v2326 = vmul.f32 %v2293, 1.442695
      %v2327 = vpow.pop %v2326
      %v2328 = vmul.f32 %v2294, 1.442695
      %v2329 = vpow.pop %v2328
      %v2330 = vmul.f32 %v2295, 1.442695
      %v2331 = vpow.pop %v2330
      %v2332 = vmul.f32 %v2296, 1.442695
      %v2333 = vpow.pop %v2332
      %v2334 = vmul.f32 %v2297, 1.442695
      %v2335 = vpow.pop %v2334
      %v2336 = vmul.f32 %v2298, 1.442695
      %v2337 = vpow.pop %v2336
      %v2338 = vmul.f32 %v2299, 1.442695
      %v2339 = vpow.pop %v2338
      %v2340 = vmul.f32 %v2300, 1.442695
      %v2341 = vpow.pop %v2340
      %v2342 = vmul.f32 %v2301, 1.442695
      %v2343 = vpow.pop %v2342
      %v2344 = vmul.f32 %v2302, 1.442695
      %v2345 = vpow.pop %v2344
      %v2346 = vmul.f32 %v2303, 1.442695
      %v2347 = vpow.pop %v2346
      %v2348 = vmul.f32 %v2304, 1.442695
      %v2349 = vpow.pop %v2348
      %v2350 = vmul.f32 %v2305, 1.442695
      %v2351 = vpow.pop %v2350
      %v2352 = vmul.f32 %v2306, 1.442695
      %v2353 = vpow.pop %v2352
      %v2354 = vmul.f32 %v2307, 1.442695
      %v2355 = vpow.pop %v2354
      %v2356 = vmul.f32 %v2308, 1.442695
      %v2357 = vpow.pop %v2356
      %v2358 = vmul.f32 %v2309, 1.442695
      %v2359 = vpow.pop %v2358
      %v2360 = vmul.f32 %v2310, 1.442695
      %v2361 = vpow.pop %v2360
      %v2362 = vmul.f32 %v2311, 1.442695
      %v2363 = vpow.pop %v2362
      %v2364 = vmul.f32 %v2312, 1.442695
      %v2365 = vpow.pop %v2364
      %v2366 = vmul.f32 %v2313, 1.442695
      %v2367 = vpow.pop %v2366
      %v2368 = vmul.f32 %v2314, 1.442695
      %v2369 = vpow.pop %v2368
      %v2370 = vmul.f32 %v2315, 1.442695
      %v2371 = vpow.pop %v2370
      %v2372 = vmul.f32 %v2316, 1.442695
      %v2373 = vpow.pop %v2372
      %v2374 = vmul.f32 %v2317, 1.442695
      %v2375 = vpow.pop %v2374
      %v2376 = vmul.f32 %v2318, 1.442695
      %v2377 = vpow.pop %v2376
      %v2378 = vmul.f32 %v2319, 1.442695
      %v2379 = vpow.pop %v2378
      %v2380 = vmul.f32 %v2320, 1.442695
      %v2381 = vpow.pop %v2380
      %v2382 = vmul.f32 %v2321, 1.442695
      %v2383 = vpow.pop %v2382
      %v2384 = vmul.f32 %v2322, 1.442695
      %v2385 = vpow.pop %v2384
      %v2386 = vmul.f32 %v2323, 1.442695
      %v2387 = vpow.pop %v2386
      %v2388 = vsel %vm1035, %v2325, 0.0
      %2389 = vadd.xlane.f32.xlu0 %v2388
      %v2390 = vpop.xlane.xlu0 %2389
      %v2391 = vsel %vm1035, %v2327, 0.0
      %2392 = vadd.xlane.f32.xlu0 %v2391
      %v2393 = vpop.xlane.xlu0 %2392
      %v2394 = vsel %vm1035, %v2329, 0.0
      %2395 = vadd.xlane.f32.xlu0 %v2394
      %v2396 = vpop.xlane.xlu0 %2395
      %v2397 = vsel %vm1035, %v2331, 0.0
      %2398 = vadd.xlane.f32.xlu0 %v2397
      %v2399 = vpop.xlane.xlu0 %2398
      %v2400 = vsel %vm1035, %v2333, 0.0
      %2401 = vadd.xlane.f32.xlu0 %v2400
      %v2402 = vpop.xlane.xlu0 %2401
      %v2403 = vsel %vm1035, %v2335, 0.0
      %2404 = vadd.xlane.f32.xlu0 %v2403
      %v2405 = vpop.xlane.xlu0 %2404
      %v2406 = vsel %vm1035, %v2337, 0.0
      %2407 = vadd.xlane.f32.xlu0 %v2406
      %v2408 = vpop.xlane.xlu0 %2407
      %v2409 = vsel %vm1035, %v2339, 0.0
      %2410 = vadd.xlane.f32.xlu0 %v2409
      %v2411 = vpop.xlane.xlu0 %2410
      %v2412 = vsel %vm1035, %v2341, 0.0
      %2413 = vadd.xlane.f32.xlu0 %v2412
      %v2414 = vpop.xlane.xlu0 %2413
      %v2415 = vsel %vm1035, %v2343, 0.0
      %2416 = vadd.xlane.f32.xlu0 %v2415
      %v2417 = vpop.xlane.xlu0 %2416
      %v2418 = vsel %vm1035, %v2345, 0.0
      %2419 = vadd.xlane.f32.xlu0 %v2418
      %v2420 = vpop.xlane.xlu0 %2419
      %v2421 = vsel %vm1035, %v2347, 0.0
      %2422 = vadd.xlane.f32.xlu0 %v2421
      %v2423 = vpop.xlane.xlu0 %2422
      %v2424 = vsel %vm1035, %v2349, 0.0
      %2425 = vadd.xlane.f32.xlu0 %v2424
      %v2426 = vpop.xlane.xlu0 %2425
      %v2427 = vsel %vm1035, %v2351, 0.0
      %2428 = vadd.xlane.f32.xlu0 %v2427
      %v2429 = vpop.xlane.xlu0 %2428
      %v2430 = vsel %vm1035, %v2353, 0.0
      %2431 = vadd.xlane.f32.xlu0 %v2430
      %v2432 = vpop.xlane.xlu0 %2431
      %v2433 = vsel %vm1035, %v2355, 0.0
      %2434 = vadd.xlane.f32.xlu0 %v2433
      %v2435 = vpop.xlane.xlu0 %2434
      %v2436 = vsel %vm1035, %v2357, 0.0
      %2437 = vadd.xlane.f32.xlu0 %v2436
      %v2438 = vpop.xlane.xlu0 %2437
      %v2439 = vsel %vm1035, %v2359, 0.0
      %2440 = vadd.xlane.f32.xlu0 %v2439
      %v2441 = vpop.xlane.xlu0 %2440
      %v2442 = vsel %vm1035, %v2361, 0.0
      %2443 = vadd.xlane.f32.xlu0 %v2442
      %v2444 = vpop.xlane.xlu0 %2443
      %v2445 = vsel %vm1035, %v2363, 0.0
      %2446 = vadd.xlane.f32.xlu0 %v2445
      %v2447 = vpop.xlane.xlu0 %2446
      %v2448 = vsel %vm1035, %v2365, 0.0
      %2449 = vadd.xlane.f32.xlu0 %v2448
      %v2450 = vpop.xlane.xlu0 %2449
      %v2451 = vsel %vm1035, %v2367, 0.0
      %2452 = vadd.xlane.f32.xlu0 %v2451
      %v2453 = vpop.xlane.xlu0 %2452
      %v2454 = vsel %vm1035, %v2369, 0.0
      %2455 = vadd.xlane.f32.xlu0 %v2454
      %v2456 = vpop.xlane.xlu0 %2455
      %v2457 = vsel %vm1035, %v2371, 0.0
      %2458 = vadd.xlane.f32.xlu0 %v2457
      %v2459 = vpop.xlane.xlu0 %2458
      %v2460 = vsel %vm1035, %v2373, 0.0
      %2461 = vadd.xlane.f32.xlu0 %v2460
      %v2462 = vpop.xlane.xlu0 %2461
      %v2463 = vsel %vm1035, %v2375, 0.0
      %2464 = vadd.xlane.f32.xlu0 %v2463
      %v2465 = vpop.xlane.xlu0 %2464
      %v2466 = vsel %vm1035, %v2377, 0.0
      %2467 = vadd.xlane.f32.xlu0 %v2466
      %v2468 = vpop.xlane.xlu0 %2467
      %v2469 = vsel %vm1035, %v2379, 0.0
      %2470 = vadd.xlane.f32.xlu0 %v2469
      %v2471 = vpop.xlane.xlu0 %2470
      %v2472 = vsel %vm1035, %v2381, 0.0
      %2473 = vadd.xlane.f32.xlu0 %v2472
      %v2474 = vpop.xlane.xlu0 %2473
      %v2475 = vsel %vm1035, %v2383, 0.0
      %2476 = vadd.xlane.f32.xlu0 %v2475
      %v2477 = vpop.xlane.xlu0 %2476
      %v2478 = vsel %vm1035, %v2385, 0.0
      %2479 = vadd.xlane.f32.xlu0 %v2478
      %v2480 = vpop.xlane.xlu0 %2479
      %v2481 = vsel %vm1035, %v2387, 0.0
      %2482 = vadd.xlane.f32.xlu0 %v2481
      %v2483 = vpop.xlane.xlu0 %2482
      %v2484 = vrcp.pop %v2390
      %v2485 = vrcp.pop %v2393
      %v2486 = vrcp.pop %v2396
      %v2487 = vrcp.pop %v2399
      %v2488 = vrcp.pop %v2402
      %v2489 = vrcp.pop %v2405
      %v2490 = vrcp.pop %v2408
      %v2491 = vrcp.pop %v2411
      %v2492 = vrcp.pop %v2414
      %v2493 = vrcp.pop %v2417
      %v2494 = vrcp.pop %v2420
      %v2495 = vrcp.pop %v2423
      %v2496 = vrcp.pop %v2426
      %v2497 = vrcp.pop %v2429
      %v2498 = vrcp.pop %v2432
      %v2499 = vrcp.pop %v2435
      %v2500 = vrcp.pop %v2438
      %v2501 = vrcp.pop %v2441
      %v2502 = vrcp.pop %v2444
      %v2503 = vrcp.pop %v2447
      %v2504 = vrcp.pop %v2450
      %v2505 = vrcp.pop %v2453
      %v2506 = vrcp.pop %v2456
      %v2507 = vrcp.pop %v2459
      %v2508 = vrcp.pop %v2462
      %v2509 = vrcp.pop %v2465
      %v2510 = vrcp.pop %v2468
      %v2511 = vrcp.pop %v2471
      %v2512 = vrcp.pop %v2474
      %v2513 = vrcp.pop %v2477
      %v2514 = vrcp.pop %v2480
      %v2515 = vrcp.pop %v2483
      %v2516 = vmul.f32 %v2325, %v2484
      %v2517 = vmul.f32 %v2327, %v2485
      %v2518 = vmul.f32 %v2329, %v2486
      %v2519 = vmul.f32 %v2331, %v2487
      %v2520 = vmul.f32 %v2333, %v2488
      %v2521 = vmul.f32 %v2335, %v2489
      %v2522 = vmul.f32 %v2337, %v2490
      %v2523 = vmul.f32 %v2339, %v2491
      %v2524 = vmul.f32 %v2341, %v2492
      %v2525 = vmul.f32 %v2343, %v2493
      %v2526 = vmul.f32 %v2345, %v2494
      %v2527 = vmul.f32 %v2347, %v2495
      %v2528 = vmul.f32 %v2349, %v2496
      %v2529 = vmul.f32 %v2351, %v2497
      %v2530 = vmul.f32 %v2353, %v2498
      %v2531 = vmul.f32 %v2355, %v2499
      %v2532 = vmul.f32 %v2357, %v2500
      %v2533 = vmul.f32 %v2359, %v2501
      %v2534 = vmul.f32 %v2361, %v2502
      %v2535 = vmul.f32 %v2363, %v2503
      %v2536 = vmul.f32 %v2365, %v2504
      %v2537 = vmul.f32 %v2367, %v2505
      %v2538 = vmul.f32 %v2369, %v2506
      %v2539 = vmul.f32 %v2371, %v2507
      %v2540 = vmul.f32 %v2373, %v2508
      %v2541 = vmul.f32 %v2375, %v2509
      %v2542 = vmul.f32 %v2377, %v2510
      %v2543 = vmul.f32 %v2379, %v2511
      %v2544 = vmul.f32 %v2381, %v2512
      %v2545 = vmul.f32 %v2383, %v2513
      %v2546 = vmul.f32 %v2385, %v2514
      %v2547 = vmul.f32 %v2387, %v2515
      %v2548 = vpack.c.bf16 %v2517, %v2516
      %v2549 = vpack.c.bf16 %v2519, %v2518
      %v2550 = vpack.c.bf16 %v2521, %v2520
      %v2551 = vpack.c.bf16 %v2523, %v2522
      %v2552 = vpack.c.bf16 %v2525, %v2524
      %v2553 = vpack.c.bf16 %v2527, %v2526
      %v2554 = vpack.c.bf16 %v2529, %v2528
      %v2555 = vpack.c.bf16 %v2531, %v2530
      %v2556 = vpack.c.bf16 %v2533, %v2532
      %v2557 = vpack.c.bf16 %v2535, %v2534
      %v2558 = vpack.c.bf16 %v2537, %v2536
      %v2559 = vpack.c.bf16 %v2539, %v2538
      %v2560 = vpack.c.bf16 %v2541, %v2540
      %v2561 = vpack.c.bf16 %v2543, %v2542
      %v2562 = vpack.c.bf16 %v2545, %v2544
      %v2563 = vpack.c.bf16 %v2547, %v2546
      %2564 = vrot.lane.b32.xlu0 %v614, 56
      %v2565 = vpop.permute.xlu0 %2564
      %2566 = vrot.lane.b32.xlu0 %v615, 56
      %v2567 = vpop.permute.xlu0 %2566
      %2568 = vrot.lane.b32.xlu0 %v616, 56
      %v2569 = vpop.permute.xlu0 %2568
      %2570 = vrot.lane.b32.xlu0 %v617, 56
      %v2571 = vpop.permute.xlu0 %2570
      %v2577 = vsel %vm1035, %v2548, 0
      %v2580 = vsel %vm1035, %v2549, 0
      %v2583 = vsel %vm1035, %v2550, 0
      %v2586 = vsel %vm1035, %v2551, 0
      %2588 = vmatprep.subr.bf16.mxu0 0
      %2589 = vmatpush1.bf16.msra.mxu0 %v2565
      %2590 = vmatprep.subr.bf16.mxu0 0
      %2591 = vmatpush1.bf16.msra.mxu0 %v2567
      %2592 = vmatprep.subr.bf16.mxu0 0
      %2593 = vmatpush1.bf16.msra.mxu0 %v2569
      %2594 = vmatprep.subr.bf16.mxu0 0
      %2595 = vmatpush1.bf16.msra.mxu0 %v2571
      %2596 = vmatprep.subr.bf16.mxu0 0
      %2597 = vmatpush1.bf16.msra.mxu0 0
      %2598 = vmatprep.subr.bf16.mxu0 0
      %2599 = vmatpush1.bf16.msra.mxu0 0
      %2600 = vmatprep.subr.bf16.mxu0 0
      %2601 = vmatpush1.bf16.msra.mxu0 0
      %2602 = vmatprep.subr.bf16.mxu0 0
      %2603 = vmatpush1.bf16.msra.mxu0 0
      %2604 = vmatprep.subr.bf16.mxu0 0
      %2605 = vmatpush1.bf16.msra.mxu0 0
      %2606 = vmatprep.subr.bf16.mxu0 0
      %2607 = vmatpush1.bf16.msra.mxu0 0
      %2608 = vmatprep.subr.bf16.mxu0 0
      %2609 = vmatpush1.bf16.msra.mxu0 0
      %2610 = vmatprep.subr.bf16.mxu0 0
      %2611 = vmatpush1.bf16.msra.mxu0 0
      %2612 = vmatprep.subr.bf16.mxu0 0
      %2613 = vmatpush1.bf16.msra.mxu0 0
      %2614 = vmatprep.subr.bf16.mxu0 0
      %2615 = vmatpush1.bf16.msra.mxu0 0
      %2616 = vmatprep.subr.bf16.mxu0 0
      %2617 = vmatpush1.bf16.msra.mxu0 0
      %2618 = vmatprep.subr.bf16.mxu0 0
      %2619 = vmatpush1.bf16.msra.mxu0 0
      %2620 = vmatprep.mubr.bf16.mxu0 0
      %2621 = vmatmul.mubr.bf16.gmra.mrb[0].mxu0 %v2577
      %v2622 = vpop.f32.mrb[0].mxu0
      %v2623 = vadd.f32 0.0, %v2622
      %v2624 = vpop.f32.mrb[0].mxu0
      %v2625 = vpop.f32.mrb[0].mxu0
      %v2626 = vadd.f32 0.0, %v2625
      %v2627 = vpop.f32.mrb[0].mxu0
      %2628 = vmatprep.mubr.bf16.mxu0 0
      %2629 = vmatmul.mubr.bf16.gmra.mrb[0].mxu0 %v2580
      %v2630 = vpop.f32.mrb[0].mxu0
      %v2631 = vadd.f32 0.0, %v2630
      %v2632 = vpop.f32.mrb[0].mxu0
      %v2633 = vpop.f32.mrb[0].mxu0
      %v2634 = vadd.f32 0.0, %v2633
      %v2635 = vpop.f32.mrb[0].mxu0
      %2636 = vmatprep.mubr.bf16.mxu0 0
      %2637 = vmatmul.mubr.bf16.gmra.mrb[0].mxu0 %v2583
      %v2638 = vpop.f32.mrb[0].mxu0
      %v2639 = vadd.f32 0.0, %v2638
      %v2640 = vpop.f32.mrb[0].mxu0
      %v2641 = vpop.f32.mrb[0].mxu0
      %v2642 = vadd.f32 0.0, %v2641
      %v2643 = vpop.f32.mrb[0].mxu0
      %2644 = vmatprep.mubr.bf16.mxu0 0
      %2645 = vmatmul.mubr.bf16.gmra.mrb[0].mxu0 %v2586
      %v2646 = vpop.f32.mrb[0].mxu0
      %v2647 = vadd.f32 0.0, %v2646
      %v2648 = vpop.f32.mrb[0].mxu0
      %v2649 = vpop.f32.mrb[0].mxu0
      %v2650 = vadd.f32 0.0, %v2649
      %v2651 = vpop.f32.mrb[0].mxu0
      %2652 = vdwg.mxu0
      %2653 = vrot.lane.b32.xlu0 %v618, 56
      %v2654 = vpop.permute.xlu0 %2653
      %2655 = vrot.lane.b32.xlu0 %v619, 56
      %v2656 = vpop.permute.xlu0 %2655
      %2657 = vrot.lane.b32.xlu0 %v620, 56
      %v2658 = vpop.permute.xlu0 %2657
      %2659 = vrot.lane.b32.xlu0 %v621, 56
      %v2660 = vpop.permute.xlu0 %2659
      %v2666 = vsel %vm1035, %v2552, 0
      %v2669 = vsel %vm1035, %v2553, 0
      %v2672 = vsel %vm1035, %v2554, 0
      %v2675 = vsel %vm1035, %v2555, 0
      %2677 = vmatprep.subr.bf16.mxu0 0
      %2678 = vmatpush1.bf16.msra.mxu0 %v2654
      %2679 = vmatprep.subr.bf16.mxu0 0
      %2680 = vmatpush1.bf16.msra.mxu0 %v2656
      %2681 = vmatprep.subr.bf16.mxu0 0
      %2682 = vmatpush1.bf16.msra.mxu0 %v2658
      %2683 = vmatprep.subr.bf16.mxu0 0
      %2684 = vmatpush1.bf16.msra.mxu0 %v2660
      %2685 = vmatprep.subr.bf16.mxu0 0
      %2686 = vmatpush1.bf16.msra.mxu0 0
      %2687 = vmatprep.subr.bf16.mxu0 0
      %2688 = vmatpush1.bf16.msra.mxu0 0
      %2689 = vmatprep.subr.bf16.mxu0 0
      %2690 = vmatpush1.bf16.msra.mxu0 0
      %2691 = vmatprep.subr.bf16.mxu0 0
      %2692 = vmatpush1.bf16.msra.mxu0 0
      %2693 = vmatprep.subr.bf16.mxu0 0
      %2694 = vmatpush1.bf16.msra.mxu0 0
      %2695 = vmatprep.subr.bf16.mxu0 0
      %2696 = vmatpush1.bf16.msra.mxu0 0
      %2697 = vmatprep.subr.bf16.mxu0 0
      %2698 = vmatpush1.bf16.msra.mxu0 0
      %2699 = vmatprep.subr.bf16.mxu0 0
      %2700 = vmatpush1.bf16.msra.mxu0 0
      %2701 = vmatprep.subr.bf16.mxu0 0
      %2702 = vmatpush1.bf16.msra.mxu0 0
      %2703 = vmatprep.subr.bf16.mxu0 0
      %2704 = vmatpush1.bf16.msra.mxu0 0
      %2705 = vmatprep.subr.bf16.mxu0 0
      %2706 = vmatpush1.bf16.msra.mxu0 0
      %2707 = vmatprep.subr.bf16.mxu0 0
      %2708 = vmatpush1.bf16.msra.mxu0 0
      %2709 = vmatprep.mubr.bf16.mxu0 0
      %2710 = vmatmul.mubr.bf16.gmra.mrb[0].mxu0 %v2666
      %v2711 = vpop.f32.mrb[0].mxu0
      %v2712 = vadd.f32 0.0, %v2711
      %v2713 = vpop.f32.mrb[0].mxu0
      %v2714 = vpop.f32.mrb[0].mxu0
      %v2715 = vadd.f32 0.0, %v2714
      %v2716 = vpop.f32.mrb[0].mxu0
      %2717 = vmatprep.mubr.bf16.mxu0 0
      %2718 = vmatmul.mubr.bf16.gmra.mrb[0].mxu0 %v2669
      %v2719 = vpop.f32.mrb[0].mxu0
      %v2720 = vadd.f32 0.0, %v2719
      %v2721 = vpop.f32.mrb[0].mxu0
      %v2722 = vpop.f32.mrb[0].mxu0
      %v2723 = vadd.f32 0.0, %v2722
      %v2724 = vpop.f32.mrb[0].mxu0
      %2725 = vmatprep.mubr.bf16.mxu0 0
      %2726 = vmatmul.mubr.bf16.gmra.mrb[0].mxu0 %v2672
      %v2727 = vpop.f32.mrb[0].mxu0
      %v2728 = vadd.f32 0.0, %v2727
      %v2729 = vpop.f32.mrb[0].mxu0
      %v2730 = vpop.f32.mrb[0].mxu0
      %v2731 = vadd.f32 0.0, %v2730
      %v2732 = vpop.f32.mrb[0].mxu0
      %2733 = vmatprep.mubr.bf16.mxu0 0
      %2734 = vmatmul.mubr.bf16.gmra.mrb[0].mxu0 %v2675
      %v2735 = vpop.f32.mrb[0].mxu0
      %v2736 = vadd.f32 0.0, %v2735
      %v2737 = vpop.f32.mrb[0].mxu0
      %v2738 = vpop.f32.mrb[0].mxu0
      %v2739 = vadd.f32 0.0, %v2738
      %v2740 = vpop.f32.mrb[0].mxu0
      %2741 = vdwg.mxu0
      %2742 = vrot.lane.b32.xlu0 %v622, 56
      %v2743 = vpop.permute.xlu0 %2742
      %2744 = vrot.lane.b32.xlu0 %v623, 56
      %v2745 = vpop.permute.xlu0 %2744
      %2746 = vrot.lane.b32.xlu0 %v624, 56
      %v2747 = vpop.permute.xlu0 %2746
      %2748 = vrot.lane.b32.xlu0 %v625, 56
      %v2749 = vpop.permute.xlu0 %2748
      %v2755 = vsel %vm1035, %v2556, 0
      %v2758 = vsel %vm1035, %v2557, 0
      %v2761 = vsel %vm1035, %v2558, 0
      %v2764 = vsel %vm1035, %v2559, 0
      %2766 = vmatprep.subr.bf16.mxu0 0
      %2767 = vmatpush1.bf16.msra.mxu0 %v2743
      %2768 = vmatprep.subr.bf16.mxu0 0
      %2769 = vmatpush1.bf16.msra.mxu0 %v2745
      %2770 = vmatprep.subr.bf16.mxu0 0
      %2771 = vmatpush1.bf16.msra.mxu0 %v2747
      %2772 = vmatprep.subr.bf16.mxu0 0
      %2773 = vmatpush1.bf16.msra.mxu0 %v2749
      %2774 = vmatprep.subr.bf16.mxu0 0
      %2775 = vmatpush1.bf16.msra.mxu0 0
      %2776 = vmatprep.subr.bf16.mxu0 0
      %2777 = vmatpush1.bf16.msra.mxu0 0
      %2778 = vmatprep.subr.bf16.mxu0 0
      %2779 = vmatpush1.bf16.msra.mxu0 0
      %2780 = vmatprep.subr.bf16.mxu0 0
      %2781 = vmatpush1.bf16.msra.mxu0 0
      %2782 = vmatprep.subr.bf16.mxu0 0
      %2783 = vmatpush1.bf16.msra.mxu0 0
      %2784 = vmatprep.subr.bf16.mxu0 0
      %2785 = vmatpush1.bf16.msra.mxu0 0
      %2786 = vmatprep.subr.bf16.mxu0 0
      %2787 = vmatpush1.bf16.msra.mxu0 0
      %2788 = vmatprep.subr.bf16.mxu0 0
      %2789 = vmatpush1.bf16.msra.mxu0 0
      %2790 = vmatprep.subr.bf16.mxu0 0
      %2791 = vmatpush1.bf16.msra.mxu0 0
      %2792 = vmatprep.subr.bf16.mxu0 0
      %2793 = vmatpush1.bf16.msra.mxu0 0
      %2794 = vmatprep.subr.bf16.mxu0 0
      %2795 = vmatpush1.bf16.msra.mxu0 0
      %2796 = vmatprep.subr.bf16.mxu0 0
      %2797 = vmatpush1.bf16.msra.mxu0 0
      %2798 = vmatprep.mubr.bf16.mxu0 0
      %2799 = vmatmul.mubr.bf16.gmra.mrb[0].mxu0 %v2755
      %v2800 = vpop.f32.mrb[0].mxu0
      %v2801 = vadd.f32 0.0, %v2800
      %v2802 = vpop.f32.mrb[0].mxu0
      %v2803 = vpop.f32.mrb[0].mxu0
      %v2804 = vadd.f32 0.0, %v2803
      %v2805 = vpop.f32.mrb[0].mxu0
      %2806 = vmatprep.mubr.bf16.mxu0 0
      %2807 = vmatmul.mubr.bf16.gmra.mrb[0].mxu0 %v2758
      %v2808 = vpop.f32.mrb[0].mxu0
      %v2809 = vadd.f32 0.0, %v2808
      %v2810 = vpop.f32.mrb[0].mxu0
      %v2811 = vpop.f32.mrb[0].mxu0
      %v2812 = vadd.f32 0.0, %v2811
      %v2813 = vpop.f32.mrb[0].mxu0
      %2814 = vmatprep.mubr.bf16.mxu0 0
      %2815 = vmatmul.mubr.bf16.gmra.mrb[0].mxu0 %v2761
      %v2816 = vpop.f32.mrb[0].mxu0
      %v2817 = vadd.f32 0.0, %v2816
      %v2818 = vpop.f32.mrb[0].mxu0
      %v2819 = vpop.f32.mrb[0].mxu0
      %v2820 = vadd.f32 0.0, %v2819
      %v2821 = vpop.f32.mrb[0].mxu0
      %2822 = vmatprep.mubr.bf16.mxu0 0
      %2823 = vmatmul.mubr.bf16.gmra.mrb[0].mxu0 %v2764
      %v2824 = vpop.f32.mrb[0].mxu0
      %v2825 = vadd.f32 0.0, %v2824
      %v2826 = vpop.f32.mrb[0].mxu0
      %v2827 = vpop.f32.mrb[0].mxu0
      %v2828 = vadd.f32 0.0, %v2827
      %v2829 = vpop.f32.mrb[0].mxu0
      %2830 = vdwg.mxu0
      %2831 = vrot.lane.b32.xlu0 %v626, 56
      %v2832 = vpop.permute.xlu0 %2831
      %2833 = vrot.lane.b32.xlu0 %v627, 56
      %v2834 = vpop.permute.xlu0 %2833
      %2835 = vrot.lane.b32.xlu0 %v628, 56
      %v2836 = vpop.permute.xlu0 %2835
      %2837 = vrot.lane.b32.xlu0 %v629, 56
      %v2838 = vpop.permute.xlu0 %2837
      %v2844 = vsel %vm1035, %v2560, 0
      %v2847 = vsel %vm1035, %v2561, 0
      %v2850 = vsel %vm1035, %v2562, 0
      %v2853 = vsel %vm1035, %v2563, 0
      %2855 = vmatprep.subr.bf16.mxu0 0
      %2856 = vmatpush1.bf16.msra.mxu0 %v2832
      %2857 = vmatprep.subr.bf16.mxu0 0
      %2858 = vmatpush1.bf16.msra.mxu0 %v2834
      %2859 = vmatprep.subr.bf16.mxu0 0
      %2860 = vmatpush1.bf16.msra.mxu0 %v2836
      %2861 = vmatprep.subr.bf16.mxu0 0
      %2862 = vmatpush1.bf16.msra.mxu0 %v2838
      %2863 = vmatprep.subr.bf16.mxu0 0
      %2864 = vmatpush1.bf16.msra.mxu0 0
      %2865 = vmatprep.subr.bf16.mxu0 0
      %2866 = vmatpush1.bf16.msra.mxu0 0
      %2867 = vmatprep.subr.bf16.mxu0 0
      %2868 = vmatpush1.bf16.msra.mxu0 0
      %2869 = vmatprep.subr.bf16.mxu0 0
      %2870 = vmatpush1.bf16.msra.mxu0 0
      %2871 = vmatprep.subr.bf16.mxu0 0
      %2872 = vmatpush1.bf16.msra.mxu0 0
      %2873 = vmatprep.subr.bf16.mxu0 0
      %2874 = vmatpush1.bf16.msra.mxu0 0
      %2875 = vmatprep.subr.bf16.mxu0 0
      %2876 = vmatpush1.bf16.msra.mxu0 0
      %2877 = vmatprep.subr.bf16.mxu0 0
      %2878 = vmatpush1.bf16.msra.mxu0 0
      %2879 = vmatprep.subr.bf16.mxu0 0
      %2880 = vmatpush1.bf16.msra.mxu0 0
      %2881 = vmatprep.subr.bf16.mxu0 0
      %2882 = vmatpush1.bf16.msra.mxu0 0
      %2883 = vmatprep.subr.bf16.mxu0 0
      %2884 = vmatpush1.bf16.msra.mxu0 0
      %2885 = vmatprep.subr.bf16.mxu0 0
      %2886 = vmatpush1.bf16.msra.mxu0 0
      %2887 = vmatprep.mubr.bf16.mxu0 0
      %2888 = vmatmul.mubr.bf16.gmra.mrb[0].mxu0 %v2844
      %v2889 = vpop.f32.mrb[0].mxu0
      %v2890 = vadd.f32 0.0, %v2889
      %v2891 = vpop.f32.mrb[0].mxu0
      %v2892 = vpop.f32.mrb[0].mxu0
      %v2893 = vadd.f32 0.0, %v2892
      %v2894 = vpop.f32.mrb[0].mxu0
      %2895 = vmatprep.mubr.bf16.mxu0 0
      %2896 = vmatmul.mubr.bf16.gmra.mrb[0].mxu0 %v2847
      %v2897 = vpop.f32.mrb[0].mxu0
      %v2898 = vadd.f32 0.0, %v2897
      %v2899 = vpop.f32.mrb[0].mxu0
      %v2900 = vpop.f32.mrb[0].mxu0
      %v2901 = vadd.f32 0.0, %v2900
      %v2902 = vpop.f32.mrb[0].mxu0
      %2903 = vmatprep.mubr.bf16.mxu0 0
      %2904 = vmatmul.mubr.bf16.gmra.mrb[0].mxu0 %v2850
      %v2905 = vpop.f32.mrb[0].mxu0
      %v2906 = vadd.f32 0.0, %v2905
      %v2907 = vpop.f32.mrb[0].mxu0
      %v2908 = vpop.f32.mrb[0].mxu0
      %v2909 = vadd.f32 0.0, %v2908
      %v2910 = vpop.f32.mrb[0].mxu0
      %2911 = vmatprep.mubr.bf16.mxu0 0
      %2912 = vmatmul.mubr.bf16.gmra.mrb[0].mxu0 %v2853
      %v2913 = vpop.f32.mrb[0].mxu0
      %v2914 = vadd.f32 0.0, %v2913
      %v2915 = vpop.f32.mrb[0].mxu0
      %v2916 = vpop.f32.mrb[0].mxu0
      %v2917 = vadd.f32 0.0, %v2916
      %v2918 = vpop.f32.mrb[0].mxu0
      %2919 = vdwg.mxu0
      %2920 = vrot.lane.b32.xlu0 %v598, 112
      %v2921 = vpop.permute.xlu0 %2920
      %2922 = vrot.lane.b32.xlu0 %v599, 112
      %v2923 = vpop.permute.xlu0 %2922
      %2924 = vrot.lane.b32.xlu0 %v600, 112
      %v2925 = vpop.permute.xlu0 %2924
      %2926 = vrot.lane.b32.xlu0 %v601, 112
      %v2927 = vpop.permute.xlu0 %2926
      %2928 = vrot.lane.b32.xlu0 %v614, 80
      %v2929 = vpop.permute.xlu0 %2928
      %2930 = vrot.lane.b32.xlu0 %v615, 80
      %v2931 = vpop.permute.xlu0 %2930
      %2932 = vrot.lane.b32.xlu0 %v616, 80
      %v2933 = vpop.permute.xlu0 %2932
      %2934 = vrot.lane.b32.xlu0 %v617, 80
      %v2935 = vpop.permute.xlu0 %2934
      %v2937 = vsel %vm642, %v2921, 0
      %v2940 = vsel %vm642, %v2923, 0
      %v2943 = vsel %vm642, %v2925, 0
      %v2946 = vsel %vm642, %v2927, 0
      %v2949 = vsel %vm642, %v2929, 0
      %v2952 = vsel %vm642, %v2931, 0
      %v2955 = vsel %vm642, %v2933, 0
      %v2958 = vsel %vm642, %v2935, 0
      %2960 = vmatprep.subr.bf16.mxu0 0
      %2961 = vmatpush1.bf16.xpose.msra.mxu0 %v2949
      %2962 = vmatprep.subr.bf16.mxu0 0
      %2963 = vmatpush1.bf16.xpose.msra.mxu0 %v2952
      %2964 = vmatprep.subr.bf16.mxu0 0
      %2965 = vmatpush1.bf16.xpose.msra.mxu0 %v2955
      %2966 = vmatprep.subr.bf16.mxu0 0
      %2967 = vmatpush1.bf16.xpose.msra.mxu0 %v2958
      %2968 = vmatprep.subr.bf16.mxu0 0
      %2969 = vmatpush1.bf16.xpose.msra.mxu0 0
      %2970 = vmatprep.subr.bf16.mxu0 0
      %2971 = vmatpush1.bf16.xpose.msra.mxu0 0
      %2972 = vmatprep.subr.bf16.mxu0 0
      %2973 = vmatpush1.bf16.xpose.msra.mxu0 0
      %2974 = vmatprep.subr.bf16.mxu0 0
      %2975 = vmatpush1.bf16.xpose.msra.mxu0 0
      %2976 = vmatprep.subr.bf16.mxu0 0
      %2977 = vmatpush1.bf16.xpose.msra.mxu0 0
      %2978 = vmatprep.subr.bf16.mxu0 0
      %2979 = vmatpush1.bf16.xpose.msra.mxu0 0
      %2980 = vmatprep.subr.bf16.mxu0 0
      %2981 = vmatpush1.bf16.xpose.msra.mxu0 0
      %2982 = vmatprep.subr.bf16.mxu0 0
      %2983 = vmatpush1.bf16.xpose.msra.mxu0 0
      %2984 = vmatprep.subr.bf16.mxu0 0
      %2985 = vmatpush1.bf16.xpose.msra.mxu0 0
      %2986 = vmatprep.subr.bf16.mxu0 0
      %2987 = vmatpush1.bf16.xpose.msra.mxu0 0
      %2988 = vmatprep.subr.bf16.mxu0 0
      %2989 = vmatpush1.bf16.xpose.msra.mxu0 0
      %2990 = vmatprep.subr.bf16.mxu0 0
      %2991 = vmatpush1.bf16.xpose.msra.mxu0 0
      %2992 = vmatprep.mubr.bf16.mxu0 0
      %2993 = vmatmul.mubr.bf16.gmra.mrb[0].mxu0 %v2937
      %v2994 = vpop.f32.mrb[0].mxu0
      %v2995 = vadd.f32 %v566, %v2994
      %v2996 = vpop.f32.mrb[0].mxu0
      %v2997 = vpop.f32.mrb[0].mxu0
      %v2998 = vadd.f32 %v567, %v2997
      %v2999 = vpop.f32.mrb[0].mxu0
      %3000 = vmatprep.mubr.bf16.mxu0 0
      %3001 = vmatmul.mubr.bf16.gmra.mrb[0].mxu0 %v2940
      %v3002 = vpop.f32.mrb[0].mxu0
      %v3003 = vadd.f32 %v568, %v3002
      %v3004 = vpop.f32.mrb[0].mxu0
      %v3005 = vpop.f32.mrb[0].mxu0
      %v3006 = vadd.f32 %v569, %v3005
      %v3007 = vpop.f32.mrb[0].mxu0
      %3008 = vmatprep.mubr.bf16.mxu0 0
      %3009 = vmatmul.mubr.bf16.gmra.mrb[0].mxu0 %v2943
      %v3010 = vpop.f32.mrb[0].mxu0
      %v3011 = vadd.f32 %v570, %v3010
      %v3012 = vpop.f32.mrb[0].mxu0
      %v3013 = vpop.f32.mrb[0].mxu0
      %v3014 = vadd.f32 %v571, %v3013
      %v3015 = vpop.f32.mrb[0].mxu0
      %3016 = vmatprep.mubr.bf16.mxu0 0
      %3017 = vmatmul.mubr.bf16.gmra.mrb[0].mxu0 %v2946
      %v3018 = vpop.f32.mrb[0].mxu0
      %v3019 = vadd.f32 %v572, %v3018
      %v3020 = vpop.f32.mrb[0].mxu0
      %v3021 = vpop.f32.mrb[0].mxu0
      %v3022 = vadd.f32 %v573, %v3021
      %v3023 = vpop.f32.mrb[0].mxu0
      %3024 = vdwg.mxu0
      %3025 = vrot.lane.b32.xlu0 %v602, 112
      %v3026 = vpop.permute.xlu0 %3025
      %3027 = vrot.lane.b32.xlu0 %v603, 112
      %v3028 = vpop.permute.xlu0 %3027
      %3029 = vrot.lane.b32.xlu0 %v604, 112
      %v3030 = vpop.permute.xlu0 %3029
      %3031 = vrot.lane.b32.xlu0 %v605, 112
      %v3032 = vpop.permute.xlu0 %3031
      %3033 = vrot.lane.b32.xlu0 %v618, 80
      %v3034 = vpop.permute.xlu0 %3033
      %3035 = vrot.lane.b32.xlu0 %v619, 80
      %v3036 = vpop.permute.xlu0 %3035
      %3037 = vrot.lane.b32.xlu0 %v620, 80
      %v3038 = vpop.permute.xlu0 %3037
      %3039 = vrot.lane.b32.xlu0 %v621, 80
      %v3040 = vpop.permute.xlu0 %3039
      %v3042 = vsel %vm642, %v3026, 0
      %v3045 = vsel %vm642, %v3028, 0
      %v3048 = vsel %vm642, %v3030, 0
      %v3051 = vsel %vm642, %v3032, 0
      %v3054 = vsel %vm642, %v3034, 0
      %v3057 = vsel %vm642, %v3036, 0
      %v3060 = vsel %vm642, %v3038, 0
      %v3063 = vsel %vm642, %v3040, 0
      %3065 = vmatprep.subr.bf16.mxu0 0
      %3066 = vmatpush1.bf16.xpose.msra.mxu0 %v3054
      %3067 = vmatprep.subr.bf16.mxu0 0
      %3068 = vmatpush1.bf16.xpose.msra.mxu0 %v3057
      %3069 = vmatprep.subr.bf16.mxu0 0
      %3070 = vmatpush1.bf16.xpose.msra.mxu0 %v3060
      %3071 = vmatprep.subr.bf16.mxu0 0
      %3072 = vmatpush1.bf16.xpose.msra.mxu0 %v3063
      %3073 = vmatprep.subr.bf16.mxu0 0
      %3074 = vmatpush1.bf16.xpose.msra.mxu0 0
      %3075 = vmatprep.subr.bf16.mxu0 0
      %3076 = vmatpush1.bf16.xpose.msra.mxu0 0
      %3077 = vmatprep.subr.bf16.mxu0 0
      %3078 = vmatpush1.bf16.xpose.msra.mxu0 0
      %3079 = vmatprep.subr.bf16.mxu0 0
      %3080 = vmatpush1.bf16.xpose.msra.mxu0 0
      %3081 = vmatprep.subr.bf16.mxu0 0
      %3082 = vmatpush1.bf16.xpose.msra.mxu0 0
      %3083 = vmatprep.subr.bf16.mxu0 0
      %3084 = vmatpush1.bf16.xpose.msra.mxu0 0
      %3085 = vmatprep.subr.bf16.mxu0 0
      %3086 = vmatpush1.bf16.xpose.msra.mxu0 0
      %3087 = vmatprep.subr.bf16.mxu0 0
      %3088 = vmatpush1.bf16.xpose.msra.mxu0 0
      %3089 = vmatprep.subr.bf16.mxu0 0
      %3090 = vmatpush1.bf16.xpose.msra.mxu0 0
      %3091 = vmatprep.subr.bf16.mxu0 0
      %3092 = vmatpush1.bf16.xpose.msra.mxu0 0
      %3093 = vmatprep.subr.bf16.mxu0 0
      %3094 = vmatpush1.bf16.xpose.msra.mxu0 0
      %3095 = vmatprep.subr.bf16.mxu0 0
      %3096 = vmatpush1.bf16.xpose.msra.mxu0 0
      %3097 = vmatprep.mubr.bf16.mxu0 0
      %3098 = vmatmul.mubr.bf16.gmra.mrb[0].mxu0 %v3042
      %v3099 = vpop.f32.mrb[0].mxu0
      %v3100 = vadd.f32 %v574, %v3099
      %v3101 = vpop.f32.mrb[0].mxu0
      %v3102 = vpop.f32.mrb[0].mxu0
      %v3103 = vadd.f32 %v575, %v3102
      %v3104 = vpop.f32.mrb[0].mxu0
      %3105 = vmatprep.mubr.bf16.mxu0 0
      %3106 = vmatmul.mubr.bf16.gmra.mrb[0].mxu0 %v3045
      %v3107 = vpop.f32.mrb[0].mxu0
      %v3108 = vadd.f32 %v576, %v3107
      %v3109 = vpop.f32.mrb[0].mxu0
      %v3110 = vpop.f32.mrb[0].mxu0
      %v3111 = vadd.f32 %v577, %v3110
      %v3112 = vpop.f32.mrb[0].mxu0
      %3113 = vmatprep.mubr.bf16.mxu0 0
      %3114 = vmatmul.mubr.bf16.gmra.mrb[0].mxu0 %v3048
      %v3115 = vpop.f32.mrb[0].mxu0
      %v3116 = vadd.f32 %v578, %v3115
      %v3117 = vpop.f32.mrb[0].mxu0
      %v3118 = vpop.f32.mrb[0].mxu0
      %v3119 = vadd.f32 %v579, %v3118
      %v3120 = vpop.f32.mrb[0].mxu0
      %3121 = vmatprep.mubr.bf16.mxu0 0
      %3122 = vmatmul.mubr.bf16.gmra.mrb[0].mxu0 %v3051
      %v3123 = vpop.f32.mrb[0].mxu0
      %v3124 = vadd.f32 %v580, %v3123
      %v3125 = vpop.f32.mrb[0].mxu0
      %v3126 = vpop.f32.mrb[0].mxu0
      %v3127 = vadd.f32 %v581, %v3126
      %v3128 = vpop.f32.mrb[0].mxu0
      %3129 = vdwg.mxu0
      %3130 = vrot.lane.b32.xlu0 %v606, 112
      %v3131 = vpop.permute.xlu0 %3130
      %3132 = vrot.lane.b32.xlu0 %v607, 112
      %v3133 = vpop.permute.xlu0 %3132
      %3134 = vrot.lane.b32.xlu0 %v608, 112
      %v3135 = vpop.permute.xlu0 %3134
      %3136 = vrot.lane.b32.xlu0 %v609, 112
      %v3137 = vpop.permute.xlu0 %3136
      %3138 = vrot.lane.b32.xlu0 %v622, 80
      %v3139 = vpop.permute.xlu0 %3138
      %3140 = vrot.lane.b32.xlu0 %v623, 80
      %v3141 = vpop.permute.xlu0 %3140
      %3142 = vrot.lane.b32.xlu0 %v624, 80
      %v3143 = vpop.permute.xlu0 %3142
      %3144 = vrot.lane.b32.xlu0 %v625, 80
      %v3145 = vpop.permute.xlu0 %3144
      %v3147 = vsel %vm642, %v3131, 0
      %v3150 = vsel %vm642, %v3133, 0
      %v3153 = vsel %vm642, %v3135, 0
      %v3156 = vsel %vm642, %v3137, 0
      %v3159 = vsel %vm642, %v3139, 0
      %v3162 = vsel %vm642, %v3141, 0
      %v3165 = vsel %vm642, %v3143, 0
      %v3168 = vsel %vm642, %v3145, 0
      %3170 = vmatprep.subr.bf16.mxu0 0
      %3171 = vmatpush1.bf16.xpose.msra.mxu0 %v3159
      %3172 = vmatprep.subr.bf16.mxu0 0
      %3173 = vmatpush1.bf16.xpose.msra.mxu0 %v3162
      %3174 = vmatprep.subr.bf16.mxu0 0
      %3175 = vmatpush1.bf16.xpose.msra.mxu0 %v3165
      %3176 = vmatprep.subr.bf16.mxu0 0
      %3177 = vmatpush1.bf16.xpose.msra.mxu0 %v3168
      %3178 = vmatprep.subr.bf16.mxu0 0
      %3179 = vmatpush1.bf16.xpose.msra.mxu0 0
      %3180 = vmatprep.subr.bf16.mxu0 0
      %3181 = vmatpush1.bf16.xpose.msra.mxu0 0
      %3182 = vmatprep.subr.bf16.mxu0 0
      %3183 = vmatpush1.bf16.xpose.msra.mxu0 0
      %3184 = vmatprep.subr.bf16.mxu0 0
      %3185 = vmatpush1.bf16.xpose.msra.mxu0 0
      %3186 = vmatprep.subr.bf16.mxu0 0
      %3187 = vmatpush1.bf16.xpose.msra.mxu0 0
      %3188 = vmatprep.subr.bf16.mxu0 0
      %3189 = vmatpush1.bf16.xpose.msra.mxu0 0
      %3190 = vmatprep.subr.bf16.mxu0 0
      %3191 = vmatpush1.bf16.xpose.msra.mxu0 0
      %3192 = vmatprep.subr.bf16.mxu0 0
      %3193 = vmatpush1.bf16.xpose.msra.mxu0 0
      %3194 = vmatprep.subr.bf16.mxu0 0
      %3195 = vmatpush1.bf16.xpose.msra.mxu0 0
      %3196 = vmatprep.subr.bf16.mxu0 0
      %3197 = vmatpush1.bf16.xpose.msra.mxu0 0
      %3198 = vmatprep.subr.bf16.mxu0 0
      %3199 = vmatpush1.bf16.xpose.msra.mxu0 0
      %3200 = vmatprep.subr.bf16.mxu0 0
      %3201 = vmatpush1.bf16.xpose.msra.mxu0 0
      %3202 = vmatprep.mubr.bf16.mxu0 0
      %3203 = vmatmul.mubr.bf16.gmra.mrb[0].mxu0 %v3147
      %v3204 = vpop.f32.mrb[0].mxu0
      %v3205 = vadd.f32 %v582, %v3204
      %v3206 = vpop.f32.mrb[0].mxu0
      %v3207 = vpop.f32.mrb[0].mxu0
      %v3208 = vadd.f32 %v583, %v3207
      %v3209 = vpop.f32.mrb[0].mxu0
      %3210 = vmatprep.mubr.bf16.mxu0 0
      %3211 = vmatmul.mubr.bf16.gmra.mrb[0].mxu0 %v3150
      %v3212 = vpop.f32.mrb[0].mxu0
      %v3213 = vadd.f32 %v584, %v3212
      %v3214 = vpop.f32.mrb[0].mxu0
      %v3215 = vpop.f32.mrb[0].mxu0
      %v3216 = vadd.f32 %v585, %v3215
      %v3217 = vpop.f32.mrb[0].mxu0
      %3218 = vmatprep.mubr.bf16.mxu0 0
      %3219 = vmatmul.mubr.bf16.gmra.mrb[0].mxu0 %v3153
      %v3220 = vpop.f32.mrb[0].mxu0
      %v3221 = vadd.f32 %v586, %v3220
      %v3222 = vpop.f32.mrb[0].mxu0
      %v3223 = vpop.f32.mrb[0].mxu0
      %v3224 = vadd.f32 %v587, %v3223
      %v3225 = vpop.f32.mrb[0].mxu0
      %3226 = vmatprep.mubr.bf16.mxu0 0
      %3227 = vmatmul.mubr.bf16.gmra.mrb[0].mxu0 %v3156
      %v3228 = vpop.f32.mrb[0].mxu0
      %v3229 = vadd.f32 %v588, %v3228
      %v3230 = vpop.f32.mrb[0].mxu0
      %v3231 = vpop.f32.mrb[0].mxu0
      %v3232 = vadd.f32 %v589, %v3231
      %v3233 = vpop.f32.mrb[0].mxu0
      %3234 = vdwg.mxu0
      %3235 = vrot.lane.b32.xlu0 %v610, 112
      %v3236 = vpop.permute.xlu0 %3235
      %3237 = vrot.lane.b32.xlu0 %v611, 112
      %v3238 = vpop.permute.xlu0 %3237
      %3239 = vrot.lane.b32.xlu0 %v612, 112
      %v3240 = vpop.permute.xlu0 %3239
      %3241 = vrot.lane.b32.xlu0 %v613, 112
      %v3242 = vpop.permute.xlu0 %3241
      %3243 = vrot.lane.b32.xlu0 %v626, 80
      %v3244 = vpop.permute.xlu0 %3243
      %3245 = vrot.lane.b32.xlu0 %v627, 80
      %v3246 = vpop.permute.xlu0 %3245
      %3247 = vrot.lane.b32.xlu0 %v628, 80
      %v3248 = vpop.permute.xlu0 %3247
      %3249 = vrot.lane.b32.xlu0 %v629, 80
      %v3250 = vpop.permute.xlu0 %3249
      %v3252 = vsel %vm642, %v3236, 0
      %v3255 = vsel %vm642, %v3238, 0
      %v3258 = vsel %vm642, %v3240, 0
      %v3261 = vsel %vm642, %v3242, 0
      %v3264 = vsel %vm642, %v3244, 0
      %v3267 = vsel %vm642, %v3246, 0
      %v3270 = vsel %vm642, %v3248, 0
      %v3273 = vsel %vm642, %v3250, 0
      %3275 = vmatprep.subr.bf16.mxu0 0
      %3276 = vmatpush1.bf16.xpose.msra.mxu0 %v3264
      %3277 = vmatprep.subr.bf16.mxu0 0
      %3278 = vmatpush1.bf16.xpose.msra.mxu0 %v3267
      %3279 = vmatprep.subr.bf16.mxu0 0
      %3280 = vmatpush1.bf16.xpose.msra.mxu0 %v3270
      %3281 = vmatprep.subr.bf16.mxu0 0
      %3282 = vmatpush1.bf16.xpose.msra.mxu0 %v3273
      %3283 = vmatprep.subr.bf16.mxu0 0
      %3284 = vmatpush1.bf16.xpose.msra.mxu0 0
      %3285 = vmatprep.subr.bf16.mxu0 0
      %3286 = vmatpush1.bf16.xpose.msra.mxu0 0
      %3287 = vmatprep.subr.bf16.mxu0 0
      %3288 = vmatpush1.bf16.xpose.msra.mxu0 0
      %3289 = vmatprep.subr.bf16.mxu0 0
      %3290 = vmatpush1.bf16.xpose.msra.mxu0 0
      %3291 = vmatprep.subr.bf16.mxu0 0
      %3292 = vmatpush1.bf16.xpose.msra.mxu0 0
      %3293 = vmatprep.subr.bf16.mxu0 0
      %3294 = vmatpush1.bf16.xpose.msra.mxu0 0
      %3295 = vmatprep.subr.bf16.mxu0 0
      %3296 = vmatpush1.bf16.xpose.msra.mxu0 0
      %3297 = vmatprep.subr.bf16.mxu0 0
      %3298 = vmatpush1.bf16.xpose.msra.mxu0 0
      %3299 = vmatprep.subr.bf16.mxu0 0
      %3300 = vmatpush1.bf16.xpose.msra.mxu0 0
      %3301 = vmatprep.subr.bf16.mxu0 0
      %3302 = vmatpush1.bf16.xpose.msra.mxu0 0
      %3303 = vmatprep.subr.bf16.mxu0 0
      %3304 = vmatpush1.bf16.xpose.msra.mxu0 0
      %3305 = vmatprep.subr.bf16.mxu0 0
      %3306 = vmatpush1.bf16.xpose.msra.mxu0 0
      %3307 = vmatprep.mubr.bf16.mxu0 0
      %3308 = vmatmul.mubr.bf16.gmra.mrb[0].mxu0 %v3252
      %v3309 = vpop.f32.mrb[0].mxu0
      %v3310 = vadd.f32 %v590, %v3309
      %v3311 = vpop.f32.mrb[0].mxu0
      %v3312 = vpop.f32.mrb[0].mxu0
      %v3313 = vadd.f32 %v591, %v3312
      %v3314 = vpop.f32.mrb[0].mxu0
      %3315 = vmatprep.mubr.bf16.mxu0 0
      %3316 = vmatmul.mubr.bf16.gmra.mrb[0].mxu0 %v3255
      %v3317 = vpop.f32.mrb[0].mxu0
      %v3318 = vadd.f32 %v592, %v3317
      %v3319 = vpop.f32.mrb[0].mxu0
      %v3320 = vpop.f32.mrb[0].mxu0
      %v3321 = vadd.f32 %v593, %v3320
      %v3322 = vpop.f32.mrb[0].mxu0
      %3323 = vmatprep.mubr.bf16.mxu0 0
      %3324 = vmatmul.mubr.bf16.gmra.mrb[0].mxu0 %v3258
      %v3325 = vpop.f32.mrb[0].mxu0
      %v3326 = vadd.f32 %v594, %v3325
      %v3327 = vpop.f32.mrb[0].mxu0
      %v3328 = vpop.f32.mrb[0].mxu0
      %v3329 = vadd.f32 %v595, %v3328
      %v3330 = vpop.f32.mrb[0].mxu0
      %3331 = vmatprep.mubr.bf16.mxu0 0
      %3332 = vmatmul.mubr.bf16.gmra.mrb[0].mxu0 %v3261
      %v3333 = vpop.f32.mrb[0].mxu0
      %v3334 = vadd.f32 %v596, %v3333
      %v3335 = vpop.f32.mrb[0].mxu0
      %v3336 = vpop.f32.mrb[0].mxu0
      %v3337 = vadd.f32 %v597, %v3336
      %v3338 = vpop.f32.mrb[0].mxu0
      %3339 = vdwg.mxu0
      %v3340 = vsel %vm1035, %v2995, -inf
      %3341 = vmax.xlane.f32.xlu0 %v3340
      %v3342 = vpop.xlane.xlu0 %3341
      %v3343 = vsel %vm1035, %v2998, -inf
      %3344 = vmax.xlane.f32.xlu0 %v3343
      %v3345 = vpop.xlane.xlu0 %3344
      %v3346 = vsel %vm1035, %v3003, -inf
      %3347 = vmax.xlane.f32.xlu0 %v3346
      %v3348 = vpop.xlane.xlu0 %3347
      %v3349 = vsel %vm1035, %v3006, -inf
      %3350 = vmax.xlane.f32.xlu0 %v3349
      %v3351 = vpop.xlane.xlu0 %3350
      %v3352 = vsel %vm1035, %v3011, -inf
      %3353 = vmax.xlane.f32.xlu0 %v3352
      %v3354 = vpop.xlane.xlu0 %3353
      %v3355 = vsel %vm1035, %v3014, -inf
      %3356 = vmax.xlane.f32.xlu0 %v3355
      %v3357 = vpop.xlane.xlu0 %3356
      %v3358 = vsel %vm1035, %v3019, -inf
      %3359 = vmax.xlane.f32.xlu0 %v3358
      %v3360 = vpop.xlane.xlu0 %3359
      %v3361 = vsel %vm1035, %v3022, -inf
      %3362 = vmax.xlane.f32.xlu0 %v3361
      %v3363 = vpop.xlane.xlu0 %3362
      %v3364 = vsel %vm1035, %v3100, -inf
      %3365 = vmax.xlane.f32.xlu0 %v3364
      %v3366 = vpop.xlane.xlu0 %3365
      %v3367 = vsel %vm1035, %v3103, -inf
      %3368 = vmax.xlane.f32.xlu0 %v3367
      %v3369 = vpop.xlane.xlu0 %3368
      %v3370 = vsel %vm1035, %v3108, -inf
      %3371 = vmax.xlane.f32.xlu0 %v3370
      %v3372 = vpop.xlane.xlu0 %3371
      %v3373 = vsel %vm1035, %v3111, -inf
      %3374 = vmax.xlane.f32.xlu0 %v3373
      %v3375 = vpop.xlane.xlu0 %3374
      %v3376 = vsel %vm1035, %v3116, -inf
      %3377 = vmax.xlane.f32.xlu0 %v3376
      %v3378 = vpop.xlane.xlu0 %3377
      %v3379 = vsel %vm1035, %v3119, -inf
      %3380 = vmax.xlane.f32.xlu0 %v3379
      %v3381 = vpop.xlane.xlu0 %3380
      %v3382 = vsel %vm1035, %v3124, -inf
      %3383 = vmax.xlane.f32.xlu0 %v3382
      %v3384 = vpop.xlane.xlu0 %3383
      %v3385 = vsel %vm1035, %v3127, -inf
      %3386 = vmax.xlane.f32.xlu0 %v3385
      %v3387 = vpop.xlane.xlu0 %3386
      %v3388 = vsel %vm1035, %v3205, -inf
      %3389 = vmax.xlane.f32.xlu0 %v3388
      %v3390 = vpop.xlane.xlu0 %3389
      %v3391 = vsel %vm1035, %v3208, -inf
      %3392 = vmax.xlane.f32.xlu0 %v3391
      %v3393 = vpop.xlane.xlu0 %3392
      %v3394 = vsel %vm1035, %v3213, -inf
      %3395 = vmax.xlane.f32.xlu0 %v3394
      %v3396 = vpop.xlane.xlu0 %3395
      %v3397 = vsel %vm1035, %v3216, -inf
      %3398 = vmax.xlane.f32.xlu0 %v3397
      %v3399 = vpop.xlane.xlu0 %3398
      %v3400 = vsel %vm1035, %v3221, -inf
      %3401 = vmax.xlane.f32.xlu0 %v3400
      %v3402 = vpop.xlane.xlu0 %3401
      %v3403 = vsel %vm1035, %v3224, -inf
      %3404 = vmax.xlane.f32.xlu0 %v3403
      %v3405 = vpop.xlane.xlu0 %3404
      %v3406 = vsel %vm1035, %v3229, -inf
      %3407 = vmax.xlane.f32.xlu0 %v3406
      %v3408 = vpop.xlane.xlu0 %3407
      %v3409 = vsel %vm1035, %v3232, -inf
      %3410 = vmax.xlane.f32.xlu0 %v3409
      %v3411 = vpop.xlane.xlu0 %3410
      %v3412 = vsel %vm1035, %v3310, -inf
      %3413 = vmax.xlane.f32.xlu0 %v3412
      %v3414 = vpop.xlane.xlu0 %3413
      %v3415 = vsel %vm1035, %v3313, -inf
      %3416 = vmax.xlane.f32.xlu0 %v3415
      %v3417 = vpop.xlane.xlu0 %3416
      %v3418 = vsel %vm1035, %v3318, -inf
      %3419 = vmax.xlane.f32.xlu0 %v3418
      %v3420 = vpop.xlane.xlu0 %3419
      %v3421 = vsel %vm1035, %v3321, -inf
      %3422 = vmax.xlane.f32.xlu0 %v3421
      %v3423 = vpop.xlane.xlu0 %3422
      %v3424 = vsel %vm1035, %v3326, -inf
      %3425 = vmax.xlane.f32.xlu0 %v3424
      %v3426 = vpop.xlane.xlu0 %3425
      %v3427 = vsel %vm1035, %v3329, -inf
      %3428 = vmax.xlane.f32.xlu0 %v3427
      %v3429 = vpop.xlane.xlu0 %3428
      %v3430 = vsel %vm1035, %v3334, -inf
      %3431 = vmax.xlane.f32.xlu0 %v3430
      %v3432 = vpop.xlane.xlu0 %3431
      %v3433 = vsel %vm1035, %v3337, -inf
      %3434 = vmax.xlane.f32.xlu0 %v3433
      %v3435 = vpop.xlane.xlu0 %3434
      %v3436 = vsub.f32 %v2995, %v3342
      %v3437 = vsub.f32 %v2998, %v3345
      %v3438 = vsub.f32 %v3003, %v3348
      %v3439 = vsub.f32 %v3006, %v3351
      %v3440 = vsub.f32 %v3011, %v3354
      %v3441 = vsub.f32 %v3014, %v3357
      %v3442 = vsub.f32 %v3019, %v3360
      %v3443 = vsub.f32 %v3022, %v3363
      %v3444 = vsub.f32 %v3100, %v3366
      %v3445 = vsub.f32 %v3103, %v3369
      %v3446 = vsub.f32 %v3108, %v3372
      %v3447 = vsub.f32 %v3111, %v3375
      %v3448 = vsub.f32 %v3116, %v3378
      %v3449 = vsub.f32 %v3119, %v3381
      %v3450 = vsub.f32 %v3124, %v3384
      %v3451 = vsub.f32 %v3127, %v3387
      %v3452 = vsub.f32 %v3205, %v3390
      %v3453 = vsub.f32 %v3208, %v3393
      %v3454 = vsub.f32 %v3213, %v3396
      %v3455 = vsub.f32 %v3216, %v3399
      %v3456 = vsub.f32 %v3221, %v3402
      %v3457 = vsub.f32 %v3224, %v3405
      %v3458 = vsub.f32 %v3229, %v3408
      %v3459 = vsub.f32 %v3232, %v3411
      %v3460 = vsub.f32 %v3310, %v3414
      %v3461 = vsub.f32 %v3313, %v3417
      %v3462 = vsub.f32 %v3318, %v3420
      %v3463 = vsub.f32 %v3321, %v3423
      %v3464 = vsub.f32 %v3326, %v3426
      %v3465 = vsub.f32 %v3329, %v3429
      %v3466 = vsub.f32 %v3334, %v3432
      %v3467 = vsub.f32 %v3337, %v3435
      %v3468 = vmul.f32 %v3436, 1.442695
      %v3469 = vpow.pop %v3468
      %v3470 = vmul.f32 %v3437, 1.442695
      %v3471 = vpow.pop %v3470
      %v3472 = vmul.f32 %v3438, 1.442695
      %v3473 = vpow.pop %v3472
      %v3474 = vmul.f32 %v3439, 1.442695
      %v3475 = vpow.pop %v3474
      %v3476 = vmul.f32 %v3440, 1.442695
      %v3477 = vpow.pop %v3476
      %v3478 = vmul.f32 %v3441, 1.442695
      %v3479 = vpow.pop %v3478
      %v3480 = vmul.f32 %v3442, 1.442695
      %v3481 = vpow.pop %v3480
      %v3482 = vmul.f32 %v3443, 1.442695
      %v3483 = vpow.pop %v3482
      %v3484 = vmul.f32 %v3444, 1.442695
      %v3485 = vpow.pop %v3484
      %v3486 = vmul.f32 %v3445, 1.442695
      %v3487 = vpow.pop %v3486
      %v3488 = vmul.f32 %v3446, 1.442695
      %v3489 = vpow.pop %v3488
      %v3490 = vmul.f32 %v3447, 1.442695
      %v3491 = vpow.pop %v3490
      %v3492 = vmul.f32 %v3448, 1.442695
      %v3493 = vpow.pop %v3492
      %v3494 = vmul.f32 %v3449, 1.442695
      %v3495 = vpow.pop %v3494
      %v3496 = vmul.f32 %v3450, 1.442695
      %v3497 = vpow.pop %v3496
      %v3498 = vmul.f32 %v3451, 1.442695
      %v3499 = vpow.pop %v3498
      %v3500 = vmul.f32 %v3452, 1.442695
      %v3501 = vpow.pop %v3500
      %v3502 = vmul.f32 %v3453, 1.442695
      %v3503 = vpow.pop %v3502
      %v3504 = vmul.f32 %v3454, 1.442695
      %v3505 = vpow.pop %v3504
      %v3506 = vmul.f32 %v3455, 1.442695
      %v3507 = vpow.pop %v3506
      %v3508 = vmul.f32 %v3456, 1.442695
      %v3509 = vpow.pop %v3508
      %v3510 = vmul.f32 %v3457, 1.442695
      %v3511 = vpow.pop %v3510
      %v3512 = vmul.f32 %v3458, 1.442695
      %v3513 = vpow.pop %v3512
      %v3514 = vmul.f32 %v3459, 1.442695
      %v3515 = vpow.pop %v3514
      %v3516 = vmul.f32 %v3460, 1.442695
      %v3517 = vpow.pop %v3516
      %v3518 = vmul.f32 %v3461, 1.442695
      %v3519 = vpow.pop %v3518
      %v3520 = vmul.f32 %v3462, 1.442695
      %v3521 = vpow.pop %v3520
      %v3522 = vmul.f32 %v3463, 1.442695
      %v3523 = vpow.pop %v3522
      %v3524 = vmul.f32 %v3464, 1.442695
      %v3525 = vpow.pop %v3524
      %v3526 = vmul.f32 %v3465, 1.442695
      %v3527 = vpow.pop %v3526
      %v3528 = vmul.f32 %v3466, 1.442695
      %v3529 = vpow.pop %v3528
      %v3530 = vmul.f32 %v3467, 1.442695
      %v3531 = vpow.pop %v3530
      %v3532 = vsel %vm1035, %v3469, 0.0
      %3533 = vadd.xlane.f32.xlu0 %v3532
      %v3534 = vpop.xlane.xlu0 %3533
      %v3535 = vsel %vm1035, %v3471, 0.0
      %3536 = vadd.xlane.f32.xlu0 %v3535
      %v3537 = vpop.xlane.xlu0 %3536
      %v3538 = vsel %vm1035, %v3473, 0.0
      %3539 = vadd.xlane.f32.xlu0 %v3538
      %v3540 = vpop.xlane.xlu0 %3539
      %v3541 = vsel %vm1035, %v3475, 0.0
      %3542 = vadd.xlane.f32.xlu0 %v3541
      %v3543 = vpop.xlane.xlu0 %3542
      %v3544 = vsel %vm1035, %v3477, 0.0
      %3545 = vadd.xlane.f32.xlu0 %v3544
      %v3546 = vpop.xlane.xlu0 %3545
      %v3547 = vsel %vm1035, %v3479, 0.0
      %3548 = vadd.xlane.f32.xlu0 %v3547
      %v3549 = vpop.xlane.xlu0 %3548
      %v3550 = vsel %vm1035, %v3481, 0.0
      %3551 = vadd.xlane.f32.xlu0 %v3550
      %v3552 = vpop.xlane.xlu0 %3551
      %v3553 = vsel %vm1035, %v3483, 0.0
      %3554 = vadd.xlane.f32.xlu0 %v3553
      %v3555 = vpop.xlane.xlu0 %3554
      %v3556 = vsel %vm1035, %v3485, 0.0
      %3557 = vadd.xlane.f32.xlu0 %v3556
      %v3558 = vpop.xlane.xlu0 %3557
      %v3559 = vsel %vm1035, %v3487, 0.0
      %3560 = vadd.xlane.f32.xlu0 %v3559
      %v3561 = vpop.xlane.xlu0 %3560
      %v3562 = vsel %vm1035, %v3489, 0.0
      %3563 = vadd.xlane.f32.xlu0 %v3562
      %v3564 = vpop.xlane.xlu0 %3563
      %v3565 = vsel %vm1035, %v3491, 0.0
      %3566 = vadd.xlane.f32.xlu0 %v3565
      %v3567 = vpop.xlane.xlu0 %3566
      %v3568 = vsel %vm1035, %v3493, 0.0
      %3569 = vadd.xlane.f32.xlu0 %v3568
      %v3570 = vpop.xlane.xlu0 %3569
      %v3571 = vsel %vm1035, %v3495, 0.0
      %3572 = vadd.xlane.f32.xlu0 %v3571
      %v3573 = vpop.xlane.xlu0 %3572
      %v3574 = vsel %vm1035, %v3497, 0.0
      %3575 = vadd.xlane.f32.xlu0 %v3574
      %v3576 = vpop.xlane.xlu0 %3575
      %v3577 = vsel %vm1035, %v3499, 0.0
      %3578 = vadd.xlane.f32.xlu0 %v3577
      %v3579 = vpop.xlane.xlu0 %3578
      %v3580 = vsel %vm1035, %v3501, 0.0
      %3581 = vadd.xlane.f32.xlu0 %v3580
      %v3582 = vpop.xlane.xlu0 %3581
      %v3583 = vsel %vm1035, %v3503, 0.0
      %3584 = vadd.xlane.f32.xlu0 %v3583
      %v3585 = vpop.xlane.xlu0 %3584
      %v3586 = vsel %vm1035, %v3505, 0.0
      %3587 = vadd.xlane.f32.xlu0 %v3586
      %v3588 = vpop.xlane.xlu0 %3587
      %v3589 = vsel %vm1035, %v3507, 0.0
      %3590 = vadd.xlane.f32.xlu0 %v3589
      %v3591 = vpop.xlane.xlu0 %3590
      %v3592 = vsel %vm1035, %v3509, 0.0
      %3593 = vadd.xlane.f32.xlu0 %v3592
      %v3594 = vpop.xlane.xlu0 %3593
      %v3595 = vsel %vm1035, %v3511, 0.0
      %3596 = vadd.xlane.f32.xlu0 %v3595
      %v3597 = vpop.xlane.xlu0 %3596
      %v3598 = vsel %vm1035, %v3513, 0.0
      %3599 = vadd.xlane.f32.xlu0 %v3598
      %v3600 = vpop.xlane.xlu0 %3599
      %v3601 = vsel %vm1035, %v3515, 0.0
      %3602 = vadd.xlane.f32.xlu0 %v3601
      %v3603 = vpop.xlane.xlu0 %3602
      %v3604 = vsel %vm1035, %v3517, 0.0
      %3605 = vadd.xlane.f32.xlu0 %v3604
      %v3606 = vpop.xlane.xlu0 %3605
      %v3607 = vsel %vm1035, %v3519, 0.0
      %3608 = vadd.xlane.f32.xlu0 %v3607
      %v3609 = vpop.xlane.xlu0 %3608
      %v3610 = vsel %vm1035, %v3521, 0.0
      %3611 = vadd.xlane.f32.xlu0 %v3610
      %v3612 = vpop.xlane.xlu0 %3611
      %v3613 = vsel %vm1035, %v3523, 0.0
      %3614 = vadd.xlane.f32.xlu0 %v3613
      %v3615 = vpop.xlane.xlu0 %3614
      %v3616 = vsel %vm1035, %v3525, 0.0
      %3617 = vadd.xlane.f32.xlu0 %v3616
      %v3618 = vpop.xlane.xlu0 %3617
      %v3619 = vsel %vm1035, %v3527, 0.0
      %3620 = vadd.xlane.f32.xlu0 %v3619
      %v3621 = vpop.xlane.xlu0 %3620
      %v3622 = vsel %vm1035, %v3529, 0.0
      %3623 = vadd.xlane.f32.xlu0 %v3622
      %v3624 = vpop.xlane.xlu0 %3623
      %v3625 = vsel %vm1035, %v3531, 0.0
      %3626 = vadd.xlane.f32.xlu0 %v3625
      %v3627 = vpop.xlane.xlu0 %3626
      %v3628 = vrcp.pop %v3534
      %v3629 = vrcp.pop %v3537
      %v3630 = vrcp.pop %v3540
      %v3631 = vrcp.pop %v3543
      %v3632 = vrcp.pop %v3546
      %v3633 = vrcp.pop %v3549
      %v3634 = vrcp.pop %v3552
      %v3635 = vrcp.pop %v3555
      %v3636 = vrcp.pop %v3558
      %v3637 = vrcp.pop %v3561
      %v3638 = vrcp.pop %v3564
      %v3639 = vrcp.pop %v3567
      %v3640 = vrcp.pop %v3570
      %v3641 = vrcp.pop %v3573
      %v3642 = vrcp.pop %v3576
      %v3643 = vrcp.pop %v3579
      %v3644 = vrcp.pop %v3582
      %v3645 = vrcp.pop %v3585
      %v3646 = vrcp.pop %v3588
      %v3647 = vrcp.pop %v3591
      %v3648 = vrcp.pop %v3594
      %v3649 = vrcp.pop %v3597
      %v3650 = vrcp.pop %v3600
      %v3651 = vrcp.pop %v3603
      %v3652 = vrcp.pop %v3606
      %v3653 = vrcp.pop %v3609
      %v3654 = vrcp.pop %v3612
      %v3655 = vrcp.pop %v3615
      %v3656 = vrcp.pop %v3618
      %v3657 = vrcp.pop %v3621
      %v3658 = vrcp.pop %v3624
      %v3659 = vrcp.pop %v3627
      %v3660 = vmul.f32 %v3469, %v3628
      %v3661 = vmul.f32 %v3471, %v3629
      %v3662 = vmul.f32 %v3473, %v3630
      %v3663 = vmul.f32 %v3475, %v3631
      %v3664 = vmul.f32 %v3477, %v3632
      %v3665 = vmul.f32 %v3479, %v3633
      %v3666 = vmul.f32 %v3481, %v3634
      %v3667 = vmul.f32 %v3483, %v3635
      %v3668 = vmul.f32 %v3485, %v3636
      %v3669 = vmul.f32 %v3487, %v3637
      %v3670 = vmul.f32 %v3489, %v3638
      %v3671 = vmul.f32 %v3491, %v3639
      %v3672 = vmul.f32 %v3493, %v3640
      %v3673 = vmul.f32 %v3495, %v3641
      %v3674 = vmul.f32 %v3497, %v3642
      %v3675 = vmul.f32 %v3499, %v3643
      %v3676 = vmul.f32 %v3501, %v3644
      %v3677 = vmul.f32 %v3503, %v3645
      %v3678 = vmul.f32 %v3505, %v3646
      %v3679 = vmul.f32 %v3507, %v3647
      %v3680 = vmul.f32 %v3509, %v3648
      %v3681 = vmul.f32 %v3511, %v3649
      %v3682 = vmul.f32 %v3513, %v3650
      %v3683 = vmul.f32 %v3515, %v3651
      %v3684 = vmul.f32 %v3517, %v3652
      %v3685 = vmul.f32 %v3519, %v3653
      %v3686 = vmul.f32 %v3521, %v3654
      %v3687 = vmul.f32 %v3523, %v3655
      %v3688 = vmul.f32 %v3525, %v3656
      %v3689 = vmul.f32 %v3527, %v3657
      %v3690 = vmul.f32 %v3529, %v3658
      %v3691 = vmul.f32 %v3531, %v3659
      %v3692 = vpack.c.bf16 %v3661, %v3660
      %v3693 = vpack.c.bf16 %v3663, %v3662
      %v3694 = vpack.c.bf16 %v3665, %v3664
      %v3695 = vpack.c.bf16 %v3667, %v3666
      %v3696 = vpack.c.bf16 %v3669, %v3668
      %v3697 = vpack.c.bf16 %v3671, %v3670
      %v3698 = vpack.c.bf16 %v3673, %v3672
      %v3699 = vpack.c.bf16 %v3675, %v3674
      %v3700 = vpack.c.bf16 %v3677, %v3676
      %v3701 = vpack.c.bf16 %v3679, %v3678
      %v3702 = vpack.c.bf16 %v3681, %v3680
      %v3703 = vpack.c.bf16 %v3683, %v3682
      %v3704 = vpack.c.bf16 %v3685, %v3684
      %v3705 = vpack.c.bf16 %v3687, %v3686
      %v3706 = vpack.c.bf16 %v3689, %v3688
      %v3707 = vpack.c.bf16 %v3691, %v3690
      %3708 = vrot.lane.b32.xlu0 %v614, 48
      %v3709 = vpop.permute.xlu0 %3708
      %3710 = vrot.lane.b32.xlu0 %v615, 48
      %v3711 = vpop.permute.xlu0 %3710
      %3712 = vrot.lane.b32.xlu0 %v616, 48
      %v3713 = vpop.permute.xlu0 %3712
      %3714 = vrot.lane.b32.xlu0 %v617, 48
      %v3715 = vpop.permute.xlu0 %3714
      %v3721 = vsel %vm1035, %v3692, 0
      %v3724 = vsel %vm1035, %v3693, 0
      %v3727 = vsel %vm1035, %v3694, 0
      %v3730 = vsel %vm1035, %v3695, 0
      %3732 = vmatprep.subr.bf16.mxu0 0
      %3733 = vmatpush1.bf16.msra.mxu0 %v3709
      %3734 = vmatprep.subr.bf16.mxu0 0
      %3735 = vmatpush1.bf16.msra.mxu0 %v3711
      %3736 = vmatprep.subr.bf16.mxu0 0
      %3737 = vmatpush1.bf16.msra.mxu0 %v3713
      %3738 = vmatprep.subr.bf16.mxu0 0
      %3739 = vmatpush1.bf16.msra.mxu0 %v3715
      %3740 = vmatprep.subr.bf16.mxu0 0
      %3741 = vmatpush1.bf16.msra.mxu0 0
      %3742 = vmatprep.subr.bf16.mxu0 0
      %3743 = vmatpush1.bf16.msra.mxu0 0
      %3744 = vmatprep.subr.bf16.mxu0 0
      %3745 = vmatpush1.bf16.msra.mxu0 0
      %3746 = vmatprep.subr.bf16.mxu0 0
      %3747 = vmatpush1.bf16.msra.mxu0 0
      %3748 = vmatprep.subr.bf16.mxu0 0
      %3749 = vmatpush1.bf16.msra.mxu0 0
      %3750 = vmatprep.subr.bf16.mxu0 0
      %3751 = vmatpush1.bf16.msra.mxu0 0
      %3752 = vmatprep.subr.bf16.mxu0 0
      %3753 = vmatpush1.bf16.msra.mxu0 0
      %3754 = vmatprep.subr.bf16.mxu0 0
      %3755 = vmatpush1.bf16.msra.mxu0 0
      %3756 = vmatprep.subr.bf16.mxu0 0
      %3757 = vmatpush1.bf16.msra.mxu0 0
      %3758 = vmatprep.subr.bf16.mxu0 0
      %3759 = vmatpush1.bf16.msra.mxu0 0
      %3760 = vmatprep.subr.bf16.mxu0 0
      %3761 = vmatpush1.bf16.msra.mxu0 0
      %3762 = vmatprep.subr.bf16.mxu0 0
      %3763 = vmatpush1.bf16.msra.mxu0 0
      %3764 = vmatprep.mubr.bf16.mxu0 0
      %3765 = vmatmul.mubr.bf16.gmra.mrb[0].mxu0 %v3721
      %v3766 = vpop.f32.mrb[0].mxu0
      %v3767 = vadd.f32 0.0, %v3766
      %v3768 = vpop.f32.mrb[0].mxu0
      %v3769 = vpop.f32.mrb[0].mxu0
      %v3770 = vadd.f32 0.0, %v3769
      %v3771 = vpop.f32.mrb[0].mxu0
      %3772 = vmatprep.mubr.bf16.mxu0 0
      %3773 = vmatmul.mubr.bf16.gmra.mrb[0].mxu0 %v3724
      %v3774 = vpop.f32.mrb[0].mxu0
      %v3775 = vadd.f32 0.0, %v3774
      %v3776 = vpop.f32.mrb[0].mxu0
      %v3777 = vpop.f32.mrb[0].mxu0
      %v3778 = vadd.f32 0.0, %v3777
      %v3779 = vpop.f32.mrb[0].mxu0
      %3780 = vmatprep.mubr.bf16.mxu0 0
      %3781 = vmatmul.mubr.bf16.gmra.mrb[0].mxu0 %v3727
      %v3782 = vpop.f32.mrb[0].mxu0
      %v3783 = vadd.f32 0.0, %v3782
      %v3784 = vpop.f32.mrb[0].mxu0
      %v3785 = vpop.f32.mrb[0].mxu0
      %v3786 = vadd.f32 0.0, %v3785
      %v3787 = vpop.f32.mrb[0].mxu0
      %3788 = vmatprep.mubr.bf16.mxu0 0
      %3789 = vmatmul.mubr.bf16.gmra.mrb[0].mxu0 %v3730
      %v3790 = vpop.f32.mrb[0].mxu0
      %v3791 = vadd.f32 0.0, %v3790
      %v3792 = vpop.f32.mrb[0].mxu0
      %v3793 = vpop.f32.mrb[0].mxu0
      %v3794 = vadd.f32 0.0, %v3793
      %v3795 = vpop.f32.mrb[0].mxu0
      %3796 = vdwg.mxu0
      %3797 = vrot.lane.b32.xlu0 %v618, 48
      %v3798 = vpop.permute.xlu0 %3797
      %3799 = vrot.lane.b32.xlu0 %v619, 48
      %v3800 = vpop.permute.xlu0 %3799
      %3801 = vrot.lane.b32.xlu0 %v620, 48
      %v3802 = vpop.permute.xlu0 %3801
      %3803 = vrot.lane.b32.xlu0 %v621, 48
      %v3804 = vpop.permute.xlu0 %3803
      %v3810 = vsel %vm1035, %v3696, 0
      %v3813 = vsel %vm1035, %v3697, 0
      %v3816 = vsel %vm1035, %v3698, 0
      %v3819 = vsel %vm1035, %v3699, 0
      %3821 = vmatprep.subr.bf16.mxu0 0
      %3822 = vmatpush1.bf16.msra.mxu0 %v3798
      %3823 = vmatprep.subr.bf16.mxu0 0
      %3824 = vmatpush1.bf16.msra.mxu0 %v3800
      %3825 = vmatprep.subr.bf16.mxu0 0
      %3826 = vmatpush1.bf16.msra.mxu0 %v3802
      %3827 = vmatprep.subr.bf16.mxu0 0
      %3828 = vmatpush1.bf16.msra.mxu0 %v3804
      %3829 = vmatprep.subr.bf16.mxu0 0
      %3830 = vmatpush1.bf16.msra.mxu0 0
      %3831 = vmatprep.subr.bf16.mxu0 0
      %3832 = vmatpush1.bf16.msra.mxu0 0
      %3833 = vmatprep.subr.bf16.mxu0 0
      %3834 = vmatpush1.bf16.msra.mxu0 0
      %3835 = vmatprep.subr.bf16.mxu0 0
      %3836 = vmatpush1.bf16.msra.mxu0 0
      %3837 = vmatprep.subr.bf16.mxu0 0
      %3838 = vmatpush1.bf16.msra.mxu0 0
      %3839 = vmatprep.subr.bf16.mxu0 0
      %3840 = vmatpush1.bf16.msra.mxu0 0
      %3841 = vmatprep.subr.bf16.mxu0 0
      %3842 = vmatpush1.bf16.msra.mxu0 0
      %3843 = vmatprep.subr.bf16.mxu0 0
      %3844 = vmatpush1.bf16.msra.mxu0 0
      %3845 = vmatprep.subr.bf16.mxu0 0
      %3846 = vmatpush1.bf16.msra.mxu0 0
      %3847 = vmatprep.subr.bf16.mxu0 0
      %3848 = vmatpush1.bf16.msra.mxu0 0
      %3849 = vmatprep.subr.bf16.mxu0 0
      %3850 = vmatpush1.bf16.msra.mxu0 0
      %3851 = vmatprep.subr.bf16.mxu0 0
      %3852 = vmatpush1.bf16.msra.mxu0 0
      %3853 = vmatprep.mubr.bf16.mxu0 0
      %3854 = vmatmul.mubr.bf16.gmra.mrb[0].mxu0 %v3810
      %v3855 = vpop.f32.mrb[0].mxu0
      %v3856 = vadd.f32 0.0, %v3855
      %v3857 = vpop.f32.mrb[0].mxu0
      %v3858 = vpop.f32.mrb[0].mxu0
      %v3859 = vadd.f32 0.0, %v3858
      %v3860 = vpop.f32.mrb[0].mxu0
      %3861 = vmatprep.mubr.bf16.mxu0 0
      %3862 = vmatmul.mubr.bf16.gmra.mrb[0].mxu0 %v3813
      %v3863 = vpop.f32.mrb[0].mxu0
      %v3864 = vadd.f32 0.0, %v3863
      %v3865 = vpop.f32.mrb[0].mxu0
      %v3866 = vpop.f32.mrb[0].mxu0
      %v3867 = vadd.f32 0.0, %v3866
      %v3868 = vpop.f32.mrb[0].mxu0
      %3869 = vmatprep.mubr.bf16.mxu0 0
      %3870 = vmatmul.mubr.bf16.gmra.mrb[0].mxu0 %v3816
      %v3871 = vpop.f32.mrb[0].mxu0
      %v3872 = vadd.f32 0.0, %v3871
      %v3873 = vpop.f32.mrb[0].mxu0
      %v3874 = vpop.f32.mrb[0].mxu0
      %v3875 = vadd.f32 0.0, %v3874
      %v3876 = vpop.f32.mrb[0].mxu0
      %3877 = vmatprep.mubr.bf16.mxu0 0
      %3878 = vmatmul.mubr.bf16.gmra.mrb[0].mxu0 %v3819
      %v3879 = vpop.f32.mrb[0].mxu0
      %v3880 = vadd.f32 0.0, %v3879
      %v3881 = vpop.f32.mrb[0].mxu0
      %v3882 = vpop.f32.mrb[0].mxu0
      %v3883 = vadd.f32 0.0, %v3882
      %v3884 = vpop.f32.mrb[0].mxu0
      %3885 = vdwg.mxu0
      %3886 = vrot.lane.b32.xlu0 %v622, 48
      %v3887 = vpop.permute.xlu0 %3886
      %3888 = vrot.lane.b32.xlu0 %v623, 48
      %v3889 = vpop.permute.xlu0 %3888
      %3890 = vrot.lane.b32.xlu0 %v624, 48
      %v3891 = vpop.permute.xlu0 %3890
      %3892 = vrot.lane.b32.xlu0 %v625, 48
      %v3893 = vpop.permute.xlu0 %3892
      %v3899 = vsel %vm1035, %v3700, 0
      %v3902 = vsel %vm1035, %v3701, 0
      %v3905 = vsel %vm1035, %v3702, 0
      %v3908 = vsel %vm1035, %v3703, 0
      %3910 = vmatprep.subr.bf16.mxu0 0
      %3911 = vmatpush1.bf16.msra.mxu0 %v3887
      %3912 = vmatprep.subr.bf16.mxu0 0
      %3913 = vmatpush1.bf16.msra.mxu0 %v3889
      %3914 = vmatprep.subr.bf16.mxu0 0
      %3915 = vmatpush1.bf16.msra.mxu0 %v3891
      %3916 = vmatprep.subr.bf16.mxu0 0
      %3917 = vmatpush1.bf16.msra.mxu0 %v3893
      %3918 = vmatprep.subr.bf16.mxu0 0
      %3919 = vmatpush1.bf16.msra.mxu0 0
      %3920 = vmatprep.subr.bf16.mxu0 0
      %3921 = vmatpush1.bf16.msra.mxu0 0
      %3922 = vmatprep.subr.bf16.mxu0 0
      %3923 = vmatpush1.bf16.msra.mxu0 0
      %3924 = vmatprep.subr.bf16.mxu0 0
      %3925 = vmatpush1.bf16.msra.mxu0 0
      %3926 = vmatprep.subr.bf16.mxu0 0
      %3927 = vmatpush1.bf16.msra.mxu0 0
      %3928 = vmatprep.subr.bf16.mxu0 0
      %3929 = vmatpush1.bf16.msra.mxu0 0
      %3930 = vmatprep.subr.bf16.mxu0 0
      %3931 = vmatpush1.bf16.msra.mxu0 0
      %3932 = vmatprep.subr.bf16.mxu0 0
      %3933 = vmatpush1.bf16.msra.mxu0 0
      %3934 = vmatprep.subr.bf16.mxu0 0
      %3935 = vmatpush1.bf16.msra.mxu0 0
      %3936 = vmatprep.subr.bf16.mxu0 0
      %3937 = vmatpush1.bf16.msra.mxu0 0
      %3938 = vmatprep.subr.bf16.mxu0 0
      %3939 = vmatpush1.bf16.msra.mxu0 0
      %3940 = vmatprep.subr.bf16.mxu0 0
      %3941 = vmatpush1.bf16.msra.mxu0 0
      %3942 = vmatprep.mubr.bf16.mxu0 0
      %3943 = vmatmul.mubr.bf16.gmra.mrb[0].mxu0 %v3899
      %v3944 = vpop.f32.mrb[0].mxu0
      %v3945 = vadd.f32 0.0, %v3944
      %v3946 = vpop.f32.mrb[0].mxu0
      %v3947 = vpop.f32.mrb[0].mxu0
      %v3948 = vadd.f32 0.0, %v3947
      %v3949 = vpop.f32.mrb[0].mxu0
      %3950 = vmatprep.mubr.bf16.mxu0 0
      %3951 = vmatmul.mubr.bf16.gmra.mrb[0].mxu0 %v3902
      %v3952 = vpop.f32.mrb[0].mxu0
      %v3953 = vadd.f32 0.0, %v3952
      %v3954 = vpop.f32.mrb[0].mxu0
      %v3955 = vpop.f32.mrb[0].mxu0
      %v3956 = vadd.f32 0.0, %v3955
      %v3957 = vpop.f32.mrb[0].mxu0
      %3958 = vmatprep.mubr.bf16.mxu0 0
      %3959 = vmatmul.mubr.bf16.gmra.mrb[0].mxu0 %v3905
      %v3960 = vpop.f32.mrb[0].mxu0
      %v3961 = vadd.f32 0.0, %v3960
      %v3962 = vpop.f32.mrb[0].mxu0
      %v3963 = vpop.f32.mrb[0].mxu0
      %v3964 = vadd.f32 0.0, %v3963
      %v3965 = vpop.f32.mrb[0].mxu0
      %3966 = vmatprep.mubr.bf16.mxu0 0
      %3967 = vmatmul.mubr.bf16.gmra.mrb[0].mxu0 %v3908
      %v3968 = vpop.f32.mrb[0].mxu0
      %v3969 = vadd.f32 0.0, %v3968
      %v3970 = vpop.f32.mrb[0].mxu0
      %v3971 = vpop.f32.mrb[0].mxu0
      %v3972 = vadd.f32 0.0, %v3971
      %v3973 = vpop.f32.mrb[0].mxu0
      %3974 = vdwg.mxu0
      %3975 = vrot.lane.b32.xlu0 %v626, 48
      %v3976 = vpop.permute.xlu0 %3975
      %3977 = vrot.lane.b32.xlu0 %v627, 48
      %v3978 = vpop.permute.xlu0 %3977
      %3979 = vrot.lane.b32.xlu0 %v628, 48
      %v3980 = vpop.permute.xlu0 %3979
      %3981 = vrot.lane.b32.xlu0 %v629, 48
      %v3982 = vpop.permute.xlu0 %3981
      %v3988 = vsel %vm1035, %v3704, 0
      %v3991 = vsel %vm1035, %v3705, 0
      %v3994 = vsel %vm1035, %v3706, 0
      %v3997 = vsel %vm1035, %v3707, 0
      %3999 = vmatprep.subr.bf16.mxu0 0
      %4000 = vmatpush1.bf16.msra.mxu0 %v3976
      %4001 = vmatprep.subr.bf16.mxu0 0
      %4002 = vmatpush1.bf16.msra.mxu0 %v3978
      %4003 = vmatprep.subr.bf16.mxu0 0
      %4004 = vmatpush1.bf16.msra.mxu0 %v3980
      %4005 = vmatprep.subr.bf16.mxu0 0
      %4006 = vmatpush1.bf16.msra.mxu0 %v3982
      %4007 = vmatprep.subr.bf16.mxu0 0
      %4008 = vmatpush1.bf16.msra.mxu0 0
      %4009 = vmatprep.subr.bf16.mxu0 0
      %4010 = vmatpush1.bf16.msra.mxu0 0
      %4011 = vmatprep.subr.bf16.mxu0 0
      %4012 = vmatpush1.bf16.msra.mxu0 0
      %4013 = vmatprep.subr.bf16.mxu0 0
      %4014 = vmatpush1.bf16.msra.mxu0 0
      %4015 = vmatprep.subr.bf16.mxu0 0
      %4016 = vmatpush1.bf16.msra.mxu0 0
      %4017 = vmatprep.subr.bf16.mxu0 0
      %4018 = vmatpush1.bf16.msra.mxu0 0
      %4019 = vmatprep.subr.bf16.mxu0 0
      %4020 = vmatpush1.bf16.msra.mxu0 0
      %4021 = vmatprep.subr.bf16.mxu0 0
      %4022 = vmatpush1.bf16.msra.mxu0 0
      %4023 = vmatprep.subr.bf16.mxu0 0
      %4024 = vmatpush1.bf16.msra.mxu0 0
      %4025 = vmatprep.subr.bf16.mxu0 0
      %4026 = vmatpush1.bf16.msra.mxu0 0
      %4027 = vmatprep.subr.bf16.mxu0 0
      %4028 = vmatpush1.bf16.msra.mxu0 0
      %4029 = vmatprep.subr.bf16.mxu0 0
      %4030 = vmatpush1.bf16.msra.mxu0 0
      %4031 = vmatprep.mubr.bf16.mxu0 0
      %4032 = vmatmul.mubr.bf16.gmra.mrb[0].mxu0 %v3988
      %v4033 = vpop.f32.mrb[0].mxu0
      %v4034 = vadd.f32 0.0, %v4033
      %v4035 = vpop.f32.mrb[0].mxu0
      %v4036 = vpop.f32.mrb[0].mxu0
      %v4037 = vadd.f32 0.0, %v4036
      %v4038 = vpop.f32.mrb[0].mxu0
      %4039 = vmatprep.mubr.bf16.mxu0 0
      %4040 = vmatmul.mubr.bf16.gmra.mrb[0].mxu0 %v3991
      %v4041 = vpop.f32.mrb[0].mxu0
      %v4042 = vadd.f32 0.0, %v4041
      %v4043 = vpop.f32.mrb[0].mxu0
      %v4044 = vpop.f32.mrb[0].mxu0
      %v4045 = vadd.f32 0.0, %v4044
      %v4046 = vpop.f32.mrb[0].mxu0
      %4047 = vmatprep.mubr.bf16.mxu0 0
      %4048 = vmatmul.mubr.bf16.gmra.mrb[0].mxu0 %v3994
      %v4049 = vpop.f32.mrb[0].mxu0
      %v4050 = vadd.f32 0.0, %v4049
      %v4051 = vpop.f32.mrb[0].mxu0
      %v4052 = vpop.f32.mrb[0].mxu0
      %v4053 = vadd.f32 0.0, %v4052
      %v4054 = vpop.f32.mrb[0].mxu0
      %4055 = vmatprep.mubr.bf16.mxu0 0
      %4056 = vmatmul.mubr.bf16.gmra.mrb[0].mxu0 %v3997
      %v4057 = vpop.f32.mrb[0].mxu0
      %v4058 = vadd.f32 0.0, %v4057
      %v4059 = vpop.f32.mrb[0].mxu0
      %v4060 = vpop.f32.mrb[0].mxu0
      %v4061 = vadd.f32 0.0, %v4060
      %v4062 = vpop.f32.mrb[0].mxu0
      %4063 = vdwg.mxu0
      %4064 = vrot.lane.b32.xlu0 %v598, 104
      %v4065 = vpop.permute.xlu0 %4064
      %4066 = vrot.lane.b32.xlu0 %v599, 104
      %v4067 = vpop.permute.xlu0 %4066
      %4068 = vrot.lane.b32.xlu0 %v600, 104
      %v4069 = vpop.permute.xlu0 %4068
      %4070 = vrot.lane.b32.xlu0 %v601, 104
      %v4071 = vpop.permute.xlu0 %4070
      %4072 = vrot.lane.b32.xlu0 %v614, 72
      %v4073 = vpop.permute.xlu0 %4072
      %4074 = vrot.lane.b32.xlu0 %v615, 72
      %v4075 = vpop.permute.xlu0 %4074
      %4076 = vrot.lane.b32.xlu0 %v616, 72
      %v4077 = vpop.permute.xlu0 %4076
      %4078 = vrot.lane.b32.xlu0 %v617, 72
      %v4079 = vpop.permute.xlu0 %4078
      %v4081 = vsel %vm642, %v4065, 0
      %v4084 = vsel %vm642, %v4067, 0
      %v4087 = vsel %vm642, %v4069, 0
      %v4090 = vsel %vm642, %v4071, 0
      %v4093 = vsel %vm642, %v4073, 0
      %v4096 = vsel %vm642, %v4075, 0
      %v4099 = vsel %vm642, %v4077, 0
      %v4102 = vsel %vm642, %v4079, 0
      %4104 = vmatprep.subr.bf16.mxu0 0
      %4105 = vmatpush1.bf16.xpose.msra.mxu0 %v4093
      %4106 = vmatprep.subr.bf16.mxu0 0
      %4107 = vmatpush1.bf16.xpose.msra.mxu0 %v4096
      %4108 = vmatprep.subr.bf16.mxu0 0
      %4109 = vmatpush1.bf16.xpose.msra.mxu0 %v4099
      %4110 = vmatprep.subr.bf16.mxu0 0
      %4111 = vmatpush1.bf16.xpose.msra.mxu0 %v4102
      %4112 = vmatprep.subr.bf16.mxu0 0
      %4113 = vmatpush1.bf16.xpose.msra.mxu0 0
      %4114 = vmatprep.subr.bf16.mxu0 0
      %4115 = vmatpush1.bf16.xpose.msra.mxu0 0
      %4116 = vmatprep.subr.bf16.mxu0 0
      %4117 = vmatpush1.bf16.xpose.msra.mxu0 0
      %4118 = vmatprep.subr.bf16.mxu0 0
      %4119 = vmatpush1.bf16.xpose.msra.mxu0 0
      %4120 = vmatprep.subr.bf16.mxu0 0
      %4121 = vmatpush1.bf16.xpose.msra.mxu0 0
      %4122 = vmatprep.subr.bf16.mxu0 0
      %4123 = vmatpush1.bf16.xpose.msra.mxu0 0
      %4124 = vmatprep.subr.bf16.mxu0 0
      %4125 = vmatpush1.bf16.xpose.msra.mxu0 0
      %4126 = vmatprep.subr.bf16.mxu0 0
      %4127 = vmatpush1.bf16.xpose.msra.mxu0 0
      %4128 = vmatprep.subr.bf16.mxu0 0
      %4129 = vmatpush1.bf16.xpose.msra.mxu0 0
      %4130 = vmatprep.subr.bf16.mxu0 0
      %4131 = vmatpush1.bf16.xpose.msra.mxu0 0
      %4132 = vmatprep.subr.bf16.mxu0 0
      %4133 = vmatpush1.bf16.xpose.msra.mxu0 0
      %4134 = vmatprep.subr.bf16.mxu0 0
      %4135 = vmatpush1.bf16.xpose.msra.mxu0 0
      %4136 = vmatprep.mubr.bf16.mxu0 0
      %4137 = vmatmul.mubr.bf16.gmra.mrb[0].mxu0 %v4081
      %v4138 = vpop.f32.mrb[0].mxu0
      %v4139 = vadd.f32 %v566, %v4138
      %v4140 = vpop.f32.mrb[0].mxu0
      %v4141 = vpop.f32.mrb[0].mxu0
      %v4142 = vadd.f32 %v567, %v4141
      %v4143 = vpop.f32.mrb[0].mxu0
      %4144 = vmatprep.mubr.bf16.mxu0 0
      %4145 = vmatmul.mubr.bf16.gmra.mrb[0].mxu0 %v4084
      %v4146 = vpop.f32.mrb[0].mxu0
      %v4147 = vadd.f32 %v568, %v4146
      %v4148 = vpop.f32.mrb[0].mxu0
      %v4149 = vpop.f32.mrb[0].mxu0
      %v4150 = vadd.f32 %v569, %v4149
      %v4151 = vpop.f32.mrb[0].mxu0
      %4152 = vmatprep.mubr.bf16.mxu0 0
      %4153 = vmatmul.mubr.bf16.gmra.mrb[0].mxu0 %v4087
      %v4154 = vpop.f32.mrb[0].mxu0
      %v4155 = vadd.f32 %v570, %v4154
      %v4156 = vpop.f32.mrb[0].mxu0
      %v4157 = vpop.f32.mrb[0].mxu0
      %v4158 = vadd.f32 %v571, %v4157
      %v4159 = vpop.f32.mrb[0].mxu0
      %4160 = vmatprep.mubr.bf16.mxu0 0
      %4161 = vmatmul.mubr.bf16.gmra.mrb[0].mxu0 %v4090
      %v4162 = vpop.f32.mrb[0].mxu0
      %v4163 = vadd.f32 %v572, %v4162
      %v4164 = vpop.f32.mrb[0].mxu0
      %v4165 = vpop.f32.mrb[0].mxu0
      %v4166 = vadd.f32 %v573, %v4165
      %v4167 = vpop.f32.mrb[0].mxu0
      %4168 = vdwg.mxu0
      %4169 = vrot.lane.b32.xlu0 %v602, 104
      %v4170 = vpop.permute.xlu0 %4169
      %4171 = vrot.lane.b32.xlu0 %v603, 104
      %v4172 = vpop.permute.xlu0 %4171
      %4173 = vrot.lane.b32.xlu0 %v604, 104
      %v4174 = vpop.permute.xlu0 %4173
      %4175 = vrot.lane.b32.xlu0 %v605, 104
      %v4176 = vpop.permute.xlu0 %4175
      %4177 = vrot.lane.b32.xlu0 %v618, 72
      %v4178 = vpop.permute.xlu0 %4177
      %4179 = vrot.lane.b32.xlu0 %v619, 72
      %v4180 = vpop.permute.xlu0 %4179
      %4181 = vrot.lane.b32.xlu0 %v620, 72
      %v4182 = vpop.permute.xlu0 %4181
      %4183 = vrot.lane.b32.xlu0 %v621, 72
      %v4184 = vpop.permute.xlu0 %4183
      %v4186 = vsel %vm642, %v4170, 0
      %v4189 = vsel %vm642, %v4172, 0
      %v4192 = vsel %vm642, %v4174, 0
      %v4195 = vsel %vm642, %v4176, 0
      %v4198 = vsel %vm642, %v4178, 0
      %v4201 = vsel %vm642, %v4180, 0
      %v4204 = vsel %vm642, %v4182, 0
      %v4207 = vsel %vm642, %v4184, 0
      %4209 = vmatprep.subr.bf16.mxu0 0
      %4210 = vmatpush1.bf16.xpose.msra.mxu0 %v4198
      %4211 = vmatprep.subr.bf16.mxu0 0
      %4212 = vmatpush1.bf16.xpose.msra.mxu0 %v4201
      %4213 = vmatprep.subr.bf16.mxu0 0
      %4214 = vmatpush1.bf16.xpose.msra.mxu0 %v4204
      %4215 = vmatprep.subr.bf16.mxu0 0
      %4216 = vmatpush1.bf16.xpose.msra.mxu0 %v4207
      %4217 = vmatprep.subr.bf16.mxu0 0
      %4218 = vmatpush1.bf16.xpose.msra.mxu0 0
      %4219 = vmatprep.subr.bf16.mxu0 0
      %4220 = vmatpush1.bf16.xpose.msra.mxu0 0
      %4221 = vmatprep.subr.bf16.mxu0 0
      %4222 = vmatpush1.bf16.xpose.msra.mxu0 0
      %4223 = vmatprep.subr.bf16.mxu0 0
      %4224 = vmatpush1.bf16.xpose.msra.mxu0 0
      %4225 = vmatprep.subr.bf16.mxu0 0
      %4226 = vmatpush1.bf16.xpose.msra.mxu0 0
      %4227 = vmatprep.subr.bf16.mxu0 0
      %4228 = vmatpush1.bf16.xpose.msra.mxu0 0
      %4229 = vmatprep.subr.bf16.mxu0 0
      %4230 = vmatpush1.bf16.xpose.msra.mxu0 0
      %4231 = vmatprep.subr.bf16.mxu0 0
      %4232 = vmatpush1.bf16.xpose.msra.mxu0 0
      %4233 = vmatprep.subr.bf16.mxu0 0
      %4234 = vmatpush1.bf16.xpose.msra.mxu0 0
      %4235 = vmatprep.subr.bf16.mxu0 0
      %4236 = vmatpush1.bf16.xpose.msra.mxu0 0
      %4237 = vmatprep.subr.bf16.mxu0 0
      %4238 = vmatpush1.bf16.xpose.msra.mxu0 0
      %4239 = vmatprep.subr.bf16.mxu0 0
      %4240 = vmatpush1.bf16.xpose.msra.mxu0 0
      %4241 = vmatprep.mubr.bf16.mxu0 0
      %4242 = vmatmul.mubr.bf16.gmra.mrb[0].mxu0 %v4186
      %v4243 = vpop.f32.mrb[0].mxu0
      %v4244 = vadd.f32 %v574, %v4243
      %v4245 = vpop.f32.mrb[0].mxu0
      %v4246 = vpop.f32.mrb[0].mxu0
      %v4247 = vadd.f32 %v575, %v4246
      %v4248 = vpop.f32.mrb[0].mxu0
      %4249 = vmatprep.mubr.bf16.mxu0 0
      %4250 = vmatmul.mubr.bf16.gmra.mrb[0].mxu0 %v4189
      %v4251 = vpop.f32.mrb[0].mxu0
      %v4252 = vadd.f32 %v576, %v4251
      %v4253 = vpop.f32.mrb[0].mxu0
      %v4254 = vpop.f32.mrb[0].mxu0
      %v4255 = vadd.f32 %v577, %v4254
      %v4256 = vpop.f32.mrb[0].mxu0
      %4257 = vmatprep.mubr.bf16.mxu0 0
      %4258 = vmatmul.mubr.bf16.gmra.mrb[0].mxu0 %v4192
      %v4259 = vpop.f32.mrb[0].mxu0
      %v4260 = vadd.f32 %v578, %v4259
      %v4261 = vpop.f32.mrb[0].mxu0
      %v4262 = vpop.f32.mrb[0].mxu0
      %v4263 = vadd.f32 %v579, %v4262
      %v4264 = vpop.f32.mrb[0].mxu0
      %4265 = vmatprep.mubr.bf16.mxu0 0
      %4266 = vmatmul.mubr.bf16.gmra.mrb[0].mxu0 %v4195
      %v4267 = vpop.f32.mrb[0].mxu0
      %v4268 = vadd.f32 %v580, %v4267
      %v4269 = vpop.f32.mrb[0].mxu0
      %v4270 = vpop.f32.mrb[0].mxu0
      %v4271 = vadd.f32 %v581, %v4270
      %v4272 = vpop.f32.mrb[0].mxu0
      %4273 = vdwg.mxu0
      %4274 = vrot.lane.b32.xlu0 %v606, 104
      %v4275 = vpop.permute.xlu0 %4274
      %4276 = vrot.lane.b32.xlu0 %v607, 104
      %v4277 = vpop.permute.xlu0 %4276
      %4278 = vrot.lane.b32.xlu0 %v608, 104
      %v4279 = vpop.permute.xlu0 %4278
      %4280 = vrot.lane.b32.xlu0 %v609, 104
      %v4281 = vpop.permute.xlu0 %4280
      %4282 = vrot.lane.b32.xlu0 %v622, 72
      %v4283 = vpop.permute.xlu0 %4282
      %4284 = vrot.lane.b32.xlu0 %v623, 72
      %v4285 = vpop.permute.xlu0 %4284
      %4286 = vrot.lane.b32.xlu0 %v624, 72
      %v4287 = vpop.permute.xlu0 %4286
      %4288 = vrot.lane.b32.xlu0 %v625, 72
      %v4289 = vpop.permute.xlu0 %4288
      %v4291 = vsel %vm642, %v4275, 0
      %v4294 = vsel %vm642, %v4277, 0
      %v4297 = vsel %vm642, %v4279, 0
      %v4300 = vsel %vm642, %v4281, 0
      %v4303 = vsel %vm642, %v4283, 0
      %v4306 = vsel %vm642, %v4285, 0
      %v4309 = vsel %vm642, %v4287, 0
      %v4312 = vsel %vm642, %v4289, 0
      %4314 = vmatprep.subr.bf16.mxu0 0
      %4315 = vmatpush1.bf16.xpose.msra.mxu0 %v4303
      %4316 = vmatprep.subr.bf16.mxu0 0
      %4317 = vmatpush1.bf16.xpose.msra.mxu0 %v4306
      %4318 = vmatprep.subr.bf16.mxu0 0
      %4319 = vmatpush1.bf16.xpose.msra.mxu0 %v4309
      %4320 = vmatprep.subr.bf16.mxu0 0
      %4321 = vmatpush1.bf16.xpose.msra.mxu0 %v4312
      %4322 = vmatprep.subr.bf16.mxu0 0
      %4323 = vmatpush1.bf16.xpose.msra.mxu0 0
      %4324 = vmatprep.subr.bf16.mxu0 0
      %4325 = vmatpush1.bf16.xpose.msra.mxu0 0
      %4326 = vmatprep.subr.bf16.mxu0 0
      %4327 = vmatpush1.bf16.xpose.msra.mxu0 0
      %4328 = vmatprep.subr.bf16.mxu0 0
      %4329 = vmatpush1.bf16.xpose.msra.mxu0 0
      %4330 = vmatprep.subr.bf16.mxu0 0
      %4331 = vmatpush1.bf16.xpose.msra.mxu0 0
      %4332 = vmatprep.subr.bf16.mxu0 0
      %4333 = vmatpush1.bf16.xpose.msra.mxu0 0
      %4334 = vmatprep.subr.bf16.mxu0 0
      %4335 = vmatpush1.bf16.xpose.msra.mxu0 0
      %4336 = vmatprep.subr.bf16.mxu0 0
      %4337 = vmatpush1.bf16.xpose.msra.mxu0 0
      %4338 = vmatprep.subr.bf16.mxu0 0
      %4339 = vmatpush1.bf16.xpose.msra.mxu0 0
      %4340 = vmatprep.subr.bf16.mxu0 0
      %4341 = vmatpush1.bf16.xpose.msra.mxu0 0
      %4342 = vmatprep.subr.bf16.mxu0 0
      %4343 = vmatpush1.bf16.xpose.msra.mxu0 0
      %4344 = vmatprep.subr.bf16.mxu0 0
      %4345 = vmatpush1.bf16.xpose.msra.mxu0 0
      %4346 = vmatprep.mubr.bf16.mxu0 0
      %4347 = vmatmul.mubr.bf16.gmra.mrb[0].mxu0 %v4291
      %v4348 = vpop.f32.mrb[0].mxu0
      %v4349 = vadd.f32 %v582, %v4348
      %v4350 = vpop.f32.mrb[0].mxu0
      %v4351 = vpop.f32.mrb[0].mxu0
      %v4352 = vadd.f32 %v583, %v4351
      %v4353 = vpop.f32.mrb[0].mxu0
      %4354 = vmatprep.mubr.bf16.mxu0 0
      %4355 = vmatmul.mubr.bf16.gmra.mrb[0].mxu0 %v4294
      %v4356 = vpop.f32.mrb[0].mxu0
      %v4357 = vadd.f32 %v584, %v4356
      %v4358 = vpop.f32.mrb[0].mxu0
      %v4359 = vpop.f32.mrb[0].mxu0
      %v4360 = vadd.f32 %v585, %v4359
      %v4361 = vpop.f32.mrb[0].mxu0
      %4362 = vmatprep.mubr.bf16.mxu0 0
      %4363 = vmatmul.mubr.bf16.gmra.mrb[0].mxu0 %v4297
      %v4364 = vpop.f32.mrb[0].mxu0
      %v4365 = vadd.f32 %v586, %v4364
      %v4366 = vpop.f32.mrb[0].mxu0
      %v4367 = vpop.f32.mrb[0].mxu0
      %v4368 = vadd.f32 %v587, %v4367
      %v4369 = vpop.f32.mrb[0].mxu0
      %4370 = vmatprep.mubr.bf16.mxu0 0
      %4371 = vmatmul.mubr.bf16.gmra.mrb[0].mxu0 %v4300
      %v4372 = vpop.f32.mrb[0].mxu0
      %v4373 = vadd.f32 %v588, %v4372
      %v4374 = vpop.f32.mrb[0].mxu0
      %v4375 = vpop.f32.mrb[0].mxu0
      %v4376 = vadd.f32 %v589, %v4375
      %v4377 = vpop.f32.mrb[0].mxu0
      %4378 = vdwg.mxu0
      %4379 = vrot.lane.b32.xlu0 %v610, 104
      %v4380 = vpop.permute.xlu0 %4379
      %4381 = vrot.lane.b32.xlu0 %v611, 104
      %v4382 = vpop.permute.xlu0 %4381
      %4383 = vrot.lane.b32.xlu0 %v612, 104
      %v4384 = vpop.permute.xlu0 %4383
      %4385 = vrot.lane.b32.xlu0 %v613, 104
      %v4386 = vpop.permute.xlu0 %4385
      %4387 = vrot.lane.b32.xlu0 %v626, 72
      %v4388 = vpop.permute.xlu0 %4387
      %4389 = vrot.lane.b32.xlu0 %v627, 72
      %v4390 = vpop.permute.xlu0 %4389
      %4391 = vrot.lane.b32.xlu0 %v628, 72
      %v4392 = vpop.permute.xlu0 %4391
      %4393 = vrot.lane.b32.xlu0 %v629, 72
      %v4394 = vpop.permute.xlu0 %4393
      %v4396 = vsel %vm642, %v4380, 0
      %v4399 = vsel %vm642, %v4382, 0
      %v4402 = vsel %vm642, %v4384, 0
      %v4405 = vsel %vm642, %v4386, 0
      %v4408 = vsel %vm642, %v4388, 0
      %v4411 = vsel %vm642, %v4390, 0
      %v4414 = vsel %vm642, %v4392, 0
      %v4417 = vsel %vm642, %v4394, 0
      %4419 = vmatprep.subr.bf16.mxu0 0
      %4420 = vmatpush1.bf16.xpose.msra.mxu0 %v4408
      %4421 = vmatprep.subr.bf16.mxu0 0
      %4422 = vmatpush1.bf16.xpose.msra.mxu0 %v4411
      %4423 = vmatprep.subr.bf16.mxu0 0
      %4424 = vmatpush1.bf16.xpose.msra.mxu0 %v4414
      %4425 = vmatprep.subr.bf16.mxu0 0
      %4426 = vmatpush1.bf16.xpose.msra.mxu0 %v4417
      %4427 = vmatprep.subr.bf16.mxu0 0
      %4428 = vmatpush1.bf16.xpose.msra.mxu0 0
      %4429 = vmatprep.subr.bf16.mxu0 0
      %4430 = vmatpush1.bf16.xpose.msra.mxu0 0
      %4431 = vmatprep.subr.bf16.mxu0 0
      %4432 = vmatpush1.bf16.xpose.msra.mxu0 0
      %4433 = vmatprep.subr.bf16.mxu0 0
      %4434 = vmatpush1.bf16.xpose.msra.mxu0 0
      %4435 = vmatprep.subr.bf16.mxu0 0
      %4436 = vmatpush1.bf16.xpose.msra.mxu0 0
      %4437 = vmatprep.subr.bf16.mxu0 0
      %4438 = vmatpush1.bf16.xpose.msra.mxu0 0
      %4439 = vmatprep.subr.bf16.mxu0 0
      %4440 = vmatpush1.bf16.xpose.msra.mxu0 0
      %4441 = vmatprep.subr.bf16.mxu0 0
      %4442 = vmatpush1.bf16.xpose.msra.mxu0 0
      %4443 = vmatprep.subr.bf16.mxu0 0
      %4444 = vmatpush1.bf16.xpose.msra.mxu0 0
      %4445 = vmatprep.subr.bf16.mxu0 0
      %4446 = vmatpush1.bf16.xpose.msra.mxu0 0
      %4447 = vmatprep.subr.bf16.mxu0 0
      %4448 = vmatpush1.bf16.xpose.msra.mxu0 0
      %4449 = vmatprep.subr.bf16.mxu0 0
      %4450 = vmatpush1.bf16.xpose.msra.mxu0 0
      %4451 = vmatprep.mubr.bf16.mxu0 0
      %4452 = vmatmul.mubr.bf16.gmra.mrb[0].mxu0 %v4396
      %v4453 = vpop.f32.mrb[0].mxu0
      %v4454 = vadd.f32 %v590, %v4453
      %v4455 = vpop.f32.mrb[0].mxu0
      %v4456 = vpop.f32.mrb[0].mxu0
      %v4457 = vadd.f32 %v591, %v4456
      %v4458 = vpop.f32.mrb[0].mxu0
      %4459 = vmatprep.mubr.bf16.mxu0 0
      %4460 = vmatmul.mubr.bf16.gmra.mrb[0].mxu0 %v4399
      %v4461 = vpop.f32.mrb[0].mxu0
      %v4462 = vadd.f32 %v592, %v4461
      %v4463 = vpop.f32.mrb[0].mxu0
      %v4464 = vpop.f32.mrb[0].mxu0
      %v4465 = vadd.f32 %v593, %v4464
      %v4466 = vpop.f32.mrb[0].mxu0
      %4467 = vmatprep.mubr.bf16.mxu0 0
      %4468 = vmatmul.mubr.bf16.gmra.mrb[0].mxu0 %v4402
      %v4469 = vpop.f32.mrb[0].mxu0
      %v4470 = vadd.f32 %v594, %v4469
      %v4471 = vpop.f32.mrb[0].mxu0
      %v4472 = vpop.f32.mrb[0].mxu0
      %v4473 = vadd.f32 %v595, %v4472
      %v4474 = vpop.f32.mrb[0].mxu0
      %4475 = vmatprep.mubr.bf16.mxu0 0
      %4476 = vmatmul.mubr.bf16.gmra.mrb[0].mxu0 %v4405
      %v4477 = vpop.f32.mrb[0].mxu0
      %v4478 = vadd.f32 %v596, %v4477
      %v4479 = vpop.f32.mrb[0].mxu0
      %v4480 = vpop.f32.mrb[0].mxu0
      %v4481 = vadd.f32 %v597, %v4480
      %v4482 = vpop.f32.mrb[0].mxu0
      %4483 = vdwg.mxu0
      %v4484 = vsel %vm1035, %v4139, -inf
      %4485 = vmax.xlane.f32.xlu0 %v4484
      %v4486 = vpop.xlane.xlu0 %4485
      %v4487 = vsel %vm1035, %v4142, -inf
      %4488 = vmax.xlane.f32.xlu0 %v4487
      %v4489 = vpop.xlane.xlu0 %4488
      %v4490 = vsel %vm1035, %v4147, -inf
      %4491 = vmax.xlane.f32.xlu0 %v4490
      %v4492 = vpop.xlane.xlu0 %4491
      %v4493 = vsel %vm1035, %v4150, -inf
      %4494 = vmax.xlane.f32.xlu0 %v4493
      %v4495 = vpop.xlane.xlu0 %4494
      %v4496 = vsel %vm1035, %v4155, -inf
      %4497 = vmax.xlane.f32.xlu0 %v4496
      %v4498 = vpop.xlane.xlu0 %4497
      %v4499 = vsel %vm1035, %v4158, -inf
      %4500 = vmax.xlane.f32.xlu0 %v4499
      %v4501 = vpop.xlane.xlu0 %4500
      %v4502 = vsel %vm1035, %v4163, -inf
      %4503 = vmax.xlane.f32.xlu0 %v4502
      %v4504 = vpop.xlane.xlu0 %4503
      %v4505 = vsel %vm1035, %v4166, -inf
      %4506 = vmax.xlane.f32.xlu0 %v4505
      %v4507 = vpop.xlane.xlu0 %4506
      %v4508 = vsel %vm1035, %v4244, -inf
      %4509 = vmax.xlane.f32.xlu0 %v4508
      %v4510 = vpop.xlane.xlu0 %4509
      %v4511 = vsel %vm1035, %v4247, -inf
      %4512 = vmax.xlane.f32.xlu0 %v4511
      %v4513 = vpop.xlane.xlu0 %4512
      %v4514 = vsel %vm1035, %v4252, -inf
      %4515 = vmax.xlane.f32.xlu0 %v4514
      %v4516 = vpop.xlane.xlu0 %4515
      %v4517 = vsel %vm1035, %v4255, -inf
      %4518 = vmax.xlane.f32.xlu0 %v4517
      %v4519 = vpop.xlane.xlu0 %4518
      %v4520 = vsel %vm1035, %v4260, -inf
      %4521 = vmax.xlane.f32.xlu0 %v4520
      %v4522 = vpop.xlane.xlu0 %4521
      %v4523 = vsel %vm1035, %v4263, -inf
      %4524 = vmax.xlane.f32.xlu0 %v4523
      %v4525 = vpop.xlane.xlu0 %4524
      %v4526 = vsel %vm1035, %v4268, -inf
      %4527 = vmax.xlane.f32.xlu0 %v4526
      %v4528 = vpop.xlane.xlu0 %4527
      %v4529 = vsel %vm1035, %v4271, -inf
      %4530 = vmax.xlane.f32.xlu0 %v4529
      %v4531 = vpop.xlane.xlu0 %4530
      %v4532 = vsel %vm1035, %v4349, -inf
      %4533 = vmax.xlane.f32.xlu0 %v4532
      %v4534 = vpop.xlane.xlu0 %4533
      %v4535 = vsel %vm1035, %v4352, -inf
      %4536 = vmax.xlane.f32.xlu0 %v4535
      %v4537 = vpop.xlane.xlu0 %4536
      %v4538 = vsel %vm1035, %v4357, -inf
      %4539 = vmax.xlane.f32.xlu0 %v4538
      %v4540 = vpop.xlane.xlu0 %4539
      %v4541 = vsel %vm1035, %v4360, -inf
      %4542 = vmax.xlane.f32.xlu0 %v4541
      %v4543 = vpop.xlane.xlu0 %4542
      %v4544 = vsel %vm1035, %v4365, -inf
      %4545 = vmax.xlane.f32.xlu0 %v4544
      %v4546 = vpop.xlane.xlu0 %4545
      %v4547 = vsel %vm1035, %v4368, -inf
      %4548 = vmax.xlane.f32.xlu0 %v4547
      %v4549 = vpop.xlane.xlu0 %4548
      %v4550 = vsel %vm1035, %v4373, -inf
      %4551 = vmax.xlane.f32.xlu0 %v4550
      %v4552 = vpop.xlane.xlu0 %4551
      %v4553 = vsel %vm1035, %v4376, -inf
      %4554 = vmax.xlane.f32.xlu0 %v4553
      %v4555 = vpop.xlane.xlu0 %4554
      %v4556 = vsel %vm1035, %v4454, -inf
      %4557 = vmax.xlane.f32.xlu0 %v4556
      %v4558 = vpop.xlane.xlu0 %4557
      %v4559 = vsel %vm1035, %v4457, -inf
      %4560 = vmax.xlane.f32.xlu0 %v4559
      %v4561 = vpop.xlane.xlu0 %4560
      %v4562 = vsel %vm1035, %v4462, -inf
      %4563 = vmax.xlane.f32.xlu0 %v4562
      %v4564 = vpop.xlane.xlu0 %4563
      %v4565 = vsel %vm1035, %v4465, -inf
      %4566 = vmax.xlane.f32.xlu0 %v4565
      %v4567 = vpop.xlane.xlu0 %4566
      %v4568 = vsel %vm1035, %v4470, -inf
      %4569 = vmax.xlane.f32.xlu0 %v4568
      %v4570 = vpop.xlane.xlu0 %4569
      %v4571 = vsel %vm1035, %v4473, -inf
      %4572 = vmax.xlane.f32.xlu0 %v4571
      %v4573 = vpop.xlane.xlu0 %4572
      %v4574 = vsel %vm1035, %v4478, -inf
      %4575 = vmax.xlane.f32.xlu0 %v4574
      %v4576 = vpop.xlane.xlu0 %4575
      %v4577 = vsel %vm1035, %v4481, -inf
      %4578 = vmax.xlane.f32.xlu0 %v4577
      %v4579 = vpop.xlane.xlu0 %4578
      %v4580 = vsub.f32 %v4139, %v4486
      %v4581 = vsub.f32 %v4142, %v4489
      %v4582 = vsub.f32 %v4147, %v4492
      %v4583 = vsub.f32 %v4150, %v4495
      %v4584 = vsub.f32 %v4155, %v4498
      %v4585 = vsub.f32 %v4158, %v4501
      %v4586 = vsub.f32 %v4163, %v4504
      %v4587 = vsub.f32 %v4166, %v4507
      %v4588 = vsub.f32 %v4244, %v4510
      %v4589 = vsub.f32 %v4247, %v4513
      %v4590 = vsub.f32 %v4252, %v4516
      %v4591 = vsub.f32 %v4255, %v4519
      %v4592 = vsub.f32 %v4260, %v4522
      %v4593 = vsub.f32 %v4263, %v4525
      %v4594 = vsub.f32 %v4268, %v4528
      %v4595 = vsub.f32 %v4271, %v4531
      %v4596 = vsub.f32 %v4349, %v4534
      %v4597 = vsub.f32 %v4352, %v4537
      %v4598 = vsub.f32 %v4357, %v4540
      %v4599 = vsub.f32 %v4360, %v4543
      %v4600 = vsub.f32 %v4365, %v4546
      %v4601 = vsub.f32 %v4368, %v4549
      %v4602 = vsub.f32 %v4373, %v4552
      %v4603 = vsub.f32 %v4376, %v4555
      %v4604 = vsub.f32 %v4454, %v4558
      %v4605 = vsub.f32 %v4457, %v4561
      %v4606 = vsub.f32 %v4462, %v4564
      %v4607 = vsub.f32 %v4465, %v4567
      %v4608 = vsub.f32 %v4470, %v4570
      %v4609 = vsub.f32 %v4473, %v4573
      %v4610 = vsub.f32 %v4478, %v4576
      %v4611 = vsub.f32 %v4481, %v4579
      %v4612 = vmul.f32 %v4580, 1.442695
      %v4613 = vpow.pop %v4612
      %v4614 = vmul.f32 %v4581, 1.442695
      %v4615 = vpow.pop %v4614
      %v4616 = vmul.f32 %v4582, 1.442695
      %v4617 = vpow.pop %v4616
      %v4618 = vmul.f32 %v4583, 1.442695
      %v4619 = vpow.pop %v4618
      %v4620 = vmul.f32 %v4584, 1.442695
      %v4621 = vpow.pop %v4620
      %v4622 = vmul.f32 %v4585, 1.442695
      %v4623 = vpow.pop %v4622
      %v4624 = vmul.f32 %v4586, 1.442695
      %v4625 = vpow.pop %v4624
      %v4626 = vmul.f32 %v4587, 1.442695
      %v4627 = vpow.pop %v4626
      %v4628 = vmul.f32 %v4588, 1.442695
      %v4629 = vpow.pop %v4628
      %v4630 = vmul.f32 %v4589, 1.442695
      %v4631 = vpow.pop %v4630
      %v4632 = vmul.f32 %v4590, 1.442695
      %v4633 = vpow.pop %v4632
      %v4634 = vmul.f32 %v4591, 1.442695
      %v4635 = vpow.pop %v4634
      %v4636 = vmul.f32 %v4592, 1.442695
      %v4637 = vpow.pop %v4636
      %v4638 = vmul.f32 %v4593, 1.442695
      %v4639 = vpow.pop %v4638
      %v4640 = vmul.f32 %v4594, 1.442695
      %v4641 = vpow.pop %v4640
      %v4642 = vmul.f32 %v4595, 1.442695
      %v4643 = vpow.pop %v4642
      %v4644 = vmul.f32 %v4596, 1.442695
      %v4645 = vpow.pop %v4644
      %v4646 = vmul.f32 %v4597, 1.442695
      %v4647 = vpow.pop %v4646
      %v4648 = vmul.f32 %v4598, 1.442695
      %v4649 = vpow.pop %v4648
      %v4650 = vmul.f32 %v4599, 1.442695
      %v4651 = vpow.pop %v4650
      %v4652 = vmul.f32 %v4600, 1.442695
      %v4653 = vpow.pop %v4652
      %v4654 = vmul.f32 %v4601, 1.442695
      %v4655 = vpow.pop %v4654
      %v4656 = vmul.f32 %v4602, 1.442695
      %v4657 = vpow.pop %v4656
      %v4658 = vmul.f32 %v4603, 1.442695
      %v4659 = vpow.pop %v4658
      %v4660 = vmul.f32 %v4604, 1.442695
      %v4661 = vpow.pop %v4660
      %v4662 = vmul.f32 %v4605, 1.442695
      %v4663 = vpow.pop %v4662
      %v4664 = vmul.f32 %v4606, 1.442695
      %v4665 = vpow.pop %v4664
      %v4666 = vmul.f32 %v4607, 1.442695
      %v4667 = vpow.pop %v4666
      %v4668 = vmul.f32 %v4608, 1.442695
      %v4669 = vpow.pop %v4668
      %v4670 = vmul.f32 %v4609, 1.442695
      %v4671 = vpow.pop %v4670
      %v4672 = vmul.f32 %v4610, 1.442695
      %v4673 = vpow.pop %v4672
      %v4674 = vmul.f32 %v4611, 1.442695
      %v4675 = vpow.pop %v4674
      %v4676 = vsel %vm1035, %v4613, 0.0
      %4677 = vadd.xlane.f32.xlu0 %v4676
      %v4678 = vpop.xlane.xlu0 %4677
      %v4679 = vsel %vm1035, %v4615, 0.0
      %4680 = vadd.xlane.f32.xlu0 %v4679
      %v4681 = vpop.xlane.xlu0 %4680
      %v4682 = vsel %vm1035, %v4617, 0.0
      %4683 = vadd.xlane.f32.xlu0 %v4682
      %v4684 = vpop.xlane.xlu0 %4683
      %v4685 = vsel %vm1035, %v4619, 0.0
      %4686 = vadd.xlane.f32.xlu0 %v4685
      %v4687 = vpop.xlane.xlu0 %4686
      %v4688 = vsel %vm1035, %v4621, 0.0
      %4689 = vadd.xlane.f32.xlu0 %v4688
      %v4690 = vpop.xlane.xlu0 %4689
      %v4691 = vsel %vm1035, %v4623, 0.0
      %4692 = vadd.xlane.f32.xlu0 %v4691
      %v4693 = vpop.xlane.xlu0 %4692
      %v4694 = vsel %vm1035, %v4625, 0.0
      %4695 = vadd.xlane.f32.xlu0 %v4694
      %v4696 = vpop.xlane.xlu0 %4695
      %v4697 = vsel %vm1035, %v4627, 0.0
      %4698 = vadd.xlane.f32.xlu0 %v4697
      %v4699 = vpop.xlane.xlu0 %4698
      %v4700 = vsel %vm1035, %v4629, 0.0
      %4701 = vadd.xlane.f32.xlu0 %v4700
      %v4702 = vpop.xlane.xlu0 %4701
      %v4703 = vsel %vm1035, %v4631, 0.0
      %4704 = vadd.xlane.f32.xlu0 %v4703
      %v4705 = vpop.xlane.xlu0 %4704
      %v4706 = vsel %vm1035, %v4633, 0.0
      %4707 = vadd.xlane.f32.xlu0 %v4706
      %v4708 = vpop.xlane.xlu0 %4707
      %v4709 = vsel %vm1035, %v4635, 0.0
      %4710 = vadd.xlane.f32.xlu0 %v4709
      %v4711 = vpop.xlane.xlu0 %4710
      %v4712 = vsel %vm1035, %v4637, 0.0
      %4713 = vadd.xlane.f32.xlu0 %v4712
      %v4714 = vpop.xlane.xlu0 %4713
      %v4715 = vsel %vm1035, %v4639, 0.0
      %4716 = vadd.xlane.f32.xlu0 %v4715
      %v4717 = vpop.xlane.xlu0 %4716
      %v4718 = vsel %vm1035, %v4641, 0.0
      %4719 = vadd.xlane.f32.xlu0 %v4718
      %v4720 = vpop.xlane.xlu0 %4719
      %v4721 = vsel %vm1035, %v4643, 0.0
      %4722 = vadd.xlane.f32.xlu0 %v4721
      %v4723 = vpop.xlane.xlu0 %4722
      %v4724 = vsel %vm1035, %v4645, 0.0
      %4725 = vadd.xlane.f32.xlu0 %v4724
      %v4726 = vpop.xlane.xlu0 %4725
      %v4727 = vsel %vm1035, %v4647, 0.0
      %4728 = vadd.xlane.f32.xlu0 %v4727
      %v4729 = vpop.xlane.xlu0 %4728
      %v4730 = vsel %vm1035, %v4649, 0.0
      %4731 = vadd.xlane.f32.xlu0 %v4730
      %v4732 = vpop.xlane.xlu0 %4731
      %v4733 = vsel %vm1035, %v4651, 0.0
      %4734 = vadd.xlane.f32.xlu0 %v4733
      %v4735 = vpop.xlane.xlu0 %4734
      %v4736 = vsel %vm1035, %v4653, 0.0
      %4737 = vadd.xlane.f32.xlu0 %v4736
      %v4738 = vpop.xlane.xlu0 %4737
      %v4739 = vsel %vm1035, %v4655, 0.0
      %4740 = vadd.xlane.f32.xlu0 %v4739
      %v4741 = vpop.xlane.xlu0 %4740
      %v4742 = vsel %vm1035, %v4657, 0.0
      %4743 = vadd.xlane.f32.xlu0 %v4742
      %v4744 = vpop.xlane.xlu0 %4743
      %v4745 = vsel %vm1035, %v4659, 0.0
      %4746 = vadd.xlane.f32.xlu0 %v4745
      %v4747 = vpop.xlane.xlu0 %4746
      %v4748 = vsel %vm1035, %v4661, 0.0
      %4749 = vadd.xlane.f32.xlu0 %v4748
      %v4750 = vpop.xlane.xlu0 %4749
      %v4751 = vsel %vm1035, %v4663, 0.0
      %4752 = vadd.xlane.f32.xlu0 %v4751
      %v4753 = vpop.xlane.xlu0 %4752
      %v4754 = vsel %vm1035, %v4665, 0.0
      %4755 = vadd.xlane.f32.xlu0 %v4754
      %v4756 = vpop.xlane.xlu0 %4755
      %v4757 = vsel %vm1035, %v4667, 0.0
      %4758 = vadd.xlane.f32.xlu0 %v4757
      %v4759 = vpop.xlane.xlu0 %4758
      %v4760 = vsel %vm1035, %v4669, 0.0
      %4761 = vadd.xlane.f32.xlu0 %v4760
      %v4762 = vpop.xlane.xlu0 %4761
      %v4763 = vsel %vm1035, %v4671, 0.0
      %4764 = vadd.xlane.f32.xlu0 %v4763
      %v4765 = vpop.xlane.xlu0 %4764
      %v4766 = vsel %vm1035, %v4673, 0.0
      %4767 = vadd.xlane.f32.xlu0 %v4766
      %v4768 = vpop.xlane.xlu0 %4767
      %v4769 = vsel %vm1035, %v4675, 0.0
      %4770 = vadd.xlane.f32.xlu0 %v4769
      %v4771 = vpop.xlane.xlu0 %4770
      %v4772 = vrcp.pop %v4678
      %v4773 = vrcp.pop %v4681
      %v4774 = vrcp.pop %v4684
      %v4775 = vrcp.pop %v4687
      %v4776 = vrcp.pop %v4690
      %v4777 = vrcp.pop %v4693
      %v4778 = vrcp.pop %v4696
      %v4779 = vrcp.pop %v4699
      %v4780 = vrcp.pop %v4702
      %v4781 = vrcp.pop %v4705
      %v4782 = vrcp.pop %v4708
      %v4783 = vrcp.pop %v4711
      %v4784 = vrcp.pop %v4714
      %v4785 = vrcp.pop %v4717
      %v4786 = vrcp.pop %v4720
      %v4787 = vrcp.pop %v4723
      %v4788 = vrcp.pop %v4726
      %v4789 = vrcp.pop %v4729
      %v4790 = vrcp.pop %v4732
      %v4791 = vrcp.pop %v4735
      %v4792 = vrcp.pop %v4738
      %v4793 = vrcp.pop %v4741
      %v4794 = vrcp.pop %v4744
      %v4795 = vrcp.pop %v4747
      %v4796 = vrcp.pop %v4750
      %v4797 = vrcp.pop %v4753
      %v4798 = vrcp.pop %v4756
      %v4799 = vrcp.pop %v4759
      %v4800 = vrcp.pop %v4762
      %v4801 = vrcp.pop %v4765
      %v4802 = vrcp.pop %v4768
      %v4803 = vrcp.pop %v4771
      %v4804 = vmul.f32 %v4613, %v4772
      %v4805 = vmul.f32 %v4615, %v4773
      %v4806 = vmul.f32 %v4617, %v4774
      %v4807 = vmul.f32 %v4619, %v4775
      %v4808 = vmul.f32 %v4621, %v4776
      %v4809 = vmul.f32 %v4623, %v4777
      %v4810 = vmul.f32 %v4625, %v4778
      %v4811 = vmul.f32 %v4627, %v4779
      %v4812 = vmul.f32 %v4629, %v4780
      %v4813 = vmul.f32 %v4631, %v4781
      %v4814 = vmul.f32 %v4633, %v4782
      %v4815 = vmul.f32 %v4635, %v4783
      %v4816 = vmul.f32 %v4637, %v4784
      %v4817 = vmul.f32 %v4639, %v4785
      %v4818 = vmul.f32 %v4641, %v4786
      %v4819 = vmul.f32 %v4643, %v4787
      %v4820 = vmul.f32 %v4645, %v4788
      %v4821 = vmul.f32 %v4647, %v4789
      %v4822 = vmul.f32 %v4649, %v4790
      %v4823 = vmul.f32 %v4651, %v4791
      %v4824 = vmul.f32 %v4653, %v4792
      %v4825 = vmul.f32 %v4655, %v4793
      %v4826 = vmul.f32 %v4657, %v4794
      %v4827 = vmul.f32 %v4659, %v4795
      %v4828 = vmul.f32 %v4661, %v4796
      %v4829 = vmul.f32 %v4663, %v4797
      %v4830 = vmul.f32 %v4665, %v4798
      %v4831 = vmul.f32 %v4667, %v4799
      %v4832 = vmul.f32 %v4669, %v4800
      %v4833 = vmul.f32 %v4671, %v4801
      %v4834 = vmul.f32 %v4673, %v4802
      %v4835 = vmul.f32 %v4675, %v4803
      %v4836 = vpack.c.bf16 %v4805, %v4804
      %v4837 = vpack.c.bf16 %v4807, %v4806
      %v4838 = vpack.c.bf16 %v4809, %v4808
      %v4839 = vpack.c.bf16 %v4811, %v4810
      %v4840 = vpack.c.bf16 %v4813, %v4812
      %v4841 = vpack.c.bf16 %v4815, %v4814
      %v4842 = vpack.c.bf16 %v4817, %v4816
      %v4843 = vpack.c.bf16 %v4819, %v4818
      %v4844 = vpack.c.bf16 %v4821, %v4820
      %v4845 = vpack.c.bf16 %v4823, %v4822
      %v4846 = vpack.c.bf16 %v4825, %v4824
      %v4847 = vpack.c.bf16 %v4827, %v4826
      %v4848 = vpack.c.bf16 %v4829, %v4828
      %v4849 = vpack.c.bf16 %v4831, %v4830
      %v4850 = vpack.c.bf16 %v4833, %v4832
      %v4851 = vpack.c.bf16 %v4835, %v4834
      %4852 = vrot.lane.b32.xlu0 %v614, 40
      %v4853 = vpop.permute.xlu0 %4852
      %4854 = vrot.lane.b32.xlu0 %v615, 40
      %v4855 = vpop.permute.xlu0 %4854
      %4856 = vrot.lane.b32.xlu0 %v616, 40
      %v4857 = vpop.permute.xlu0 %4856
      %4858 = vrot.lane.b32.xlu0 %v617, 40
      %v4859 = vpop.permute.xlu0 %4858
      %v4865 = vsel %vm1035, %v4836, 0
      %v4868 = vsel %vm1035, %v4837, 0
      %v4871 = vsel %vm1035, %v4838, 0
      %v4874 = vsel %vm1035, %v4839, 0
      %4876 = vmatprep.subr.bf16.mxu0 0
      %4877 = vmatpush1.bf16.msra.mxu0 %v4853
      %4878 = vmatprep.subr.bf16.mxu0 0
      %4879 = vmatpush1.bf16.msra.mxu0 %v4855
      %4880 = vmatprep.subr.bf16.mxu0 0
      %4881 = vmatpush1.bf16.msra.mxu0 %v4857
      %4882 = vmatprep.subr.bf16.mxu0 0
      %4883 = vmatpush1.bf16.msra.mxu0 %v4859
      %4884 = vmatprep.subr.bf16.mxu0 0
      %4885 = vmatpush1.bf16.msra.mxu0 0
      %4886 = vmatprep.subr.bf16.mxu0 0
      %4887 = vmatpush1.bf16.msra.mxu0 0
      %4888 = vmatprep.subr.bf16.mxu0 0
      %4889 = vmatpush1.bf16.msra.mxu0 0
      %4890 = vmatprep.subr.bf16.mxu0 0
      %4891 = vmatpush1.bf16.msra.mxu0 0
      %4892 = vmatprep.subr.bf16.mxu0 0
      %4893 = vmatpush1.bf16.msra.mxu0 0
      %4894 = vmatprep.subr.bf16.mxu0 0
      %4895 = vmatpush1.bf16.msra.mxu0 0
      %4896 = vmatprep.subr.bf16.mxu0 0
      %4897 = vmatpush1.bf16.msra.mxu0 0
      %4898 = vmatprep.subr.bf16.mxu0 0
      %4899 = vmatpush1.bf16.msra.mxu0 0
      %4900 = vmatprep.subr.bf16.mxu0 0
      %4901 = vmatpush1.bf16.msra.mxu0 0
      %4902 = vmatprep.subr.bf16.mxu0 0
      %4903 = vmatpush1.bf16.msra.mxu0 0
      %4904 = vmatprep.subr.bf16.mxu0 0
      %4905 = vmatpush1.bf16.msra.mxu0 0
      %4906 = vmatprep.subr.bf16.mxu0 0
      %4907 = vmatpush1.bf16.msra.mxu0 0
      %4908 = vmatprep.mubr.bf16.mxu0 0
      %4909 = vmatmul.mubr.bf16.gmra.mrb[0].mxu0 %v4865
      %v4910 = vpop.f32.mrb[0].mxu0
      %v4911 = vadd.f32 0.0, %v4910
      %v4912 = vpop.f32.mrb[0].mxu0
      %v4913 = vpop.f32.mrb[0].mxu0
      %v4914 = vadd.f32 0.0, %v4913
      %v4915 = vpop.f32.mrb[0].mxu0
      %4916 = vmatprep.mubr.bf16.mxu0 0
      %4917 = vmatmul.mubr.bf16.gmra.mrb[0].mxu0 %v4868
      %v4918 = vpop.f32.mrb[0].mxu0
      %v4919 = vadd.f32 0.0, %v4918
      %v4920 = vpop.f32.mrb[0].mxu0
      %v4921 = vpop.f32.mrb[0].mxu0
      %v4922 = vadd.f32 0.0, %v4921
      %v4923 = vpop.f32.mrb[0].mxu0
      %4924 = vmatprep.mubr.bf16.mxu0 0
      %4925 = vmatmul.mubr.bf16.gmra.mrb[0].mxu0 %v4871
      %v4926 = vpop.f32.mrb[0].mxu0
      %v4927 = vadd.f32 0.0, %v4926
      %v4928 = vpop.f32.mrb[0].mxu0
      %v4929 = vpop.f32.mrb[0].mxu0
      %v4930 = vadd.f32 0.0, %v4929
      %v4931 = vpop.f32.mrb[0].mxu0
      %4932 = vmatprep.mubr.bf16.mxu0 0
      %4933 = vmatmul.mubr.bf16.gmra.mrb[0].mxu0 %v4874
      %v4934 = vpop.f32.mrb[0].mxu0
      %v4935 = vadd.f32 0.0, %v4934
      %v4936 = vpop.f32.mrb[0].mxu0
      %v4937 = vpop.f32.mrb[0].mxu0
      %v4938 = vadd.f32 0.0, %v4937
      %v4939 = vpop.f32.mrb[0].mxu0
      %4940 = vdwg.mxu0
      %4941 = vrot.lane.b32.xlu0 %v618, 40
      %v4942 = vpop.permute.xlu0 %4941
      %4943 = vrot.lane.b32.xlu0 %v619, 40
      %v4944 = vpop.permute.xlu0 %4943
      %4945 = vrot.lane.b32.xlu0 %v620, 40
      %v4946 = vpop.permute.xlu0 %4945
      %4947 = vrot.lane.b32.xlu0 %v621, 40
      %v4948 = vpop.permute.xlu0 %4947
      %v4954 = vsel %vm1035, %v4840, 0
      %v4957 = vsel %vm1035, %v4841, 0
      %v4960 = vsel %vm1035, %v4842, 0
      %v4963 = vsel %vm1035, %v4843, 0
      %4965 = vmatprep.subr.bf16.mxu0 0
      %4966 = vmatpush1.bf16.msra.mxu0 %v4942
      %4967 = vmatprep.subr.bf16.mxu0 0
      %4968 = vmatpush1.bf16.msra.mxu0 %v4944
      %4969 = vmatprep.subr.bf16.mxu0 0
      %4970 = vmatpush1.bf16.msra.mxu0 %v4946
      %4971 = vmatprep.subr.bf16.mxu0 0
      %4972 = vmatpush1.bf16.msra.mxu0 %v4948
      %4973 = vmatprep.subr.bf16.mxu0 0
      %4974 = vmatpush1.bf16.msra.mxu0 0
      %4975 = vmatprep.subr.bf16.mxu0 0
      %4976 = vmatpush1.bf16.msra.mxu0 0
      %4977 = vmatprep.subr.bf16.mxu0 0
      %4978 = vmatpush1.bf16.msra.mxu0 0
      %4979 = vmatprep.subr.bf16.mxu0 0
      %4980 = vmatpush1.bf16.msra.mxu0 0
      %4981 = vmatprep.subr.bf16.mxu0 0
      %4982 = vmatpush1.bf16.msra.mxu0 0
      %4983 = vmatprep.subr.bf16.mxu0 0
      %4984 = vmatpush1.bf16.msra.mxu0 0
      %4985 = vmatprep.subr.bf16.mxu0 0
      %4986 = vmatpush1.bf16.msra.mxu0 0
      %4987 = vmatprep.subr.bf16.mxu0 0
      %4988 = vmatpush1.bf16.msra.mxu0 0
      %4989 = vmatprep.subr.bf16.mxu0 0
      %4990 = vmatpush1.bf16.msra.mxu0 0
      %4991 = vmatprep.subr.bf16.mxu0 0
      %4992 = vmatpush1.bf16.msra.mxu0 0
      %4993 = vmatprep.subr.bf16.mxu0 0
      %4994 = vmatpush1.bf16.msra.mxu0 0
      %4995 = vmatprep.subr.bf16.mxu0 0
      %4996 = vmatpush1.bf16.msra.mxu0 0
      %4997 = vmatprep.mubr.bf16.mxu0 0
      %4998 = vmatmul.mubr.bf16.gmra.mrb[0].mxu0 %v4954
      %v4999 = vpop.f32.mrb[0].mxu0
      %v5000 = vadd.f32 0.0, %v4999
      %v5001 = vpop.f32.mrb[0].mxu0
      %v5002 = vpop.f32.mrb[0].mxu0
      %v5003 = vadd.f32 0.0, %v5002
      %v5004 = vpop.f32.mrb[0].mxu0
      %5005 = vmatprep.mubr.bf16.mxu0 0
      %5006 = vmatmul.mubr.bf16.gmra.mrb[0].mxu0 %v4957
      %v5007 = vpop.f32.mrb[0].mxu0
      %v5008 = vadd.f32 0.0, %v5007
      %v5009 = vpop.f32.mrb[0].mxu0
      %v5010 = vpop.f32.mrb[0].mxu0
      %v5011 = vadd.f32 0.0, %v5010
      %v5012 = vpop.f32.mrb[0].mxu0
      %5013 = vmatprep.mubr.bf16.mxu0 0
      %5014 = vmatmul.mubr.bf16.gmra.mrb[0].mxu0 %v4960
      %v5015 = vpop.f32.mrb[0].mxu0
      %v5016 = vadd.f32 0.0, %v5015
      %v5017 = vpop.f32.mrb[0].mxu0
      %v5018 = vpop.f32.mrb[0].mxu0
      %v5019 = vadd.f32 0.0, %v5018
      %v5020 = vpop.f32.mrb[0].mxu0
      %5021 = vmatprep.mubr.bf16.mxu0 0
      %5022 = vmatmul.mubr.bf16.gmra.mrb[0].mxu0 %v4963
      %v5023 = vpop.f32.mrb[0].mxu0
      %v5024 = vadd.f32 0.0, %v5023
      %v5025 = vpop.f32.mrb[0].mxu0
      %v5026 = vpop.f32.mrb[0].mxu0
      %v5027 = vadd.f32 0.0, %v5026
      %v5028 = vpop.f32.mrb[0].mxu0
      %5029 = vdwg.mxu0
      %5030 = vrot.lane.b32.xlu0 %v622, 40
      %v5031 = vpop.permute.xlu0 %5030
      %5032 = vrot.lane.b32.xlu0 %v623, 40
      %v5033 = vpop.permute.xlu0 %5032
      %5034 = vrot.lane.b32.xlu0 %v624, 40
      %v5035 = vpop.permute.xlu0 %5034
      %5036 = vrot.lane.b32.xlu0 %v625, 40
      %v5037 = vpop.permute.xlu0 %5036
      %v5043 = vsel %vm1035, %v4844, 0
      %v5046 = vsel %vm1035, %v4845, 0
      %v5049 = vsel %vm1035, %v4846, 0
      %v5052 = vsel %vm1035, %v4847, 0
      %5054 = vmatprep.subr.bf16.mxu0 0
      %5055 = vmatpush1.bf16.msra.mxu0 %v5031
      %5056 = vmatprep.subr.bf16.mxu0 0
      %5057 = vmatpush1.bf16.msra.mxu0 %v5033
      %5058 = vmatprep.subr.bf16.mxu0 0
      %5059 = vmatpush1.bf16.msra.mxu0 %v5035
      %5060 = vmatprep.subr.bf16.mxu0 0
      %5061 = vmatpush1.bf16.msra.mxu0 %v5037
      %5062 = vmatprep.subr.bf16.mxu0 0
      %5063 = vmatpush1.bf16.msra.mxu0 0
      %5064 = vmatprep.subr.bf16.mxu0 0
      %5065 = vmatpush1.bf16.msra.mxu0 0
      %5066 = vmatprep.subr.bf16.mxu0 0
      %5067 = vmatpush1.bf16.msra.mxu0 0
      %5068 = vmatprep.subr.bf16.mxu0 0
      %5069 = vmatpush1.bf16.msra.mxu0 0
      %5070 = vmatprep.subr.bf16.mxu0 0
      %5071 = vmatpush1.bf16.msra.mxu0 0
      %5072 = vmatprep.subr.bf16.mxu0 0
      %5073 = vmatpush1.bf16.msra.mxu0 0
      %5074 = vmatprep.subr.bf16.mxu0 0
      %5075 = vmatpush1.bf16.msra.mxu0 0
      %5076 = vmatprep.subr.bf16.mxu0 0
      %5077 = vmatpush1.bf16.msra.mxu0 0
      %5078 = vmatprep.subr.bf16.mxu0 0
      %5079 = vmatpush1.bf16.msra.mxu0 0
      %5080 = vmatprep.subr.bf16.mxu0 0
      %5081 = vmatpush1.bf16.msra.mxu0 0
      %5082 = vmatprep.subr.bf16.mxu0 0
      %5083 = vmatpush1.bf16.msra.mxu0 0
      %5084 = vmatprep.subr.bf16.mxu0 0
      %5085 = vmatpush1.bf16.msra.mxu0 0
      %5086 = vmatprep.mubr.bf16.mxu0 0
      %5087 = vmatmul.mubr.bf16.gmra.mrb[0].mxu0 %v5043
      %v5088 = vpop.f32.mrb[0].mxu0
      %v5089 = vadd.f32 0.0, %v5088
      %v5090 = vpop.f32.mrb[0].mxu0
      %v5091 = vpop.f32.mrb[0].mxu0
      %v5092 = vadd.f32 0.0, %v5091
      %v5093 = vpop.f32.mrb[0].mxu0
      %5094 = vmatprep.mubr.bf16.mxu0 0
      %5095 = vmatmul.mubr.bf16.gmra.mrb[0].mxu0 %v5046
      %v5096 = vpop.f32.mrb[0].mxu0
      %v5097 = vadd.f32 0.0, %v5096
      %v5098 = vpop.f32.mrb[0].mxu0
      %v5099 = vpop.f32.mrb[0].mxu0
      %v5100 = vadd.f32 0.0, %v5099
      %v5101 = vpop.f32.mrb[0].mxu0
      %5102 = vmatprep.mubr.bf16.mxu0 0
      %5103 = vmatmul.mubr.bf16.gmra.mrb[0].mxu0 %v5049
      %v5104 = vpop.f32.mrb[0].mxu0
      %v5105 = vadd.f32 0.0, %v5104
      %v5106 = vpop.f32.mrb[0].mxu0
      %v5107 = vpop.f32.mrb[0].mxu0
      %v5108 = vadd.f32 0.0, %v5107
      %v5109 = vpop.f32.mrb[0].mxu0
      %5110 = vmatprep.mubr.bf16.mxu0 0
      %5111 = vmatmul.mubr.bf16.gmra.mrb[0].mxu0 %v5052
      %v5112 = vpop.f32.mrb[0].mxu0
      %v5113 = vadd.f32 0.0, %v5112
      %v5114 = vpop.f32.mrb[0].mxu0
      %v5115 = vpop.f32.mrb[0].mxu0
      %v5116 = vadd.f32 0.0, %v5115
      %v5117 = vpop.f32.mrb[0].mxu0
      %5118 = vdwg.mxu0
      %5119 = vrot.lane.b32.xlu0 %v626, 40
      %v5120 = vpop.permute.xlu0 %5119
      %5121 = vrot.lane.b32.xlu0 %v627, 40
      %v5122 = vpop.permute.xlu0 %5121
      %5123 = vrot.lane.b32.xlu0 %v628, 40
      %v5124 = vpop.permute.xlu0 %5123
      %5125 = vrot.lane.b32.xlu0 %v629, 40
      %v5126 = vpop.permute.xlu0 %5125
      %v5132 = vsel %vm1035, %v4848, 0
      %v5135 = vsel %vm1035, %v4849, 0
      %v5138 = vsel %vm1035, %v4850, 0
      %v5141 = vsel %vm1035, %v4851, 0
      %5143 = vmatprep.subr.bf16.mxu0 0
      %5144 = vmatpush1.bf16.msra.mxu0 %v5120
      %5145 = vmatprep.subr.bf16.mxu0 0
      %5146 = vmatpush1.bf16.msra.mxu0 %v5122
      %5147 = vmatprep.subr.bf16.mxu0 0
      %5148 = vmatpush1.bf16.msra.mxu0 %v5124
      %5149 = vmatprep.subr.bf16.mxu0 0
      %5150 = vmatpush1.bf16.msra.mxu0 %v5126
      %5151 = vmatprep.subr.bf16.mxu0 0
      %5152 = vmatpush1.bf16.msra.mxu0 0
      %5153 = vmatprep.subr.bf16.mxu0 0
      %5154 = vmatpush1.bf16.msra.mxu0 0
      %5155 = vmatprep.subr.bf16.mxu0 0
      %5156 = vmatpush1.bf16.msra.mxu0 0
      %5157 = vmatprep.subr.bf16.mxu0 0
      %5158 = vmatpush1.bf16.msra.mxu0 0
      %5159 = vmatprep.subr.bf16.mxu0 0
      %5160 = vmatpush1.bf16.msra.mxu0 0
      %5161 = vmatprep.subr.bf16.mxu0 0
      %5162 = vmatpush1.bf16.msra.mxu0 0
      %5163 = vmatprep.subr.bf16.mxu0 0
      %5164 = vmatpush1.bf16.msra.mxu0 0
      %5165 = vmatprep.subr.bf16.mxu0 0
      %5166 = vmatpush1.bf16.msra.mxu0 0
      %5167 = vmatprep.subr.bf16.mxu0 0
      %5168 = vmatpush1.bf16.msra.mxu0 0
      %5169 = vmatprep.subr.bf16.mxu0 0
      %5170 = vmatpush1.bf16.msra.mxu0 0
      %5171 = vmatprep.subr.bf16.mxu0 0
      %5172 = vmatpush1.bf16.msra.mxu0 0
      %5173 = vmatprep.subr.bf16.mxu0 0
      %5174 = vmatpush1.bf16.msra.mxu0 0
      %5175 = vmatprep.mubr.bf16.mxu0 0
      %5176 = vmatmul.mubr.bf16.gmra.mrb[0].mxu0 %v5132
      %v5177 = vpop.f32.mrb[0].mxu0
      %v5178 = vadd.f32 0.0, %v5177
      %v5179 = vpop.f32.mrb[0].mxu0
      %v5180 = vpop.f32.mrb[0].mxu0
      %v5181 = vadd.f32 0.0, %v5180
      %v5182 = vpop.f32.mrb[0].mxu0
      %5183 = vmatprep.mubr.bf16.mxu0 0
      %5184 = vmatmul.mubr.bf16.gmra.mrb[0].mxu0 %v5135
      %v5185 = vpop.f32.mrb[0].mxu0
      %v5186 = vadd.f32 0.0, %v5185
      %v5187 = vpop.f32.mrb[0].mxu0
      %v5188 = vpop.f32.mrb[0].mxu0
      %v5189 = vadd.f32 0.0, %v5188
      %v5190 = vpop.f32.mrb[0].mxu0
      %5191 = vmatprep.mubr.bf16.mxu0 0
      %5192 = vmatmul.mubr.bf16.gmra.mrb[0].mxu0 %v5138
      %v5193 = vpop.f32.mrb[0].mxu0
      %v5194 = vadd.f32 0.0, %v5193
      %v5195 = vpop.f32.mrb[0].mxu0
      %v5196 = vpop.f32.mrb[0].mxu0
      %v5197 = vadd.f32 0.0, %v5196
      %v5198 = vpop.f32.mrb[0].mxu0
      %5199 = vmatprep.mubr.bf16.mxu0 0
      %5200 = vmatmul.mubr.bf16.gmra.mrb[0].mxu0 %v5141
      %v5201 = vpop.f32.mrb[0].mxu0
      %v5202 = vadd.f32 0.0, %v5201
      %v5203 = vpop.f32.mrb[0].mxu0
      %v5204 = vpop.f32.mrb[0].mxu0
      %v5205 = vadd.f32 0.0, %v5204
      %v5206 = vpop.f32.mrb[0].mxu0
      %5207 = vdwg.mxu0
      %5240 = vrot.lane.b32.xlu0 %v2623, 8
      %v5241 = vpop.permute.xlu0 %5240
      %5242 = vrot.lane.b32.xlu0 %v2626, 8
      %v5243 = vpop.permute.xlu0 %5242
      %5244 = vrot.lane.b32.xlu0 %v2631, 8
      %v5245 = vpop.permute.xlu0 %5244
      %5246 = vrot.lane.b32.xlu0 %v2634, 8
      %v5247 = vpop.permute.xlu0 %5246
      %5248 = vrot.lane.b32.xlu0 %v2639, 8
      %v5249 = vpop.permute.xlu0 %5248
      %5250 = vrot.lane.b32.xlu0 %v2642, 8
      %v5251 = vpop.permute.xlu0 %5250
      %5252 = vrot.lane.b32.xlu0 %v2647, 8
      %v5253 = vpop.permute.xlu0 %5252
      %5254 = vrot.lane.b32.xlu0 %v2650, 8
      %v5255 = vpop.permute.xlu0 %5254
      %5256 = vrot.lane.b32.xlu0 %v2712, 8
      %v5257 = vpop.permute.xlu0 %5256
      %5258 = vrot.lane.b32.xlu0 %v2715, 8
      %v5259 = vpop.permute.xlu0 %5258
      %5260 = vrot.lane.b32.xlu0 %v2720, 8
      %v5261 = vpop.permute.xlu0 %5260
      %5262 = vrot.lane.b32.xlu0 %v2723, 8
      %v5263 = vpop.permute.xlu0 %5262
      %5264 = vrot.lane.b32.xlu0 %v2728, 8
      %v5265 = vpop.permute.xlu0 %5264
      %5266 = vrot.lane.b32.xlu0 %v2731, 8
      %v5267 = vpop.permute.xlu0 %5266
      %5268 = vrot.lane.b32.xlu0 %v2736, 8
      %v5269 = vpop.permute.xlu0 %5268
      %5270 = vrot.lane.b32.xlu0 %v2739, 8
      %v5271 = vpop.permute.xlu0 %5270
      %5272 = vrot.lane.b32.xlu0 %v2801, 8
      %v5273 = vpop.permute.xlu0 %5272
      %5274 = vrot.lane.b32.xlu0 %v2804, 8
      %v5275 = vpop.permute.xlu0 %5274
      %5276 = vrot.lane.b32.xlu0 %v2809, 8
      %v5277 = vpop.permute.xlu0 %5276
      %5278 = vrot.lane.b32.xlu0 %v2812, 8
      %v5279 = vpop.permute.xlu0 %5278
      %5280 = vrot.lane.b32.xlu0 %v2817, 8
      %v5281 = vpop.permute.xlu0 %5280
      %5282 = vrot.lane.b32.xlu0 %v2820, 8
      %v5283 = vpop.permute.xlu0 %5282
      %5284 = vrot.lane.b32.xlu0 %v2825, 8
      %v5285 = vpop.permute.xlu0 %5284
      %5286 = vrot.lane.b32.xlu0 %v2828, 8
      %v5287 = vpop.permute.xlu0 %5286
      %5288 = vrot.lane.b32.xlu0 %v2890, 8
      %v5289 = vpop.permute.xlu0 %5288
      %5290 = vrot.lane.b32.xlu0 %v2893, 8
      %v5291 = vpop.permute.xlu0 %5290
      %5292 = vrot.lane.b32.xlu0 %v2898, 8
      %v5293 = vpop.permute.xlu0 %5292
      %5294 = vrot.lane.b32.xlu0 %v2901, 8
      %v5295 = vpop.permute.xlu0 %5294
      %5296 = vrot.lane.b32.xlu0 %v2906, 8
      %v5297 = vpop.permute.xlu0 %5296
      %5298 = vrot.lane.b32.xlu0 %v2909, 8
      %v5299 = vpop.permute.xlu0 %5298
      %5300 = vrot.lane.b32.xlu0 %v2914, 8
      %v5301 = vpop.permute.xlu0 %5300
      %5302 = vrot.lane.b32.xlu0 %v2917, 8
      %v5303 = vpop.permute.xlu0 %5302
      %5368 = vrot.lane.b32.xlu0 %v3767, 16
      %v5369 = vpop.permute.xlu0 %5368
      %5370 = vrot.lane.b32.xlu0 %v3770, 16
      %v5371 = vpop.permute.xlu0 %5370
      %5372 = vrot.lane.b32.xlu0 %v3775, 16
      %v5373 = vpop.permute.xlu0 %5372
      %5374 = vrot.lane.b32.xlu0 %v3778, 16
      %v5375 = vpop.permute.xlu0 %5374
      %5376 = vrot.lane.b32.xlu0 %v3783, 16
      %v5377 = vpop.permute.xlu0 %5376
      %5378 = vrot.lane.b32.xlu0 %v3786, 16
      %v5379 = vpop.permute.xlu0 %5378
      %5380 = vrot.lane.b32.xlu0 %v3791, 16
      %v5381 = vpop.permute.xlu0 %5380
      %5382 = vrot.lane.b32.xlu0 %v3794, 16
      %v5383 = vpop.permute.xlu0 %5382
      %5384 = vrot.lane.b32.xlu0 %v3856, 16
      %v5385 = vpop.permute.xlu0 %5384
      %5386 = vrot.lane.b32.xlu0 %v3859, 16
      %v5387 = vpop.permute.xlu0 %5386
      %5388 = vrot.lane.b32.xlu0 %v3864, 16
      %v5389 = vpop.permute.xlu0 %5388
      %5390 = vrot.lane.b32.xlu0 %v3867, 16
      %v5391 = vpop.permute.xlu0 %5390
      %5392 = vrot.lane.b32.xlu0 %v3872, 16
      %v5393 = vpop.permute.xlu0 %5392
      %5394 = vrot.lane.b32.xlu0 %v3875, 16
      %v5395 = vpop.permute.xlu0 %5394
      %5396 = vrot.lane.b32.xlu0 %v3880, 16
      %v5397 = vpop.permute.xlu0 %5396
      %5398 = vrot.lane.b32.xlu0 %v3883, 16
      %v5399 = vpop.permute.xlu0 %5398
      %5400 = vrot.lane.b32.xlu0 %v3945, 16
      %v5401 = vpop.permute.xlu0 %5400
      %5402 = vrot.lane.b32.xlu0 %v3948, 16
      %v5403 = vpop.permute.xlu0 %5402
      %5404 = vrot.lane.b32.xlu0 %v3953, 16
      %v5405 = vpop.permute.xlu0 %5404
      %5406 = vrot.lane.b32.xlu0 %v3956, 16
      %v5407 = vpop.permute.xlu0 %5406
      %5408 = vrot.lane.b32.xlu0 %v3961, 16
      %v5409 = vpop.permute.xlu0 %5408
      %5410 = vrot.lane.b32.xlu0 %v3964, 16
      %v5411 = vpop.permute.xlu0 %5410
      %5412 = vrot.lane.b32.xlu0 %v3969, 16
      %v5413 = vpop.permute.xlu0 %5412
      %5414 = vrot.lane.b32.xlu0 %v3972, 16
      %v5415 = vpop.permute.xlu0 %5414
      %5416 = vrot.lane.b32.xlu0 %v4034, 16
      %v5417 = vpop.permute.xlu0 %5416
      %5418 = vrot.lane.b32.xlu0 %v4037, 16
      %v5419 = vpop.permute.xlu0 %5418
      %5420 = vrot.lane.b32.xlu0 %v4042, 16
      %v5421 = vpop.permute.xlu0 %5420
      %5422 = vrot.lane.b32.xlu0 %v4045, 16
      %v5423 = vpop.permute.xlu0 %5422
      %5424 = vrot.lane.b32.xlu0 %v4050, 16
      %v5425 = vpop.permute.xlu0 %5424
      %5426 = vrot.lane.b32.xlu0 %v4053, 16
      %v5427 = vpop.permute.xlu0 %5426
      %5428 = vrot.lane.b32.xlu0 %v4058, 16
      %v5429 = vpop.permute.xlu0 %5428
      %5430 = vrot.lane.b32.xlu0 %v4061, 16
      %v5431 = vpop.permute.xlu0 %5430
      %5496 = vrot.lane.b32.xlu0 %v4911, 24
      %v5497 = vpop.permute.xlu0 %5496
      %5498 = vrot.lane.b32.xlu0 %v4914, 24
      %v5499 = vpop.permute.xlu0 %5498
      %5500 = vrot.lane.b32.xlu0 %v4919, 24
      %v5501 = vpop.permute.xlu0 %5500
      %5502 = vrot.lane.b32.xlu0 %v4922, 24
      %v5503 = vpop.permute.xlu0 %5502
      %5504 = vrot.lane.b32.xlu0 %v4927, 24
      %v5505 = vpop.permute.xlu0 %5504
      %5506 = vrot.lane.b32.xlu0 %v4930, 24
      %v5507 = vpop.permute.xlu0 %5506
      %5508 = vrot.lane.b32.xlu0 %v4935, 24
      %v5509 = vpop.permute.xlu0 %5508
      %5510 = vrot.lane.b32.xlu0 %v4938, 24
      %v5511 = vpop.permute.xlu0 %5510
      %5512 = vrot.lane.b32.xlu0 %v5000, 24
      %v5513 = vpop.permute.xlu0 %5512
      %5514 = vrot.lane.b32.xlu0 %v5003, 24
      %v5515 = vpop.permute.xlu0 %5514
      %5516 = vrot.lane.b32.xlu0 %v5008, 24
      %v5517 = vpop.permute.xlu0 %5516
      %5518 = vrot.lane.b32.xlu0 %v5011, 24
      %v5519 = vpop.permute.xlu0 %5518
      %5520 = vrot.lane.b32.xlu0 %v5016, 24
      %v5521 = vpop.permute.xlu0 %5520
      %5522 = vrot.lane.b32.xlu0 %v5019, 24
      %v5523 = vpop.permute.xlu0 %5522
      %5524 = vrot.lane.b32.xlu0 %v5024, 24
      %v5525 = vpop.permute.xlu0 %5524
      %5526 = vrot.lane.b32.xlu0 %v5027, 24
      %v5527 = vpop.permute.xlu0 %5526
      %5528 = vrot.lane.b32.xlu0 %v5089, 24
      %v5529 = vpop.permute.xlu0 %5528
      %5530 = vrot.lane.b32.xlu0 %v5092, 24
      %v5531 = vpop.permute.xlu0 %5530
      %5532 = vrot.lane.b32.xlu0 %v5097, 24
      %v5533 = vpop.permute.xlu0 %5532
      %5534 = vrot.lane.b32.xlu0 %v5100, 24
      %v5535 = vpop.permute.xlu0 %5534
      %5536 = vrot.lane.b32.xlu0 %v5105, 24
      %v5537 = vpop.permute.xlu0 %5536
      %5538 = vrot.lane.b32.xlu0 %v5108, 24
      %v5539 = vpop.permute.xlu0 %5538
      %5540 = vrot.lane.b32.xlu0 %v5113, 24
      %v5541 = vpop.permute.xlu0 %5540
      %5542 = vrot.lane.b32.xlu0 %v5116, 24
      %v5543 = vpop.permute.xlu0 %5542
      %5544 = vrot.lane.b32.xlu0 %v5178, 24
      %v5545 = vpop.permute.xlu0 %5544
      %5546 = vrot.lane.b32.xlu0 %v5181, 24
      %v5547 = vpop.permute.xlu0 %5546
      %5548 = vrot.lane.b32.xlu0 %v5186, 24
      %v5549 = vpop.permute.xlu0 %5548
      %5550 = vrot.lane.b32.xlu0 %v5189, 24
      %v5551 = vpop.permute.xlu0 %5550
      %5552 = vrot.lane.b32.xlu0 %v5194, 24
      %v5553 = vpop.permute.xlu0 %5552
      %5554 = vrot.lane.b32.xlu0 %v5197, 24
      %v5555 = vpop.permute.xlu0 %5554
      %5556 = vrot.lane.b32.xlu0 %v5202, 24
      %v5557 = vpop.permute.xlu0 %5556
      %5558 = vrot.lane.b32.xlu0 %v5205, 24
      %v5559 = vpop.permute.xlu0 %5558
      %v5592 = vsel %vm642, %v1463, %v5241
      %v5593 = vsel %vm642, %v1466, %v5243
      %v5594 = vsel %vm642, %v1471, %v5245
      %v5595 = vsel %vm642, %v1474, %v5247
      %v5596 = vsel %vm642, %v1479, %v5249
      %v5597 = vsel %vm642, %v1482, %v5251
      %v5598 = vsel %vm642, %v1487, %v5253
      %v5599 = vsel %vm642, %v1490, %v5255
      %v5600 = vsel %vm642, %v1552, %v5257
      %v5601 = vsel %vm642, %v1555, %v5259
      %v5602 = vsel %vm642, %v1560, %v5261
      %v5603 = vsel %vm642, %v1563, %v5263
      %v5604 = vsel %vm642, %v1568, %v5265
      %v5605 = vsel %vm642, %v1571, %v5267
      %v5606 = vsel %vm642, %v1576, %v5269
      %v5607 = vsel %vm642, %v1579, %v5271
      %v5608 = vsel %vm642, %v1641, %v5273
      %v5609 = vsel %vm642, %v1644, %v5275
      %v5610 = vsel %vm642, %v1649, %v5277
      %v5611 = vsel %vm642, %v1652, %v5279
      %v5612 = vsel %vm642, %v1657, %v5281
      %v5613 = vsel %vm642, %v1660, %v5283
      %v5614 = vsel %vm642, %v1665, %v5285
      %v5615 = vsel %vm642, %v1668, %v5287
      %v5616 = vsel %vm642, %v1730, %v5289
      %v5617 = vsel %vm642, %v1733, %v5291
      %v5618 = vsel %vm642, %v1738, %v5293
      %v5619 = vsel %vm642, %v1741, %v5295
      %v5620 = vsel %vm642, %v1746, %v5297
      %v5621 = vsel %vm642, %v1749, %v5299
      %v5622 = vsel %vm642, %v1754, %v5301
      %v5623 = vsel %vm642, %v1757, %v5303
      %vm5624 = vcmask 130048
      %v5625 = vsel %vm5624, %v5592, %v5369
      %v5626 = vsel %vm5624, %v5593, %v5371
      %v5627 = vsel %vm5624, %v5594, %v5373
      %v5628 = vsel %vm5624, %v5595, %v5375
      %v5629 = vsel %vm5624, %v5596, %v5377
      %v5630 = vsel %vm5624, %v5597, %v5379
      %v5631 = vsel %vm5624, %v5598, %v5381
      %v5632 = vsel %vm5624, %v5599, %v5383
      %v5633 = vsel %vm5624, %v5600, %v5385
      %v5634 = vsel %vm5624, %v5601, %v5387
      %v5635 = vsel %vm5624, %v5602, %v5389
      %v5636 = vsel %vm5624, %v5603, %v5391
      %v5637 = vsel %vm5624, %v5604, %v5393
      %v5638 = vsel %vm5624, %v5605, %v5395
      %v5639 = vsel %vm5624, %v5606, %v5397
      %v5640 = vsel %vm5624, %v5607, %v5399
      %v5641 = vsel %vm5624, %v5608, %v5401
      %v5642 = vsel %vm5624, %v5609, %v5403
      %v5643 = vsel %vm5624, %v5610, %v5405
      %v5644 = vsel %vm5624, %v5611, %v5407
      %v5645 = vsel %vm5624, %v5612, %v5409
      %v5646 = vsel %vm5624, %v5613, %v5411
      %v5647 = vsel %vm5624, %v5614, %v5413
      %v5648 = vsel %vm5624, %v5615, %v5415
      %v5649 = vsel %vm5624, %v5616, %v5417
      %v5650 = vsel %vm5624, %v5617, %v5419
      %v5651 = vsel %vm5624, %v5618, %v5421
      %v5652 = vsel %vm5624, %v5619, %v5423
      %v5653 = vsel %vm5624, %v5620, %v5425
      %v5654 = vsel %vm5624, %v5621, %v5427
      %v5655 = vsel %vm5624, %v5622, %v5429
      %v5656 = vsel %vm5624, %v5623, %v5431
      %vm5657 = vcmask 195584
      %v5658 = vsel %vm5657, %v5625, %v5497
      %v5659 = vsel %vm5657, %v5626, %v5499
      %v5660 = vsel %vm5657, %v5627, %v5501
      %v5661 = vsel %vm5657, %v5628, %v5503
      %v5662 = vsel %vm5657, %v5629, %v5505
      %v5663 = vsel %vm5657, %v5630, %v5507
      %v5664 = vsel %vm5657, %v5631, %v5509
      %v5665 = vsel %vm5657, %v5632, %v5511
      %v5666 = vsel %vm5657, %v5633, %v5513
      %v5667 = vsel %vm5657, %v5634, %v5515
      %v5668 = vsel %vm5657, %v5635, %v5517
      %v5669 = vsel %vm5657, %v5636, %v5519
      %v5670 = vsel %vm5657, %v5637, %v5521
      %v5671 = vsel %vm5657, %v5638, %v5523
      %v5672 = vsel %vm5657, %v5639, %v5525
      %v5673 = vsel %vm5657, %v5640, %v5527
      %v5674 = vsel %vm5657, %v5641, %v5529
      %v5675 = vsel %vm5657, %v5642, %v5531
      %v5676 = vsel %vm5657, %v5643, %v5533
      %v5677 = vsel %vm5657, %v5644, %v5535
      %v5678 = vsel %vm5657, %v5645, %v5537
      %v5679 = vsel %vm5657, %v5646, %v5539
      %v5680 = vsel %vm5657, %v5647, %v5541
      %v5681 = vsel %vm5657, %v5648, %v5543
      %v5682 = vsel %vm5657, %v5649, %v5545
      %v5683 = vsel %vm5657, %v5650, %v5547
      %v5684 = vsel %vm5657, %v5651, %v5549
      %v5685 = vsel %vm5657, %v5652, %v5551
      %v5686 = vsel %vm5657, %v5653, %v5553
      %v5687 = vsel %vm5657, %v5654, %v5555
      %v5688 = vsel %vm5657, %v5655, %v5557
      %v5689 = vsel %vm5657, %v5656, %v5559
      %v5690 = vpack.c.bf16 %v5659, %v5658
      %v5691 = vpack.c.bf16 %v5661, %v5660
      %v5692 = vpack.c.bf16 %v5663, %v5662
      %v5693 = vpack.c.bf16 %v5665, %v5664
      %v5694 = vpack.c.bf16 %v5667, %v5666
      %v5695 = vpack.c.bf16 %v5669, %v5668
      %v5696 = vpack.c.bf16 %v5671, %v5670
      %v5697 = vpack.c.bf16 %v5673, %v5672
      %v5698 = vpack.c.bf16 %v5675, %v5674
      %v5699 = vpack.c.bf16 %v5677, %v5676
      %v5700 = vpack.c.bf16 %v5679, %v5678
      %v5701 = vpack.c.bf16 %v5681, %v5680
      %v5702 = vpack.c.bf16 %v5683, %v5682
      %v5703 = vpack.c.bf16 %v5685, %v5684
      %v5704 = vpack.c.bf16 %v5687, %v5686
      %v5705 = vpack.c.bf16 %v5689, %v5688
      %v5706 = vld [vmem:[%s4] sm:$0xf]
      %v5707 = vld [vmem:[%s4 + $0x4] sm:$0xf]
      %v5708 = vld [vmem:[%s4 + $0x8] sm:$0xf]
      %v5709 = vld [vmem:[%s4 + $0xc] sm:$0xf]
      %v5710 = vld [vmem:[%s5] sm:$0x1]
      %v5712 = vlaneseq
      %v5713 = vshrl.u32 %v5712, 7
      %v5714 = vsub.s32 0, %v5713
      %v5715 = vrot.slane %v5710, %v5714
      %v5721 = vunpack.c.l.b16 %v5706
      %v5722 = vunpack.c.l.b16 %v5707
      %v5723 = vunpack.c.l.b16 %v5708
      %v5724 = vunpack.c.l.b16 %v5709
      %v5725 = vpack.c.b16 %v5722, %v5721
      %v5726 = vpack.c.b16 %v5724, %v5723
      %v5730 = vsel %vm324, %v5690, 0
      %v5733 = vsel %vm324, %v5691, 0
      %v5736 = vsel %vm324, %v5692, 0
      %v5739 = vsel %vm324, %v5693, 0
      %v5742 = vsel %vm324, %v5694, 0
      %v5745 = vsel %vm324, %v5695, 0
      %v5748 = vsel %vm324, %v5696, 0
      %v5751 = vsel %vm324, %v5697, 0
      %v5754 = vsel %vm324, %v5698, 0
      %v5757 = vsel %vm324, %v5699, 0
      %v5760 = vsel %vm324, %v5700, 0
      %v5763 = vsel %vm324, %v5701, 0
      %v5766 = vsel %vm324, %v5702, 0
      %v5769 = vsel %vm324, %v5703, 0
      %v5772 = vsel %vm324, %v5704, 0
      %v5775 = vsel %vm324, %v5705, 0
      %5777 = vmatprep.subr.bf16.mxu0 0
      %5778 = vmatpush1.bf16.msra.mxu0 %v5725
      %5779 = vmatprep.subr.bf16.mxu0 0
      %5780 = vmatpush1.bf16.msra.mxu0 %v5726
      %5781 = vmatprep.subr.bf16.mxu0 0
      %5782 = vmatpush1.bf16.msra.mxu0 0
      %5783 = vmatprep.subr.bf16.mxu0 0
      %5784 = vmatpush1.bf16.msra.mxu0 0
      %5785 = vmatprep.subr.bf16.mxu0 0
      %5786 = vmatpush1.bf16.msra.mxu0 0
      %5787 = vmatprep.subr.bf16.mxu0 0
      %5788 = vmatpush1.bf16.msra.mxu0 0
      %5789 = vmatprep.subr.bf16.mxu0 0
      %5790 = vmatpush1.bf16.msra.mxu0 0
      %5791 = vmatprep.subr.bf16.mxu0 0
      %5792 = vmatpush1.bf16.msra.mxu0 0
      %5793 = vmatprep.subr.bf16.mxu0 0
      %5794 = vmatpush1.bf16.msra.mxu0 0
      %5795 = vmatprep.subr.bf16.mxu0 0
      %5796 = vmatpush1.bf16.msra.mxu0 0
      %5797 = vmatprep.subr.bf16.mxu0 0
      %5798 = vmatpush1.bf16.msra.mxu0 0
      %5799 = vmatprep.subr.bf16.mxu0 0
      %5800 = vmatpush1.bf16.msra.mxu0 0
      %5801 = vmatprep.subr.bf16.mxu0 0
      %5802 = vmatpush1.bf16.msra.mxu0 0
      %5803 = vmatprep.subr.bf16.mxu0 0
      %5804 = vmatpush1.bf16.msra.mxu0 0
      %5805 = vmatprep.subr.bf16.mxu0 0
      %5806 = vmatpush1.bf16.msra.mxu0 0
      %5807 = vmatprep.subr.bf16.mxu0 0
      %5808 = vmatpush1.bf16.msra.mxu0 0
      %5809 = vmatprep.mubr.bf16.mxu0 0
      %5810 = vmatmul.mubr.bf16.gmra.mrb[0].mxu0 %v5730
      %v5811 = vpop.f32.mrb[0].mxu0
      %v5812 = vadd.f32 %v5715, %v5811
      %v5813 = vpop.f32.mrb[0].mxu0
      %v5814 = vpop.f32.mrb[0].mxu0
      %v5815 = vadd.f32 %v5715, %v5814
      %v5816 = vpop.f32.mrb[0].mxu0
      %5817 = vmatprep.mubr.bf16.mxu0 0
      %5818 = vmatmul.mubr.bf16.gmra.mrb[0].mxu0 %v5733
      %v5819 = vpop.f32.mrb[0].mxu0
      %v5820 = vadd.f32 %v5715, %v5819
      %v5821 = vpop.f32.mrb[0].mxu0
      %v5822 = vpop.f32.mrb[0].mxu0
      %v5823 = vadd.f32 %v5715, %v5822
      %v5824 = vpop.f32.mrb[0].mxu0
      %5825 = vmatprep.mubr.bf16.mxu0 0
      %5826 = vmatmul.mubr.bf16.gmra.mrb[0].mxu0 %v5736
      %v5827 = vpop.f32.mrb[0].mxu0
      %v5828 = vadd.f32 %v5715, %v5827
      %v5829 = vpop.f32.mrb[0].mxu0
      %v5830 = vpop.f32.mrb[0].mxu0
      %v5831 = vadd.f32 %v5715, %v5830
      %v5832 = vpop.f32.mrb[0].mxu0
      %5833 = vmatprep.mubr.bf16.mxu0 0
      %5834 = vmatmul.mubr.bf16.gmra.mrb[0].mxu0 %v5739
      %v5835 = vpop.f32.mrb[0].mxu0
      %v5836 = vadd.f32 %v5715, %v5835
      %v5837 = vpop.f32.mrb[0].mxu0
      %v5838 = vpop.f32.mrb[0].mxu0
      %v5839 = vadd.f32 %v5715, %v5838
      %v5840 = vpop.f32.mrb[0].mxu0
      %5841 = vmatprep.mubr.bf16.mxu0 0
      %5842 = vmatmul.mubr.bf16.gmra.mrb[0].mxu0 %v5742
      %v5843 = vpop.f32.mrb[0].mxu0
      %v5844 = vadd.f32 %v5715, %v5843
      %v5845 = vpop.f32.mrb[0].mxu0
      %v5846 = vpop.f32.mrb[0].mxu0
      %v5847 = vadd.f32 %v5715, %v5846
      %v5848 = vpop.f32.mrb[0].mxu0
      %5849 = vmatprep.mubr.bf16.mxu0 0
      %5850 = vmatmul.mubr.bf16.gmra.mrb[0].mxu0 %v5745
      %v5851 = vpop.f32.mrb[0].mxu0
      %v5852 = vadd.f32 %v5715, %v5851
      %v5853 = vpop.f32.mrb[0].mxu0
      %v5854 = vpop.f32.mrb[0].mxu0
      %v5855 = vadd.f32 %v5715, %v5854
      %v5856 = vpop.f32.mrb[0].mxu0
      %5857 = vmatprep.mubr.bf16.mxu0 0
      %5858 = vmatmul.mubr.bf16.gmra.mrb[0].mxu0 %v5748
      %v5859 = vpop.f32.mrb[0].mxu0
      %v5860 = vadd.f32 %v5715, %v5859
      %v5861 = vpop.f32.mrb[0].mxu0
      %v5862 = vpop.f32.mrb[0].mxu0
      %v5863 = vadd.f32 %v5715, %v5862
      %v5864 = vpop.f32.mrb[0].mxu0
      %5865 = vmatprep.mubr.bf16.mxu0 0
      %5866 = vmatmul.mubr.bf16.gmra.mrb[0].mxu0 %v5751
      %v5867 = vpop.f32.mrb[0].mxu0
      %v5868 = vadd.f32 %v5715, %v5867
      %v5869 = vpop.f32.mrb[0].mxu0
      %v5870 = vpop.f32.mrb[0].mxu0
      %v5871 = vadd.f32 %v5715, %v5870
      %v5872 = vpop.f32.mrb[0].mxu0
      %5873 = vmatprep.mubr.bf16.mxu0 0
      %5874 = vmatmul.mubr.bf16.gmra.mrb[0].mxu0 %v5754
      %v5875 = vpop.f32.mrb[0].mxu0
      %v5876 = vadd.f32 %v5715, %v5875
      %v5877 = vpop.f32.mrb[0].mxu0
      %v5878 = vpop.f32.mrb[0].mxu0
      %v5879 = vadd.f32 %v5715, %v5878
      %v5880 = vpop.f32.mrb[0].mxu0
      %5881 = vmatprep.mubr.bf16.mxu0 0
      %5882 = vmatmul.mubr.bf16.gmra.mrb[0].mxu0 %v5757
      %v5883 = vpop.f32.mrb[0].mxu0
      %v5884 = vadd.f32 %v5715, %v5883
      %v5885 = vpop.f32.mrb[0].mxu0
      %v5886 = vpop.f32.mrb[0].mxu0
      %v5887 = vadd.f32 %v5715, %v5886
      %v5888 = vpop.f32.mrb[0].mxu0
      %5889 = vmatprep.mubr.bf16.mxu0 0
      %5890 = vmatmul.mubr.bf16.gmra.mrb[0].mxu0 %v5760
      %v5891 = vpop.f32.mrb[0].mxu0
      %v5892 = vadd.f32 %v5715, %v5891
      %v5893 = vpop.f32.mrb[0].mxu0
      %v5894 = vpop.f32.mrb[0].mxu0
      %v5895 = vadd.f32 %v5715, %v5894
      %v5896 = vpop.f32.mrb[0].mxu0
      %5897 = vmatprep.mubr.bf16.mxu0 0
      %5898 = vmatmul.mubr.bf16.gmra.mrb[0].mxu0 %v5763
      %v5899 = vpop.f32.mrb[0].mxu0
      %v5900 = vadd.f32 %v5715, %v5899
      %v5901 = vpop.f32.mrb[0].mxu0
      %v5902 = vpop.f32.mrb[0].mxu0
      %v5903 = vadd.f32 %v5715, %v5902
      %v5904 = vpop.f32.mrb[0].mxu0
      %5905 = vmatprep.mubr.bf16.mxu0 0
      %5906 = vmatmul.mubr.bf16.gmra.mrb[0].mxu0 %v5766
      %v5907 = vpop.f32.mrb[0].mxu0
      %v5908 = vadd.f32 %v5715, %v5907
      %v5909 = vpop.f32.mrb[0].mxu0
      %v5910 = vpop.f32.mrb[0].mxu0
      %v5911 = vadd.f32 %v5715, %v5910
      %v5912 = vpop.f32.mrb[0].mxu0
      %5913 = vmatprep.mubr.bf16.mxu0 0
      %5914 = vmatmul.mubr.bf16.gmra.mrb[0].mxu0 %v5769
      %v5915 = vpop.f32.mrb[0].mxu0
      %v5916 = vadd.f32 %v5715, %v5915
      %v5917 = vpop.f32.mrb[0].mxu0
      %v5918 = vpop.f32.mrb[0].mxu0
      %v5919 = vadd.f32 %v5715, %v5918
      %v5920 = vpop.f32.mrb[0].mxu0
      %5921 = vmatprep.mubr.bf16.mxu0 0
      %5922 = vmatmul.mubr.bf16.gmra.mrb[0].mxu0 %v5772
      %v5923 = vpop.f32.mrb[0].mxu0
      %v5924 = vadd.f32 %v5715, %v5923
      %v5925 = vpop.f32.mrb[0].mxu0
      %v5926 = vpop.f32.mrb[0].mxu0
      %v5927 = vadd.f32 %v5715, %v5926
      %v5928 = vpop.f32.mrb[0].mxu0
      %5929 = vmatprep.mubr.bf16.mxu0 0
      %5930 = vmatmul.mubr.bf16.gmra.mrb[0].mxu0 %v5775
      %v5931 = vpop.f32.mrb[0].mxu0
      %v5932 = vadd.f32 %v5715, %v5931
      %v5933 = vpop.f32.mrb[0].mxu0
      %v5934 = vpop.f32.mrb[0].mxu0
      %v5935 = vadd.f32 %v5715, %v5934
      %v5936 = vpop.f32.mrb[0].mxu0
      %5937 = vdwg.mxu0
      %5938 = vst.msk [vmem:[%s251] sm:$0xff] %vm324, %v5812
      %5939 = vst.msk [vmem:[%s251 + $0x8] sm:$0xff] %vm324, %v5815
      %5940 = vst.msk [vmem:[%s251 + $0x10] sm:$0xff] %vm324, %v5820
      %5941 = vst.msk [vmem:[%s251 + $0x18] sm:$0xff] %vm324, %v5823
      %5942 = vst.msk [vmem:[%s251 + $0x20] sm:$0xff] %vm324, %v5828
      %5943 = vst.msk [vmem:[%s251 + $0x28] sm:$0xff] %vm324, %v5831
      %5944 = vst.msk [vmem:[%s251 + $0x30] sm:$0xff] %vm324, %v5836
      %5945 = vst.msk [vmem:[%s251 + $0x38] sm:$0xff] %vm324, %v5839
      %5946 = vst.msk [vmem:[%s251 + $0x40] sm:$0xff] %vm324, %v5844
      %5947 = vst.msk [vmem:[%s251 + $0x48] sm:$0xff] %vm324, %v5847
      %5948 = vst.msk [vmem:[%s251 + $0x50] sm:$0xff] %vm324, %v5852
      %5949 = vst.msk [vmem:[%s251 + $0x58] sm:$0xff] %vm324, %v5855
      %5950 = vst.msk [vmem:[%s251 + $0x60] sm:$0xff] %vm324, %v5860
      %5951 = vst.msk [vmem:[%s251 + $0x68] sm:$0xff] %vm324, %v5863
      %5952 = vst.msk [vmem:[%s251 + $0x70] sm:$0xff] %vm324, %v5868
      %5953 = vst.msk [vmem:[%s251 + $0x78] sm:$0xff] %vm324, %v5871
      %5954 = vst.msk [vmem:[%s251 + $0x80] sm:$0xff] %vm324, %v5876
      %5955 = vst.msk [vmem:[%s251 + $0x88] sm:$0xff] %vm324, %v5879
      %5956 = vst.msk [vmem:[%s251 + $0x90] sm:$0xff] %vm324, %v5884
      %5957 = vst.msk [vmem:[%s251 + $0x98] sm:$0xff] %vm324, %v5887
      %5958 = vst.msk [vmem:[%s251 + $0xa0] sm:$0xff] %vm324, %v5892
      %5959 = vst.msk [vmem:[%s251 + $0xa8] sm:$0xff] %vm324, %v5895
      %5960 = vst.msk [vmem:[%s251 + $0xb0] sm:$0xff] %vm324, %v5900
      %5961 = vst.msk [vmem:[%s251 + $0xb8] sm:$0xff] %vm324, %v5903
      %5962 = vst.msk [vmem:[%s251 + $0xc0] sm:$0xff] %vm324, %v5908
      %5963 = vst.msk [vmem:[%s251 + $0xc8] sm:$0xff] %vm324, %v5911
      %5964 = vst.msk [vmem:[%s251 + $0xd0] sm:$0xff] %vm324, %v5916
      %5965 = vst.msk [vmem:[%s251 + $0xd8] sm:$0xff] %vm324, %v5919
      %5966 = vst.msk [vmem:[%s251 + $0xe0] sm:$0xff] %vm324, %v5924
      %5967 = vst.msk [vmem:[%s251 + $0xe8] sm:$0xff] %vm324, %v5927
      %5968 = vst.msk [vmem:[%s251 + $0xf0] sm:$0xff] %vm324, %v5932
      %5969 = vst.msk [vmem:[%s251 + $0xf8] sm:$0xff] %vm324, %v5935
      %p5970 = scmp.lt.s32.totalorder %s17, 1
      %s5971 = scalar_select %p5970, %s17, 1
      %s5972 = smul.addr %s5971, 32
      %s5973 = smul.addr %s5972, 8
      %s5974 = scalar_lea.vmem %s6, %s5973
      // Predicated region
      $region45: #{tpu_custom_call.1} parent=43 // pred_check
        %p5975 = pneg %p166
      $region46: #{tpu_custom_call.1} parent=43 // pred_check_branch
        %5977 = sbr.rel (%p5975) target = $region48
      $region47: #{tpu_custom_call.1} parent=43 // pred_region
        _
      $region48: #{tpu_custom_call.1} parent=43 // pred_fallthru
        _
    $region44: #{tpu_custom_call.1} parent=5 // pred_fallthru
      _
    %p5978 = scmp.le.s32.totalorder 2, %s12
    // Predicated region
    $region49: #{tpu_custom_call.1} parent=5 // pred_check
      %p5979 = pneg %p5978
    $region50: #{tpu_custom_call.1} parent=5 // pred_check_branch
      %5981 = sbr.rel (%p5979) target = $region52
    $region51: #{tpu_custom_call.1} parent=5 // pred_region
      %s5982 = ssub.s32 %s12, 2
      // Predicated region
      $region53: #{tpu_custom_call.1} parent=51 // pred_check
        %p5983 = pneg %p172
      $region54: #{tpu_custom_call.1} parent=51 // pred_check_branch
        %5985 = sbr.rel (%p5983) target = $region56
      $region55: #{tpu_custom_call.1} parent=51 // pred_region
        %p5986 = scmp.lt.s32.totalorder %s18, 1
        %s5987 = scalar_select %p5986, %s18, 1
        %s5988 = smul.addr %s5987, 32
        %s5989 = smul.addr %s5988, 8
        %s5990 = scalar_lea.vmem %s6, %s5989
      $region56: #{tpu_custom_call.1} parent=51 // pred_fallthru
        _
    $region52: #{tpu_custom_call.1} parent=5 // pred_fallthru
      _
  $region6: #{tpu_custom_call.1} parent=0 // loop_footer
    %s16 = sadd.s32 1, %s12
  $region7: #{tpu_custom_call.1} parent=0 // loop_footer_branch
    %11 = sbr.rel target = $region3
  $region8: #{tpu_custom_call.1} parent=0 // loop_exit
    _

</llo_original>
